<compile_context>
chip_gen: v5e
topology: v5e:2x2
jax: 0.10.0
libtpu: 0.0.40
codegen_flags: <defaults>
</compile_context>

<pallas_src>
import jax
import jax.numpy as jnp
from jax.experimental import pallas as pl
from jax.experimental.pallas import tpu as pltpu


def _bilinear_matrix(in_size: int, out_size: int) -> jnp.ndarray:
    """M (out_size, in_size): out = M @ in, PyTorch bilinear align_corners=True."""
    if out_size == 1:
        src = jnp.zeros((1,), dtype=jnp.float32)
    else:
        src = jnp.arange(out_size, dtype=jnp.float32) * (in_size - 1) / (out_size - 1)
    lo = jnp.floor(src).astype(jnp.int32)
    hi = jnp.minimum(lo + 1, in_size - 1)
    frac = src - lo.astype(jnp.float32)
    cols = jnp.arange(in_size)
    m = ((cols[None, :] == lo[:, None]).astype(jnp.float32) * (1.0 - frac)[:, None]
         + (cols[None, :] == hi[:, None]).astype(jnp.float32) * frac[:, None])
    return m


def _upsamplein_kernel(x_ref, w_ref, wh_ref, wwt_ref, o_ref):
    # x_ref  : (1, Cin, H+2, W+2)  padded input image (VMEM)
    # w_ref  : (Cout*Cin*9,)       conv weights, flat OIHW order (SMEM scalars)
    # wh_ref : (Hout, H)           height interpolation matrix (resident)
    # wwt_ref: (W, Wout)           width interpolation matrix, transposed (resident)
    # o_ref  : (1, Cout, Hout, Wout)  output, NCHW directly
    _, cin, hp, wp = x_ref.shape
    h, w = hp - 2, wp - 2
    _, cout, hout, wout = o_ref.shape

    # 9 shifted 3x3-tap windows (Cin, H, W), shared by every output channel.
    taps = [x_ref[0, :, pl.ds(kh, h), pl.ds(kw, w)]
            for kh in range(3) for kw in range(3)]

    # ---- 3x3 conv: 9-tap accumulation on the VPU (f32), rows ordered (co, h) ----
    rows = []
    for co in range(cout):
        acc = jnp.zeros((h, w), dtype=jnp.float32)
        for ci in range(cin):
            base = (co * cin + ci) * 9          # flat index of weight[co, ci, 0, 0]
            for t in range(9):                  # t = kh*3 + kw
                acc = acc + w_ref[base + t] * taps[t][ci]
        rows.append(acc)
    y = jnp.concatenate(rows, axis=0)           # (Cout*H, W), channel-major rows

    # ---- width interpolation: one MXU matmul with M = Cout*H (>=128) ----
    z = jnp.dot(y, wwt_ref[...], preferred_element_type=jnp.float32)     # (Cout*H, Wout)

    # ---- height interpolation: block-diagonal over channels -> small loop,
    #      result stored straight into NCHW ----
    wh = wh_ref[...]
    for co in range(cout):
        blk = z[co * h:(co + 1) * h, :]                                   # (H, Wout)
        o_ref[0, co] = jnp.dot(wh, blk,
                               preferred_element_type=jnp.float32).astype(o_ref.dtype)


def upsamplein_forward(x_nchw: jnp.ndarray, weight_oihw: jnp.ndarray, scale_f) -> jnp.ndarray:
    """PyTorch-equivalent: Upsample(scale_f, bilinear, align_corners=True)(Conv2d(x))."""
    N, Cin, H, W = x_nchw.shape
    Cout = weight_oihw.shape[0]
    Hout, Wout = int(H * scale_f), int(W * scale_f)

    # 1x input (+ conv halo) through HBM - no im2col inflation.
    x_pad = jnp.pad(x_nchw.astype(jnp.float32), ((0, 0), (0, 0), (1, 1), (1, 1)))
    w_flat = weight_oihw.astype(jnp.float32).reshape(-1)        # (Cout*Cin*9,)
    wh = _bilinear_matrix(H, Hout)                              # (Hout, H)
    wwt = _bilinear_matrix(W, Wout).T                           # (W, Wout)

    out = pl.pallas_call(
        _upsamplein_kernel,
        out_shape=jax.ShapeDtypeStruct((N, Cout, Hout, Wout), jnp.float32),
        grid=(N,),
        in_specs=[
            pl.BlockSpec((1, Cin, H + 2, W + 2), lambda n: (n, 0, 0, 0)),
            pl.BlockSpec(memory_space=pltpu.MemorySpace.SMEM),   # conv weights as scalars
            pl.BlockSpec((Hout, H), lambda n: (0, 0)),           # resident (KB-scale)
            pl.BlockSpec((W, Wout), lambda n: (0, 0)),           # resident (KB-scale)
        ],
        out_specs=pl.BlockSpec((1, Cout, Hout, Wout), lambda n: (n, 0, 0, 0)),
        compiler_params=pltpu.CompilerParams(dimension_semantics=("parallel",)),
    )(x_pad, w_flat, wh, wwt)
    return out


def _reference(x_nchw, weight_oihw, scale_f):
    # pure-JAX reference for correctness check
    y = jax.lax.conv_general_dilated(
        x_nchw, weight_oihw, window_strides=(1, 1), padding="SAME",
        dimension_numbers=("NCHW", "OIHW", "NCHW"))
    H, W = y.shape[2], y.shape[3]
    Hout, Wout = int(H * scale_f), int(W * scale_f)
    wh = _bilinear_matrix(H, Hout)
    ww = _bilinear_matrix(W, Wout)
    return jnp.einsum("oh,pw,nchw->ncop", wh, ww, y)


if __name__ == "__main__":
    # small, module-consistent shapes
    N, in_feat, out_feat, H, W, scale_f = 2, 4, 8, 16, 16, 2

    key = jax.random.PRNGKey(0)
    kx, kw = jax.random.split(key)
    x = jax.random.normal(kx, (N, in_feat, H, W), dtype=jnp.float32)
    # deterministic synthetic conv weight (Conv2d(in_feat, out_feat, 3) shape, OIHW)
    fan_in = in_feat * 3 * 3
    weight = jax.random.uniform(kw, (out_feat, in_feat, 3, 3), dtype=jnp.float32,
                                minval=-1.0, maxval=1.0) / jnp.sqrt(fan_in)

    out = upsamplein_forward(x, weight, scale_f)
    out = jax.block_until_ready(out)

    ref = _reference(x, weight, scale_f)
    assert out.shape == (N, out_feat, H * scale_f, W * scale_f), out.shape
    assert jnp.allclose(out, ref, atol=1e-4, rtol=1e-4), float(jnp.max(jnp.abs(out - ref)))

    print("KERNEL_OK")
</pallas_src>

<mosaic_0001>
module attributes {stable_mosaic.version = 11 : i64} {
  func.func @_upsamplein_kernel(%arg0: i32, %arg1: memref<1x4x18x18xf32, #tpu.memory_space<vmem>>, %arg2: memref<288xf32, #tpu.memory_space<smem>>, %arg3: memref<32x16xf32, #tpu.memory_space<vmem>>, %arg4: memref<16x32xf32, #tpu.memory_space<vmem>>, %arg5: memref<1x8x32x32xf32, #tpu.memory_space<vmem>>) attributes {dimension_semantics = [#tpu.dimension_semantics<parallel>], iteration_bounds = array<i64: 2>, scalar_prefetch = 0 : i64, scratch_operands = 0 : i64, tpu.core_type = #tpu.core_type<tc>, window_params = [{transform_indices = @transform_0, window_bounds = array<i64: 1, 4, 18, 18>}, {transform_indices = @transform_1, window_bounds = array<i64: 288>}, {pipeline_mode = #tpu.pipeline_mode<synchronous>, transform_indices = @transform_2, window_bounds = array<i64: 32, 16>}, {pipeline_mode = #tpu.pipeline_mode<synchronous>, transform_indices = @transform_3, window_bounds = array<i64: 16, 32>}, {transform_indices = @transform_4, window_bounds = array<i64: 1, 8, 32, 32>}]} {
    %c0 = arith.constant 0 : index
    %c0_0 = arith.constant 0 : index
    %c0_1 = arith.constant 0 : index
    %c0_2 = arith.constant 0 : index
    %0 = vector.load %arg1[%c0, %c0_0, %c0_1, %c0_2] : memref<1x4x18x18xf32, #tpu.memory_space<vmem>>, vector<1x4x16x16xf32>
    %1 = vector.shape_cast %0 : vector<1x4x16x16xf32> to vector<4x16x16xf32>
    %c0_3 = arith.constant 0 : index
    %c0_4 = arith.constant 0 : index
    %c0_5 = arith.constant 0 : index
    %c1 = arith.constant 1 : index
    %2 = vector.load %arg1[%c0_3, %c0_4, %c0_5, %c1] : memref<1x4x18x18xf32, #tpu.memory_space<vmem>>, vector<1x4x16x16xf32>
    %3 = vector.shape_cast %2 : vector<1x4x16x16xf32> to vector<4x16x16xf32>
    %c0_6 = arith.constant 0 : index
    %c0_7 = arith.constant 0 : index
    %c0_8 = arith.constant 0 : index
    %c2 = arith.constant 2 : index
    %4 = vector.load %arg1[%c0_6, %c0_7, %c0_8, %c2] : memref<1x4x18x18xf32, #tpu.memory_space<vmem>>, vector<1x4x16x16xf32>
    %5 = vector.shape_cast %4 : vector<1x4x16x16xf32> to vector<4x16x16xf32>
    %c0_9 = arith.constant 0 : index
    %c0_10 = arith.constant 0 : index
    %c1_11 = arith.constant 1 : index
    %c0_12 = arith.constant 0 : index
    %6 = vector.load %arg1[%c0_9, %c0_10, %c1_11, %c0_12] : memref<1x4x18x18xf32, #tpu.memory_space<vmem>>, vector<1x4x16x16xf32>
    %7 = vector.shape_cast %6 : vector<1x4x16x16xf32> to vector<4x16x16xf32>
    %c0_13 = arith.constant 0 : index
    %c0_14 = arith.constant 0 : index
    %c1_15 = arith.constant 1 : index
    %c1_16 = arith.constant 1 : index
    %8 = vector.load %arg1[%c0_13, %c0_14, %c1_15, %c1_16] : memref<1x4x18x18xf32, #tpu.memory_space<vmem>>, vector<1x4x16x16xf32>
    %9 = vector.shape_cast %8 : vector<1x4x16x16xf32> to vector<4x16x16xf32>
    %c0_17 = arith.constant 0 : index
    %c0_18 = arith.constant 0 : index
    %c1_19 = arith.constant 1 : index
    %c2_20 = arith.constant 2 : index
    %10 = vector.load %arg1[%c0_17, %c0_18, %c1_19, %c2_20] : memref<1x4x18x18xf32, #tpu.memory_space<vmem>>, vector<1x4x16x16xf32>
    %11 = vector.shape_cast %10 : vector<1x4x16x16xf32> to vector<4x16x16xf32>
    %c0_21 = arith.constant 0 : index
    %c0_22 = arith.constant 0 : index
    %c2_23 = arith.constant 2 : index
    %c0_24 = arith.constant 0 : index
    %12 = vector.load %arg1[%c0_21, %c0_22, %c2_23, %c0_24] : memref<1x4x18x18xf32, #tpu.memory_space<vmem>>, vector<1x4x16x16xf32>
    %13 = vector.shape_cast %12 : vector<1x4x16x16xf32> to vector<4x16x16xf32>
    %c0_25 = arith.constant 0 : index
    %c0_26 = arith.constant 0 : index
    %c2_27 = arith.constant 2 : index
    %c1_28 = arith.constant 1 : index
    %14 = vector.load %arg1[%c0_25, %c0_26, %c2_27, %c1_28] : memref<1x4x18x18xf32, #tpu.memory_space<vmem>>, vector<1x4x16x16xf32>
    %15 = vector.shape_cast %14 : vector<1x4x16x16xf32> to vector<4x16x16xf32>
    %c0_29 = arith.constant 0 : index
    %c0_30 = arith.constant 0 : index
    %c2_31 = arith.constant 2 : index
    %c2_32 = arith.constant 2 : index
    %16 = vector.load %arg1[%c0_29, %c0_30, %c2_31, %c2_32] : memref<1x4x18x18xf32, #tpu.memory_space<vmem>>, vector<1x4x16x16xf32>
    %17 = vector.shape_cast %16 : vector<1x4x16x16xf32> to vector<4x16x16xf32>
    %cst = arith.constant 0.000000e+00 : f32
    %18 = vector.broadcast %cst : f32 to vector<16x16xf32>
    %c0_33 = arith.constant 0 : index
    %19 = memref.load %arg2[%c0_33] : memref<288xf32, #tpu.memory_space<smem>>
    %20 = vector.extract_strided_slice %1 {offsets = [0, 0, 0], sizes = [1, 16, 16], strides = [1, 1, 1]} : vector<4x16x16xf32> to vector<1x16x16xf32>
    %21 = vector.shape_cast %20 : vector<1x16x16xf32> to vector<16x16xf32>
    %22 = vector.broadcast %19 : f32 to vector<16x16xf32>
    %23 = arith.mulf %22, %21 : vector<16x16xf32>
    %24 = arith.addf %18, %23 : vector<16x16xf32>
    %c1_34 = arith.constant 1 : index
    %25 = memref.load %arg2[%c1_34] : memref<288xf32, #tpu.memory_space<smem>>
    %26 = vector.extract_strided_slice %3 {offsets = [0, 0, 0], sizes = [1, 16, 16], strides = [1, 1, 1]} : vector<4x16x16xf32> to vector<1x16x16xf32>
    %27 = vector.shape_cast %26 : vector<1x16x16xf32> to vector<16x16xf32>
    %28 = vector.broadcast %25 : f32 to vector<16x16xf32>
    %29 = arith.mulf %28, %27 : vector<16x16xf32>
    %30 = arith.addf %24, %29 : vector<16x16xf32>
    %c2_35 = arith.constant 2 : index
    %31 = memref.load %arg2[%c2_35] : memref<288xf32, #tpu.memory_space<smem>>
    %32 = vector.extract_strided_slice %5 {offsets = [0, 0, 0], sizes = [1, 16, 16], strides = [1, 1, 1]} : vector<4x16x16xf32> to vector<1x16x16xf32>
    %33 = vector.shape_cast %32 : vector<1x16x16xf32> to vector<16x16xf32>
    %34 = vector.broadcast %31 : f32 to vector<16x16xf32>
    %35 = arith.mulf %34, %33 : vector<16x16xf32>
    %36 = arith.addf %30, %35 : vector<16x16xf32>
    %c3 = arith.constant 3 : index
    %37 = memref.load %arg2[%c3] : memref<288xf32, #tpu.memory_space<smem>>
    %38 = vector.extract_strided_slice %7 {offsets = [0, 0, 0], sizes = [1, 16, 16], strides = [1, 1, 1]} : vector<4x16x16xf32> to vector<1x16x16xf32>
    %39 = vector.shape_cast %38 : vector<1x16x16xf32> to vector<16x16xf32>
    %40 = vector.broadcast %37 : f32 to vector<16x16xf32>
    %41 = arith.mulf %40, %39 : vector<16x16xf32>
    %42 = arith.addf %36, %41 : vector<16x16xf32>
    %c4 = arith.constant 4 : index
    %43 = memref.load %arg2[%c4] : memref<288xf32, #tpu.memory_space<smem>>
    %44 = vector.extract_strided_slice %9 {offsets = [0, 0, 0], sizes = [1, 16, 16], strides = [1, 1, 1]} : vector<4x16x16xf32> to vector<1x16x16xf32>
    %45 = vector.shape_cast %44 : vector<1x16x16xf32> to vector<16x16xf32>
    %46 = vector.broadcast %43 : f32 to vector<16x16xf32>
    %47 = arith.mulf %46, %45 : vector<16x16xf32>
    %48 = arith.addf %42, %47 : vector<16x16xf32>
    %c5 = arith.constant 5 : index
    %49 = memref.load %arg2[%c5] : memref<288xf32, #tpu.memory_space<smem>>
    %50 = vector.extract_strided_slice %11 {offsets = [0, 0, 0], sizes = [1, 16, 16], strides = [1, 1, 1]} : vector<4x16x16xf32> to vector<1x16x16xf32>
    %51 = vector.shape_cast %50 : vector<1x16x16xf32> to vector<16x16xf32>
    %52 = vector.broadcast %49 : f32 to vector<16x16xf32>
    %53 = arith.mulf %52, %51 : vector<16x16xf32>
    %54 = arith.addf %48, %53 : vector<16x16xf32>
    %c6 = arith.constant 6 : index
    %55 = memref.load %arg2[%c6] : memref<288xf32, #tpu.memory_space<smem>>
    %56 = vector.extract_strided_slice %13 {offsets = [0, 0, 0], sizes = [1, 16, 16], strides = [1, 1, 1]} : vector<4x16x16xf32> to vector<1x16x16xf32>
    %57 = vector.shape_cast %56 : vector<1x16x16xf32> to vector<16x16xf32>
    %58 = vector.broadcast %55 : f32 to vector<16x16xf32>
    %59 = arith.mulf %58, %57 : vector<16x16xf32>
    %60 = arith.addf %54, %59 : vector<16x16xf32>
    %c7 = arith.constant 7 : index
    %61 = memref.load %arg2[%c7] : memref<288xf32, #tpu.memory_space<smem>>
    %62 = vector.extract_strided_slice %15 {offsets = [0, 0, 0], sizes = [1, 16, 16], strides = [1, 1, 1]} : vector<4x16x16xf32> to vector<1x16x16xf32>
    %63 = vector.shape_cast %62 : vector<1x16x16xf32> to vector<16x16xf32>
    %64 = vector.broadcast %61 : f32 to vector<16x16xf32>
    %65 = arith.mulf %64, %63 : vector<16x16xf32>
    %66 = arith.addf %60, %65 : vector<16x16xf32>
    %c8 = arith.constant 8 : index
    %67 = memref.load %arg2[%c8] : memref<288xf32, #tpu.memory_space<smem>>
    %68 = vector.extract_strided_slice %17 {offsets = [0, 0, 0], sizes = [1, 16, 16], strides = [1, 1, 1]} : vector<4x16x16xf32> to vector<1x16x16xf32>
    %69 = vector.shape_cast %68 : vector<1x16x16xf32> to vector<16x16xf32>
    %70 = vector.broadcast %67 : f32 to vector<16x16xf32>
    %71 = arith.mulf %70, %69 : vector<16x16xf32>
    %72 = arith.addf %66, %71 : vector<16x16xf32>
    %c9 = arith.constant 9 : index
    %73 = memref.load %arg2[%c9] : memref<288xf32, #tpu.memory_space<smem>>
    %74 = vector.extract_strided_slice %1 {offsets = [1, 0, 0], sizes = [1, 16, 16], strides = [1, 1, 1]} : vector<4x16x16xf32> to vector<1x16x16xf32>
    %75 = vector.shape_cast %74 : vector<1x16x16xf32> to vector<16x16xf32>
    %76 = vector.broadcast %73 : f32 to vector<16x16xf32>
    %77 = arith.mulf %76, %75 : vector<16x16xf32>
    %78 = arith.addf %72, %77 : vector<16x16xf32>
    %c10 = arith.constant 10 : index
    %79 = memref.load %arg2[%c10] : memref<288xf32, #tpu.memory_space<smem>>
    %80 = vector.extract_strided_slice %3 {offsets = [1, 0, 0], sizes = [1, 16, 16], strides = [1, 1, 1]} : vector<4x16x16xf32> to vector<1x16x16xf32>
    %81 = vector.shape_cast %80 : vector<1x16x16xf32> to vector<16x16xf32>
    %82 = vector.broadcast %79 : f32 to vector<16x16xf32>
    %83 = arith.mulf %82, %81 : vector<16x16xf32>
    %84 = arith.addf %78, %83 : vector<16x16xf32>
    %c11 = arith.constant 11 : index
    %85 = memref.load %arg2[%c11] : memref<288xf32, #tpu.memory_space<smem>>
    %86 = vector.extract_strided_slice %5 {offsets = [1, 0, 0], sizes = [1, 16, 16], strides = [1, 1, 1]} : vector<4x16x16xf32> to vector<1x16x16xf32>
    %87 = vector.shape_cast %86 : vector<1x16x16xf32> to vector<16x16xf32>
    %88 = vector.broadcast %85 : f32 to vector<16x16xf32>
    %89 = arith.mulf %88, %87 : vector<16x16xf32>
    %90 = arith.addf %84, %89 : vector<16x16xf32>
    %c12 = arith.constant 12 : index
    %91 = memref.load %arg2[%c12] : memref<288xf32, #tpu.memory_space<smem>>
    %92 = vector.extract_strided_slice %7 {offsets = [1, 0, 0], sizes = [1, 16, 16], strides = [1, 1, 1]} : vector<4x16x16xf32> to vector<1x16x16xf32>
    %93 = vector.shape_cast %92 : vector<1x16x16xf32> to vector<16x16xf32>
    %94 = vector.broadcast %91 : f32 to vector<16x16xf32>
    %95 = arith.mulf %94, %93 : vector<16x16xf32>
    %96 = arith.addf %90, %95 : vector<16x16xf32>
    %c13 = arith.constant 13 : index
    %97 = memref.load %arg2[%c13] : memref<288xf32, #tpu.memory_space<smem>>
    %98 = vector.extract_strided_slice %9 {offsets = [1, 0, 0], sizes = [1, 16, 16], strides = [1, 1, 1]} : vector<4x16x16xf32> to vector<1x16x16xf32>
    %99 = vector.shape_cast %98 : vector<1x16x16xf32> to vector<16x16xf32>
    %100 = vector.broadcast %97 : f32 to vector<16x16xf32>
    %101 = arith.mulf %100, %99 : vector<16x16xf32>
    %102 = arith.addf %96, %101 : vector<16x16xf32>
    %c14 = arith.constant 14 : index
    %103 = memref.load %arg2[%c14] : memref<288xf32, #tpu.memory_space<smem>>
    %104 = vector.extract_strided_slice %11 {offsets = [1, 0, 0], sizes = [1, 16, 16], strides = [1, 1, 1]} : vector<4x16x16xf32> to vector<1x16x16xf32>
    %105 = vector.shape_cast %104 : vector<1x16x16xf32> to vector<16x16xf32>
    %106 = vector.broadcast %103 : f32 to vector<16x16xf32>
    %107 = arith.mulf %106, %105 : vector<16x16xf32>
    %108 = arith.addf %102, %107 : vector<16x16xf32>
    %c15 = arith.constant 15 : index
    %109 = memref.load %arg2[%c15] : memref<288xf32, #tpu.memory_space<smem>>
    %110 = vector.extract_strided_slice %13 {offsets = [1, 0, 0], sizes = [1, 16, 16], strides = [1, 1, 1]} : vector<4x16x16xf32> to vector<1x16x16xf32>
    %111 = vector.shape_cast %110 : vector<1x16x16xf32> to vector<16x16xf32>
    %112 = vector.broadcast %109 : f32 to vector<16x16xf32>
    %113 = arith.mulf %112, %111 : vector<16x16xf32>
    %114 = arith.addf %108, %113 : vector<16x16xf32>
    %c16 = arith.constant 16 : index
    %115 = memref.load %arg2[%c16] : memref<288xf32, #tpu.memory_space<smem>>
    %116 = vector.extract_strided_slice %15 {offsets = [1, 0, 0], sizes = [1, 16, 16], strides = [1, 1, 1]} : vector<4x16x16xf32> to vector<1x16x16xf32>
    %117 = vector.shape_cast %116 : vector<1x16x16xf32> to vector<16x16xf32>
    %118 = vector.broadcast %115 : f32 to vector<16x16xf32>
    %119 = arith.mulf %118, %117 : vector<16x16xf32>
    %120 = arith.addf %114, %119 : vector<16x16xf32>
    %c17 = arith.constant 17 : index
    %121 = memref.load %arg2[%c17] : memref<288xf32, #tpu.memory_space<smem>>
    %122 = vector.extract_strided_slice %17 {offsets = [1, 0, 0], sizes = [1, 16, 16], strides = [1, 1, 1]} : vector<4x16x16xf32> to vector<1x16x16xf32>
    %123 = vector.shape_cast %122 : vector<1x16x16xf32> to vector<16x16xf32>
    %124 = vector.broadcast %121 : f32 to vector<16x16xf32>
    %125 = arith.mulf %124, %123 : vector<16x16xf32>
    %126 = arith.addf %120, %125 : vector<16x16xf32>
    %c18 = arith.constant 18 : index
    %127 = memref.load %arg2[%c18] : memref<288xf32, #tpu.memory_space<smem>>
    %128 = vector.extract_strided_slice %1 {offsets = [2, 0, 0], sizes = [1, 16, 16], strides = [1, 1, 1]} : vector<4x16x16xf32> to vector<1x16x16xf32>
    %129 = vector.shape_cast %128 : vector<1x16x16xf32> to vector<16x16xf32>
    %130 = vector.broadcast %127 : f32 to vector<16x16xf32>
    %131 = arith.mulf %130, %129 : vector<16x16xf32>
    %132 = arith.addf %126, %131 : vector<16x16xf32>
    %c19 = arith.constant 19 : index
    %133 = memref.load %arg2[%c19] : memref<288xf32, #tpu.memory_space<smem>>
    %134 = vector.extract_strided_slice %3 {offsets = [2, 0, 0], sizes = [1, 16, 16], strides = [1, 1, 1]} : vector<4x16x16xf32> to vector<1x16x16xf32>
    %135 = vector.shape_cast %134 : vector<1x16x16xf32> to vector<16x16xf32>
    %136 = vector.broadcast %133 : f32 to vector<16x16xf32>
    %137 = arith.mulf %136, %135 : vector<16x16xf32>
    %138 = arith.addf %132, %137 : vector<16x16xf32>
    %c20 = arith.constant 20 : index
    %139 = memref.load %arg2[%c20] : memref<288xf32, #tpu.memory_space<smem>>
    %140 = vector.extract_strided_slice %5 {offsets = [2, 0, 0], sizes = [1, 16, 16], strides = [1, 1, 1]} : vector<4x16x16xf32> to vector<1x16x16xf32>
    %141 = vector.shape_cast %140 : vector<1x16x16xf32> to vector<16x16xf32>
    %142 = vector.broadcast %139 : f32 to vector<16x16xf32>
    %143 = arith.mulf %142, %141 : vector<16x16xf32>
    %144 = arith.addf %138, %143 : vector<16x16xf32>
    %c21 = arith.constant 21 : index
    %145 = memref.load %arg2[%c21] : memref<288xf32, #tpu.memory_space<smem>>
    %146 = vector.extract_strided_slice %7 {offsets = [2, 0, 0], sizes = [1, 16, 16], strides = [1, 1, 1]} : vector<4x16x16xf32> to vector<1x16x16xf32>
    %147 = vector.shape_cast %146 : vector<1x16x16xf32> to vector<16x16xf32>
    %148 = vector.broadcast %145 : f32 to vector<16x16xf32>
    %149 = arith.mulf %148, %147 : vector<16x16xf32>
    %150 = arith.addf %144, %149 : vector<16x16xf32>
    %c22 = arith.constant 22 : index
    %151 = memref.load %arg2[%c22] : memref<288xf32, #tpu.memory_space<smem>>
    %152 = vector.extract_strided_slice %9 {offsets = [2, 0, 0], sizes = [1, 16, 16], strides = [1, 1, 1]} : vector<4x16x16xf32> to vector<1x16x16xf32>
    %153 = vector.shape_cast %152 : vector<1x16x16xf32> to vector<16x16xf32>
    %154 = vector.broadcast %151 : f32 to vector<16x16xf32>
    %155 = arith.mulf %154, %153 : vector<16x16xf32>
    %156 = arith.addf %150, %155 : vector<16x16xf32>
    %c23 = arith.constant 23 : index
    %157 = memref.load %arg2[%c23] : memref<288xf32, #tpu.memory_space<smem>>
    %158 = vector.extract_strided_slice %11 {offsets = [2, 0, 0], sizes = [1, 16, 16], strides = [1, 1, 1]} : vector<4x16x16xf32> to vector<1x16x16xf32>
    %159 = vector.shape_cast %158 : vector<1x16x16xf32> to vector<16x16xf32>
    %160 = vector.broadcast %157 : f32 to vector<16x16xf32>
    %161 = arith.mulf %160, %159 : vector<16x16xf32>
    %162 = arith.addf %156, %161 : vector<16x16xf32>
    %c24 = arith.constant 24 : index
    %163 = memref.load %arg2[%c24] : memref<288xf32, #tpu.memory_space<smem>>
    %164 = vector.extract_strided_slice %13 {offsets = [2, 0, 0], sizes = [1, 16, 16], strides = [1, 1, 1]} : vector<4x16x16xf32> to vector<1x16x16xf32>
    %165 = vector.shape_cast %164 : vector<1x16x16xf32> to vector<16x16xf32>
    %166 = vector.broadcast %163 : f32 to vector<16x16xf32>
    %167 = arith.mulf %166, %165 : vector<16x16xf32>
    %168 = arith.addf %162, %167 : vector<16x16xf32>
    %c25 = arith.constant 25 : index
    %169 = memref.load %arg2[%c25] : memref<288xf32, #tpu.memory_space<smem>>
    %170 = vector.extract_strided_slice %15 {offsets = [2, 0, 0], sizes = [1, 16, 16], strides = [1, 1, 1]} : vector<4x16x16xf32> to vector<1x16x16xf32>
    %171 = vector.shape_cast %170 : vector<1x16x16xf32> to vector<16x16xf32>
    %172 = vector.broadcast %169 : f32 to vector<16x16xf32>
    %173 = arith.mulf %172, %171 : vector<16x16xf32>
    %174 = arith.addf %168, %173 : vector<16x16xf32>
    %c26 = arith.constant 26 : index
    %175 = memref.load %arg2[%c26] : memref<288xf32, #tpu.memory_space<smem>>
    %176 = vector.extract_strided_slice %17 {offsets = [2, 0, 0], sizes = [1, 16, 16], strides = [1, 1, 1]} : vector<4x16x16xf32> to vector<1x16x16xf32>
    %177 = vector.shape_cast %176 : vector<1x16x16xf32> to vector<16x16xf32>
    %178 = vector.broadcast %175 : f32 to vector<16x16xf32>
    %179 = arith.mulf %178, %177 : vector<16x16xf32>
    %180 = arith.addf %174, %179 : vector<16x16xf32>
    %c27 = arith.constant 27 : index
    %181 = memref.load %arg2[%c27] : memref<288xf32, #tpu.memory_space<smem>>
    %182 = vector.extract_strided_slice %1 {offsets = [3, 0, 0], sizes = [1, 16, 16], strides = [1, 1, 1]} : vector<4x16x16xf32> to vector<1x16x16xf32>
    %183 = vector.shape_cast %182 : vector<1x16x16xf32> to vector<16x16xf32>
    %184 = vector.broadcast %181 : f32 to vector<16x16xf32>
    %185 = arith.mulf %184, %183 : vector<16x16xf32>
    %186 = arith.addf %180, %185 : vector<16x16xf32>
    %c28 = arith.constant 28 : index
    %187 = memref.load %arg2[%c28] : memref<288xf32, #tpu.memory_space<smem>>
    %188 = vector.extract_strided_slice %3 {offsets = [3, 0, 0], sizes = [1, 16, 16], strides = [1, 1, 1]} : vector<4x16x16xf32> to vector<1x16x16xf32>
    %189 = vector.shape_cast %188 : vector<1x16x16xf32> to vector<16x16xf32>
    %190 = vector.broadcast %187 : f32 to vector<16x16xf32>
    %191 = arith.mulf %190, %189 : vector<16x16xf32>
    %192 = arith.addf %186, %191 : vector<16x16xf32>
    %c29 = arith.constant 29 : index
    %193 = memref.load %arg2[%c29] : memref<288xf32, #tpu.memory_space<smem>>
    %194 = vector.extract_strided_slice %5 {offsets = [3, 0, 0], sizes = [1, 16, 16], strides = [1, 1, 1]} : vector<4x16x16xf32> to vector<1x16x16xf32>
    %195 = vector.shape_cast %194 : vector<1x16x16xf32> to vector<16x16xf32>
    %196 = vector.broadcast %193 : f32 to vector<16x16xf32>
    %197 = arith.mulf %196, %195 : vector<16x16xf32>
    %198 = arith.addf %192, %197 : vector<16x16xf32>
    %c30 = arith.constant 30 : index
    %199 = memref.load %arg2[%c30] : memref<288xf32, #tpu.memory_space<smem>>
    %200 = vector.extract_strided_slice %7 {offsets = [3, 0, 0], sizes = [1, 16, 16], strides = [1, 1, 1]} : vector<4x16x16xf32> to vector<1x16x16xf32>
    %201 = vector.shape_cast %200 : vector<1x16x16xf32> to vector<16x16xf32>
    %202 = vector.broadcast %199 : f32 to vector<16x16xf32>
    %203 = arith.mulf %202, %201 : vector<16x16xf32>
    %204 = arith.addf %198, %203 : vector<16x16xf32>
    %c31 = arith.constant 31 : index
    %205 = memref.load %arg2[%c31] : memref<288xf32, #tpu.memory_space<smem>>
    %206 = vector.extract_strided_slice %9 {offsets = [3, 0, 0], sizes = [1, 16, 16], strides = [1, 1, 1]} : vector<4x16x16xf32> to vector<1x16x16xf32>
    %207 = vector.shape_cast %206 : vector<1x16x16xf32> to vector<16x16xf32>
    %208 = vector.broadcast %205 : f32 to vector<16x16xf32>
    %209 = arith.mulf %208, %207 : vector<16x16xf32>
    %210 = arith.addf %204, %209 : vector<16x16xf32>
    %c32 = arith.constant 32 : index
    %211 = memref.load %arg2[%c32] : memref<288xf32, #tpu.memory_space<smem>>
    %212 = vector.extract_strided_slice %11 {offsets = [3, 0, 0], sizes = [1, 16, 16], strides = [1, 1, 1]} : vector<4x16x16xf32> to vector<1x16x16xf32>
    %213 = vector.shape_cast %212 : vector<1x16x16xf32> to vector<16x16xf32>
    %214 = vector.broadcast %211 : f32 to vector<16x16xf32>
    %215 = arith.mulf %214, %213 : vector<16x16xf32>
    %216 = arith.addf %210, %215 : vector<16x16xf32>
    %c33 = arith.constant 33 : index
    %217 = memref.load %arg2[%c33] : memref<288xf32, #tpu.memory_space<smem>>
    %218 = vector.extract_strided_slice %13 {offsets = [3, 0, 0], sizes = [1, 16, 16], strides = [1, 1, 1]} : vector<4x16x16xf32> to vector<1x16x16xf32>
    %219 = vector.shape_cast %218 : vector<1x16x16xf32> to vector<16x16xf32>
    %220 = vector.broadcast %217 : f32 to vector<16x16xf32>
    %221 = arith.mulf %220, %219 : vector<16x16xf32>
    %222 = arith.addf %216, %221 : vector<16x16xf32>
    %c34 = arith.constant 34 : index
    %223 = memref.load %arg2[%c34] : memref<288xf32, #tpu.memory_space<smem>>
    %224 = vector.extract_strided_slice %15 {offsets = [3, 0, 0], sizes = [1, 16, 16], strides = [1, 1, 1]} : vector<4x16x16xf32> to vector<1x16x16xf32>
    %225 = vector.shape_cast %224 : vector<1x16x16xf32> to vector<16x16xf32>
    %226 = vector.broadcast %223 : f32 to vector<16x16xf32>
    %227 = arith.mulf %226, %225 : vector<16x16xf32>
    %228 = arith.addf %222, %227 : vector<16x16xf32>
    %c35 = arith.constant 35 : index
    %229 = memref.load %arg2[%c35] : memref<288xf32, #tpu.memory_space<smem>>
    %230 = vector.extract_strided_slice %17 {offsets = [3, 0, 0], sizes = [1, 16, 16], strides = [1, 1, 1]} : vector<4x16x16xf32> to vector<1x16x16xf32>
    %231 = vector.shape_cast %230 : vector<1x16x16xf32> to vector<16x16xf32>
    %232 = vector.broadcast %229 : f32 to vector<16x16xf32>
    %233 = arith.mulf %232, %231 : vector<16x16xf32>
    %234 = arith.addf %228, %233 : vector<16x16xf32>
    %cst_36 = arith.constant 0.000000e+00 : f32
    %235 = vector.broadcast %cst_36 : f32 to vector<16x16xf32>
    %c36 = arith.constant 36 : index
    %236 = memref.load %arg2[%c36] : memref<288xf32, #tpu.memory_space<smem>>
    %237 = vector.extract_strided_slice %1 {offsets = [0, 0, 0], sizes = [1, 16, 16], strides = [1, 1, 1]} : vector<4x16x16xf32> to vector<1x16x16xf32>
    %238 = vector.shape_cast %237 : vector<1x16x16xf32> to vector<16x16xf32>
    %239 = vector.broadcast %236 : f32 to vector<16x16xf32>
    %240 = arith.mulf %239, %238 : vector<16x16xf32>
    %241 = arith.addf %235, %240 : vector<16x16xf32>
    %c37 = arith.constant 37 : index
    %242 = memref.load %arg2[%c37] : memref<288xf32, #tpu.memory_space<smem>>
    %243 = vector.extract_strided_slice %3 {offsets = [0, 0, 0], sizes = [1, 16, 16], strides = [1, 1, 1]} : vector<4x16x16xf32> to vector<1x16x16xf32>
    %244 = vector.shape_cast %243 : vector<1x16x16xf32> to vector<16x16xf32>
    %245 = vector.broadcast %242 : f32 to vector<16x16xf32>
    %246 = arith.mulf %245, %244 : vector<16x16xf32>
    %247 = arith.addf %241, %246 : vector<16x16xf32>
    %c38 = arith.constant 38 : index
    %248 = memref.load %arg2[%c38] : memref<288xf32, #tpu.memory_space<smem>>
    %249 = vector.extract_strided_slice %5 {offsets = [0, 0, 0], sizes = [1, 16, 16], strides = [1, 1, 1]} : vector<4x16x16xf32> to vector<1x16x16xf32>
    %250 = vector.shape_cast %249 : vector<1x16x16xf32> to vector<16x16xf32>
    %251 = vector.broadcast %248 : f32 to vector<16x16xf32>
    %252 = arith.mulf %251, %250 : vector<16x16xf32>
    %253 = arith.addf %247, %252 : vector<16x16xf32>
    %c39 = arith.constant 39 : index
    %254 = memref.load %arg2[%c39] : memref<288xf32, #tpu.memory_space<smem>>
    %255 = vector.extract_strided_slice %7 {offsets = [0, 0, 0], sizes = [1, 16, 16], strides = [1, 1, 1]} : vector<4x16x16xf32> to vector<1x16x16xf32>
    %256 = vector.shape_cast %255 : vector<1x16x16xf32> to vector<16x16xf32>
    %257 = vector.broadcast %254 : f32 to vector<16x16xf32>
    %258 = arith.mulf %257, %256 : vector<16x16xf32>
    %259 = arith.addf %253, %258 : vector<16x16xf32>
    %c40 = arith.constant 40 : index
    %260 = memref.load %arg2[%c40] : memref<288xf32, #tpu.memory_space<smem>>
    %261 = vector.extract_strided_slice %9 {offsets = [0, 0, 0], sizes = [1, 16, 16], strides = [1, 1, 1]} : vector<4x16x16xf32> to vector<1x16x16xf32>
    %262 = vector.shape_cast %261 : vector<1x16x16xf32> to vector<16x16xf32>
    %263 = vector.broadcast %260 : f32 to vector<16x16xf32>
    %264 = arith.mulf %263, %262 : vector<16x16xf32>
    %265 = arith.addf %259, %264 : vector<16x16xf32>
    %c41 = arith.constant 41 : index
    %266 = memref.load %arg2[%c41] : memref<288xf32, #tpu.memory_space<smem>>
    %267 = vector.extract_strided_slice %11 {offsets = [0, 0, 0], sizes = [1, 16, 16], strides = [1, 1, 1]} : vector<4x16x16xf32> to vector<1x16x16xf32>
    %268 = vector.shape_cast %267 : vector<1x16x16xf32> to vector<16x16xf32>
    %269 = vector.broadcast %266 : f32 to vector<16x16xf32>
    %270 = arith.mulf %269, %268 : vector<16x16xf32>
    %271 = arith.addf %265, %270 : vector<16x16xf32>
    %c42 = arith.constant 42 : index
    %272 = memref.load %arg2[%c42] : memref<288xf32, #tpu.memory_space<smem>>
    %273 = vector.extract_strided_slice %13 {offsets = [0, 0, 0], sizes = [1, 16, 16], strides = [1, 1, 1]} : vector<4x16x16xf32> to vector<1x16x16xf32>
    %274 = vector.shape_cast %273 : vector<1x16x16xf32> to vector<16x16xf32>
    %275 = vector.broadcast %272 : f32 to vector<16x16xf32>
    %276 = arith.mulf %275, %274 : vector<16x16xf32>
    %277 = arith.addf %271, %276 : vector<16x16xf32>
    %c43 = arith.constant 43 : index
    %278 = memref.load %arg2[%c43] : memref<288xf32, #tpu.memory_space<smem>>
    %279 = vector.extract_strided_slice %15 {offsets = [0, 0, 0], sizes = [1, 16, 16], strides = [1, 1, 1]} : vector<4x16x16xf32> to vector<1x16x16xf32>
    %280 = vector.shape_cast %279 : vector<1x16x16xf32> to vector<16x16xf32>
    %281 = vector.broadcast %278 : f32 to vector<16x16xf32>
    %282 = arith.mulf %281, %280 : vector<16x16xf32>
    %283 = arith.addf %277, %282 : vector<16x16xf32>
    %c44 = arith.constant 44 : index
    %284 = memref.load %arg2[%c44] : memref<288xf32, #tpu.memory_space<smem>>
    %285 = vector.extract_strided_slice %17 {offsets = [0, 0, 0], sizes = [1, 16, 16], strides = [1, 1, 1]} : vector<4x16x16xf32> to vector<1x16x16xf32>
    %286 = vector.shape_cast %285 : vector<1x16x16xf32> to vector<16x16xf32>
    %287 = vector.broadcast %284 : f32 to vector<16x16xf32>
    %288 = arith.mulf %287, %286 : vector<16x16xf32>
    %289 = arith.addf %283, %288 : vector<16x16xf32>
    %c45 = arith.constant 45 : index
    %290 = memref.load %arg2[%c45] : memref<288xf32, #tpu.memory_space<smem>>
    %291 = vector.extract_strided_slice %1 {offsets = [1, 0, 0], sizes = [1, 16, 16], strides = [1, 1, 1]} : vector<4x16x16xf32> to vector<1x16x16xf32>
    %292 = vector.shape_cast %291 : vector<1x16x16xf32> to vector<16x16xf32>
    %293 = vector.broadcast %290 : f32 to vector<16x16xf32>
    %294 = arith.mulf %293, %292 : vector<16x16xf32>
    %295 = arith.addf %289, %294 : vector<16x16xf32>
    %c46 = arith.constant 46 : index
    %296 = memref.load %arg2[%c46] : memref<288xf32, #tpu.memory_space<smem>>
    %297 = vector.extract_strided_slice %3 {offsets = [1, 0, 0], sizes = [1, 16, 16], strides = [1, 1, 1]} : vector<4x16x16xf32> to vector<1x16x16xf32>
    %298 = vector.shape_cast %297 : vector<1x16x16xf32> to vector<16x16xf32>
    %299 = vector.broadcast %296 : f32 to vector<16x16xf32>
    %300 = arith.mulf %299, %298 : vector<16x16xf32>
    %301 = arith.addf %295, %300 : vector<16x16xf32>
    %c47 = arith.constant 47 : index
    %302 = memref.load %arg2[%c47] : memref<288xf32, #tpu.memory_space<smem>>
    %303 = vector.extract_strided_slice %5 {offsets = [1, 0, 0], sizes = [1, 16, 16], strides = [1, 1, 1]} : vector<4x16x16xf32> to vector<1x16x16xf32>
    %304 = vector.shape_cast %303 : vector<1x16x16xf32> to vector<16x16xf32>
    %305 = vector.broadcast %302 : f32 to vector<16x16xf32>
    %306 = arith.mulf %305, %304 : vector<16x16xf32>
    %307 = arith.addf %301, %306 : vector<16x16xf32>
    %c48 = arith.constant 48 : index
    %308 = memref.load %arg2[%c48] : memref<288xf32, #tpu.memory_space<smem>>
    %309 = vector.extract_strided_slice %7 {offsets = [1, 0, 0], sizes = [1, 16, 16], strides = [1, 1, 1]} : vector<4x16x16xf32> to vector<1x16x16xf32>
    %310 = vector.shape_cast %309 : vector<1x16x16xf32> to vector<16x16xf32>
    %311 = vector.broadcast %308 : f32 to vector<16x16xf32>
    %312 = arith.mulf %311, %310 : vector<16x16xf32>
    %313 = arith.addf %307, %312 : vector<16x16xf32>
    %c49 = arith.constant 49 : index
    %314 = memref.load %arg2[%c49] : memref<288xf32, #tpu.memory_space<smem>>
    %315 = vector.extract_strided_slice %9 {offsets = [1, 0, 0], sizes = [1, 16, 16], strides = [1, 1, 1]} : vector<4x16x16xf32> to vector<1x16x16xf32>
    %316 = vector.shape_cast %315 : vector<1x16x16xf32> to vector<16x16xf32>
    %317 = vector.broadcast %314 : f32 to vector<16x16xf32>
    %318 = arith.mulf %317, %316 : vector<16x16xf32>
    %319 = arith.addf %313, %318 : vector<16x16xf32>
    %c50 = arith.constant 50 : index
    %320 = memref.load %arg2[%c50] : memref<288xf32, #tpu.memory_space<smem>>
    %321 = vector.extract_strided_slice %11 {offsets = [1, 0, 0], sizes = [1, 16, 16], strides = [1, 1, 1]} : vector<4x16x16xf32> to vector<1x16x16xf32>
    %322 = vector.shape_cast %321 : vector<1x16x16xf32> to vector<16x16xf32>
    %323 = vector.broadcast %320 : f32 to vector<16x16xf32>
    %324 = arith.mulf %323, %322 : vector<16x16xf32>
    %325 = arith.addf %319, %324 : vector<16x16xf32>
    %c51 = arith.constant 51 : index
    %326 = memref.load %arg2[%c51] : memref<288xf32, #tpu.memory_space<smem>>
    %327 = vector.extract_strided_slice %13 {offsets = [1, 0, 0], sizes = [1, 16, 16], strides = [1, 1, 1]} : vector<4x16x16xf32> to vector<1x16x16xf32>
    %328 = vector.shape_cast %327 : vector<1x16x16xf32> to vector<16x16xf32>
    %329 = vector.broadcast %326 : f32 to vector<16x16xf32>
    %330 = arith.mulf %329, %328 : vector<16x16xf32>
    %331 = arith.addf %325, %330 : vector<16x16xf32>
    %c52 = arith.constant 52 : index
    %332 = memref.load %arg2[%c52] : memref<288xf32, #tpu.memory_space<smem>>
    %333 = vector.extract_strided_slice %15 {offsets = [1, 0, 0], sizes = [1, 16, 16], strides = [1, 1, 1]} : vector<4x16x16xf32> to vector<1x16x16xf32>
    %334 = vector.shape_cast %333 : vector<1x16x16xf32> to vector<16x16xf32>
    %335 = vector.broadcast %332 : f32 to vector<16x16xf32>
    %336 = arith.mulf %335, %334 : vector<16x16xf32>
    %337 = arith.addf %331, %336 : vector<16x16xf32>
    %c53 = arith.constant 53 : index
    %338 = memref.load %arg2[%c53] : memref<288xf32, #tpu.memory_space<smem>>
    %339 = vector.extract_strided_slice %17 {offsets = [1, 0, 0], sizes = [1, 16, 16], strides = [1, 1, 1]} : vector<4x16x16xf32> to vector<1x16x16xf32>
    %340 = vector.shape_cast %339 : vector<1x16x16xf32> to vector<16x16xf32>
    %341 = vector.broadcast %338 : f32 to vector<16x16xf32>
    %342 = arith.mulf %341, %340 : vector<16x16xf32>
    %343 = arith.addf %337, %342 : vector<16x16xf32>
    %c54 = arith.constant 54 : index
    %344 = memref.load %arg2[%c54] : memref<288xf32, #tpu.memory_space<smem>>
    %345 = vector.extract_strided_slice %1 {offsets = [2, 0, 0], sizes = [1, 16, 16], strides = [1, 1, 1]} : vector<4x16x16xf32> to vector<1x16x16xf32>
    %346 = vector.shape_cast %345 : vector<1x16x16xf32> to vector<16x16xf32>
    %347 = vector.broadcast %344 : f32 to vector<16x16xf32>
    %348 = arith.mulf %347, %346 : vector<16x16xf32>
    %349 = arith.addf %343, %348 : vector<16x16xf32>
    %c55 = arith.constant 55 : index
    %350 = memref.load %arg2[%c55] : memref<288xf32, #tpu.memory_space<smem>>
    %351 = vector.extract_strided_slice %3 {offsets = [2, 0, 0], sizes = [1, 16, 16], strides = [1, 1, 1]} : vector<4x16x16xf32> to vector<1x16x16xf32>
    %352 = vector.shape_cast %351 : vector<1x16x16xf32> to vector<16x16xf32>
    %353 = vector.broadcast %350 : f32 to vector<16x16xf32>
    %354 = arith.mulf %353, %352 : vector<16x16xf32>
    %355 = arith.addf %349, %354 : vector<16x16xf32>
    %c56 = arith.constant 56 : index
    %356 = memref.load %arg2[%c56] : memref<288xf32, #tpu.memory_space<smem>>
    %357 = vector.extract_strided_slice %5 {offsets = [2, 0, 0], sizes = [1, 16, 16], strides = [1, 1, 1]} : vector<4x16x16xf32> to vector<1x16x16xf32>
    %358 = vector.shape_cast %357 : vector<1x16x16xf32> to vector<16x16xf32>
    %359 = vector.broadcast %356 : f32 to vector<16x16xf32>
    %360 = arith.mulf %359, %358 : vector<16x16xf32>
    %361 = arith.addf %355, %360 : vector<16x16xf32>
    %c57 = arith.constant 57 : index
    %362 = memref.load %arg2[%c57] : memref<288xf32, #tpu.memory_space<smem>>
    %363 = vector.extract_strided_slice %7 {offsets = [2, 0, 0], sizes = [1, 16, 16], strides = [1, 1, 1]} : vector<4x16x16xf32> to vector<1x16x16xf32>
    %364 = vector.shape_cast %363 : vector<1x16x16xf32> to vector<16x16xf32>
    %365 = vector.broadcast %362 : f32 to vector<16x16xf32>
    %366 = arith.mulf %365, %364 : vector<16x16xf32>
    %367 = arith.addf %361, %366 : vector<16x16xf32>
    %c58 = arith.constant 58 : index
    %368 = memref.load %arg2[%c58] : memref<288xf32, #tpu.memory_space<smem>>
    %369 = vector.extract_strided_slice %9 {offsets = [2, 0, 0], sizes = [1, 16, 16], strides = [1, 1, 1]} : vector<4x16x16xf32> to vector<1x16x16xf32>
    %370 = vector.shape_cast %369 : vector<1x16x16xf32> to vector<16x16xf32>
    %371 = vector.broadcast %368 : f32 to vector<16x16xf32>
    %372 = arith.mulf %371, %370 : vector<16x16xf32>
    %373 = arith.addf %367, %372 : vector<16x16xf32>
    %c59 = arith.constant 59 : index
    %374 = memref.load %arg2[%c59] : memref<288xf32, #tpu.memory_space<smem>>
    %375 = vector.extract_strided_slice %11 {offsets = [2, 0, 0], sizes = [1, 16, 16], strides = [1, 1, 1]} : vector<4x16x16xf32> to vector<1x16x16xf32>
    %376 = vector.shape_cast %375 : vector<1x16x16xf32> to vector<16x16xf32>
    %377 = vector.broadcast %374 : f32 to vector<16x16xf32>
    %378 = arith.mulf %377, %376 : vector<16x16xf32>
    %379 = arith.addf %373, %378 : vector<16x16xf32>
    %c60 = arith.constant 60 : index
    %380 = memref.load %arg2[%c60] : memref<288xf32, #tpu.memory_space<smem>>
    %381 = vector.extract_strided_slice %13 {offsets = [2, 0, 0], sizes = [1, 16, 16], strides = [1, 1, 1]} : vector<4x16x16xf32> to vector<1x16x16xf32>
    %382 = vector.shape_cast %381 : vector<1x16x16xf32> to vector<16x16xf32>
    %383 = vector.broadcast %380 : f32 to vector<16x16xf32>
    %384 = arith.mulf %383, %382 : vector<16x16xf32>
    %385 = arith.addf %379, %384 : vector<16x16xf32>
    %c61 = arith.constant 61 : index
    %386 = memref.load %arg2[%c61] : memref<288xf32, #tpu.memory_space<smem>>
    %387 = vector.extract_strided_slice %15 {offsets = [2, 0, 0], sizes = [1, 16, 16], strides = [1, 1, 1]} : vector<4x16x16xf32> to vector<1x16x16xf32>
    %388 = vector.shape_cast %387 : vector<1x16x16xf32> to vector<16x16xf32>
    %389 = vector.broadcast %386 : f32 to vector<16x16xf32>
    %390 = arith.mulf %389, %388 : vector<16x16xf32>
    %391 = arith.addf %385, %390 : vector<16x16xf32>
    %c62 = arith.constant 62 : index
    %392 = memref.load %arg2[%c62] : memref<288xf32, #tpu.memory_space<smem>>
    %393 = vector.extract_strided_slice %17 {offsets = [2, 0, 0], sizes = [1, 16, 16], strides = [1, 1, 1]} : vector<4x16x16xf32> to vector<1x16x16xf32>
    %394 = vector.shape_cast %393 : vector<1x16x16xf32> to vector<16x16xf32>
    %395 = vector.broadcast %392 : f32 to vector<16x16xf32>
    %396 = arith.mulf %395, %394 : vector<16x16xf32>
    %397 = arith.addf %391, %396 : vector<16x16xf32>
    %c63 = arith.constant 63 : index
    %398 = memref.load %arg2[%c63] : memref<288xf32, #tpu.memory_space<smem>>
    %399 = vector.extract_strided_slice %1 {offsets = [3, 0, 0], sizes = [1, 16, 16], strides = [1, 1, 1]} : vector<4x16x16xf32> to vector<1x16x16xf32>
    %400 = vector.shape_cast %399 : vector<1x16x16xf32> to vector<16x16xf32>
    %401 = vector.broadcast %398 : f32 to vector<16x16xf32>
    %402 = arith.mulf %401, %400 : vector<16x16xf32>
    %403 = arith.addf %397, %402 : vector<16x16xf32>
    %c64 = arith.constant 64 : index
    %404 = memref.load %arg2[%c64] : memref<288xf32, #tpu.memory_space<smem>>
    %405 = vector.extract_strided_slice %3 {offsets = [3, 0, 0], sizes = [1, 16, 16], strides = [1, 1, 1]} : vector<4x16x16xf32> to vector<1x16x16xf32>
    %406 = vector.shape_cast %405 : vector<1x16x16xf32> to vector<16x16xf32>
    %407 = vector.broadcast %404 : f32 to vector<16x16xf32>
    %408 = arith.mulf %407, %406 : vector<16x16xf32>
    %409 = arith.addf %403, %408 : vector<16x16xf32>
    %c65 = arith.constant 65 : index
    %410 = memref.load %arg2[%c65] : memref<288xf32, #tpu.memory_space<smem>>
    %411 = vector.extract_strided_slice %5 {offsets = [3, 0, 0], sizes = [1, 16, 16], strides = [1, 1, 1]} : vector<4x16x16xf32> to vector<1x16x16xf32>
    %412 = vector.shape_cast %411 : vector<1x16x16xf32> to vector<16x16xf32>
    %413 = vector.broadcast %410 : f32 to vector<16x16xf32>
    %414 = arith.mulf %413, %412 : vector<16x16xf32>
    %415 = arith.addf %409, %414 : vector<16x16xf32>
    %c66 = arith.constant 66 : index
    %416 = memref.load %arg2[%c66] : memref<288xf32, #tpu.memory_space<smem>>
    %417 = vector.extract_strided_slice %7 {offsets = [3, 0, 0], sizes = [1, 16, 16], strides = [1, 1, 1]} : vector<4x16x16xf32> to vector<1x16x16xf32>
    %418 = vector.shape_cast %417 : vector<1x16x16xf32> to vector<16x16xf32>
    %419 = vector.broadcast %416 : f32 to vector<16x16xf32>
    %420 = arith.mulf %419, %418 : vector<16x16xf32>
    %421 = arith.addf %415, %420 : vector<16x16xf32>
    %c67 = arith.constant 67 : index
    %422 = memref.load %arg2[%c67] : memref<288xf32, #tpu.memory_space<smem>>
    %423 = vector.extract_strided_slice %9 {offsets = [3, 0, 0], sizes = [1, 16, 16], strides = [1, 1, 1]} : vector<4x16x16xf32> to vector<1x16x16xf32>
    %424 = vector.shape_cast %423 : vector<1x16x16xf32> to vector<16x16xf32>
    %425 = vector.broadcast %422 : f32 to vector<16x16xf32>
    %426 = arith.mulf %425, %424 : vector<16x16xf32>
    %427 = arith.addf %421, %426 : vector<16x16xf32>
    %c68 = arith.constant 68 : index
    %428 = memref.load %arg2[%c68] : memref<288xf32, #tpu.memory_space<smem>>
    %429 = vector.extract_strided_slice %11 {offsets = [3, 0, 0], sizes = [1, 16, 16], strides = [1, 1, 1]} : vector<4x16x16xf32> to vector<1x16x16xf32>
    %430 = vector.shape_cast %429 : vector<1x16x16xf32> to vector<16x16xf32>
    %431 = vector.broadcast %428 : f32 to vector<16x16xf32>
    %432 = arith.mulf %431, %430 : vector<16x16xf32>
    %433 = arith.addf %427, %432 : vector<16x16xf32>
    %c69 = arith.constant 69 : index
    %434 = memref.load %arg2[%c69] : memref<288xf32, #tpu.memory_space<smem>>
    %435 = vector.extract_strided_slice %13 {offsets = [3, 0, 0], sizes = [1, 16, 16], strides = [1, 1, 1]} : vector<4x16x16xf32> to vector<1x16x16xf32>
    %436 = vector.shape_cast %435 : vector<1x16x16xf32> to vector<16x16xf32>
    %437 = vector.broadcast %434 : f32 to vector<16x16xf32>
    %438 = arith.mulf %437, %436 : vector<16x16xf32>
    %439 = arith.addf %433, %438 : vector<16x16xf32>
    %c70 = arith.constant 70 : index
    %440 = memref.load %arg2[%c70] : memref<288xf32, #tpu.memory_space<smem>>
    %441 = vector.extract_strided_slice %15 {offsets = [3, 0, 0], sizes = [1, 16, 16], strides = [1, 1, 1]} : vector<4x16x16xf32> to vector<1x16x16xf32>
    %442 = vector.shape_cast %441 : vector<1x16x16xf32> to vector<16x16xf32>
    %443 = vector.broadcast %440 : f32 to vector<16x16xf32>
    %444 = arith.mulf %443, %442 : vector<16x16xf32>
    %445 = arith.addf %439, %444 : vector<16x16xf32>
    %c71 = arith.constant 71 : index
    %446 = memref.load %arg2[%c71] : memref<288xf32, #tpu.memory_space<smem>>
    %447 = vector.extract_strided_slice %17 {offsets = [3, 0, 0], sizes = [1, 16, 16], strides = [1, 1, 1]} : vector<4x16x16xf32> to vector<1x16x16xf32>
    %448 = vector.shape_cast %447 : vector<1x16x16xf32> to vector<16x16xf32>
    %449 = vector.broadcast %446 : f32 to vector<16x16xf32>
    %450 = arith.mulf %449, %448 : vector<16x16xf32>
    %451 = arith.addf %445, %450 : vector<16x16xf32>
    %cst_37 = arith.constant 0.000000e+00 : f32
    %452 = vector.broadcast %cst_37 : f32 to vector<16x16xf32>
    %c72 = arith.constant 72 : index
    %453 = memref.load %arg2[%c72] : memref<288xf32, #tpu.memory_space<smem>>
    %454 = vector.extract_strided_slice %1 {offsets = [0, 0, 0], sizes = [1, 16, 16], strides = [1, 1, 1]} : vector<4x16x16xf32> to vector<1x16x16xf32>
    %455 = vector.shape_cast %454 : vector<1x16x16xf32> to vector<16x16xf32>
    %456 = vector.broadcast %453 : f32 to vector<16x16xf32>
    %457 = arith.mulf %456, %455 : vector<16x16xf32>
    %458 = arith.addf %452, %457 : vector<16x16xf32>
    %c73 = arith.constant 73 : index
    %459 = memref.load %arg2[%c73] : memref<288xf32, #tpu.memory_space<smem>>
    %460 = vector.extract_strided_slice %3 {offsets = [0, 0, 0], sizes = [1, 16, 16], strides = [1, 1, 1]} : vector<4x16x16xf32> to vector<1x16x16xf32>
    %461 = vector.shape_cast %460 : vector<1x16x16xf32> to vector<16x16xf32>
    %462 = vector.broadcast %459 : f32 to vector<16x16xf32>
    %463 = arith.mulf %462, %461 : vector<16x16xf32>
    %464 = arith.addf %458, %463 : vector<16x16xf32>
    %c74 = arith.constant 74 : index
    %465 = memref.load %arg2[%c74] : memref<288xf32, #tpu.memory_space<smem>>
    %466 = vector.extract_strided_slice %5 {offsets = [0, 0, 0], sizes = [1, 16, 16], strides = [1, 1, 1]} : vector<4x16x16xf32> to vector<1x16x16xf32>
    %467 = vector.shape_cast %466 : vector<1x16x16xf32> to vector<16x16xf32>
    %468 = vector.broadcast %465 : f32 to vector<16x16xf32>
    %469 = arith.mulf %468, %467 : vector<16x16xf32>
    %470 = arith.addf %464, %469 : vector<16x16xf32>
    %c75 = arith.constant 75 : index
    %471 = memref.load %arg2[%c75] : memref<288xf32, #tpu.memory_space<smem>>
    %472 = vector.extract_strided_slice %7 {offsets = [0, 0, 0], sizes = [1, 16, 16], strides = [1, 1, 1]} : vector<4x16x16xf32> to vector<1x16x16xf32>
    %473 = vector.shape_cast %472 : vector<1x16x16xf32> to vector<16x16xf32>
    %474 = vector.broadcast %471 : f32 to vector<16x16xf32>
    %475 = arith.mulf %474, %473 : vector<16x16xf32>
    %476 = arith.addf %470, %475 : vector<16x16xf32>
    %c76 = arith.constant 76 : index
    %477 = memref.load %arg2[%c76] : memref<288xf32, #tpu.memory_space<smem>>
    %478 = vector.extract_strided_slice %9 {offsets = [0, 0, 0], sizes = [1, 16, 16], strides = [1, 1, 1]} : vector<4x16x16xf32> to vector<1x16x16xf32>
    %479 = vector.shape_cast %478 : vector<1x16x16xf32> to vector<16x16xf32>
    %480 = vector.broadcast %477 : f32 to vector<16x16xf32>
    %481 = arith.mulf %480, %479 : vector<16x16xf32>
    %482 = arith.addf %476, %481 : vector<16x16xf32>
    %c77 = arith.constant 77 : index
    %483 = memref.load %arg2[%c77] : memref<288xf32, #tpu.memory_space<smem>>
    %484 = vector.extract_strided_slice %11 {offsets = [0, 0, 0], sizes = [1, 16, 16], strides = [1, 1, 1]} : vector<4x16x16xf32> to vector<1x16x16xf32>
    %485 = vector.shape_cast %484 : vector<1x16x16xf32> to vector<16x16xf32>
    %486 = vector.broadcast %483 : f32 to vector<16x16xf32>
    %487 = arith.mulf %486, %485 : vector<16x16xf32>
    %488 = arith.addf %482, %487 : vector<16x16xf32>
    %c78 = arith.constant 78 : index
    %489 = memref.load %arg2[%c78] : memref<288xf32, #tpu.memory_space<smem>>
    %490 = vector.extract_strided_slice %13 {offsets = [0, 0, 0], sizes = [1, 16, 16], strides = [1, 1, 1]} : vector<4x16x16xf32> to vector<1x16x16xf32>
    %491 = vector.shape_cast %490 : vector<1x16x16xf32> to vector<16x16xf32>
    %492 = vector.broadcast %489 : f32 to vector<16x16xf32>
    %493 = arith.mulf %492, %491 : vector<16x16xf32>
    %494 = arith.addf %488, %493 : vector<16x16xf32>
    %c79 = arith.constant 79 : index
    %495 = memref.load %arg2[%c79] : memref<288xf32, #tpu.memory_space<smem>>
    %496 = vector.extract_strided_slice %15 {offsets = [0, 0, 0], sizes = [1, 16, 16], strides = [1, 1, 1]} : vector<4x16x16xf32> to vector<1x16x16xf32>
    %497 = vector.shape_cast %496 : vector<1x16x16xf32> to vector<16x16xf32>
    %498 = vector.broadcast %495 : f32 to vector<16x16xf32>
    %499 = arith.mulf %498, %497 : vector<16x16xf32>
    %500 = arith.addf %494, %499 : vector<16x16xf32>
    %c80 = arith.constant 80 : index
    %501 = memref.load %arg2[%c80] : memref<288xf32, #tpu.memory_space<smem>>
    %502 = vector.extract_strided_slice %17 {offsets = [0, 0, 0], sizes = [1, 16, 16], strides = [1, 1, 1]} : vector<4x16x16xf32> to vector<1x16x16xf32>
    %503 = vector.shape_cast %502 : vector<1x16x16xf32> to vector<16x16xf32>
    %504 = vector.broadcast %501 : f32 to vector<16x16xf32>
    %505 = arith.mulf %504, %503 : vector<16x16xf32>
    %506 = arith.addf %500, %505 : vector<16x16xf32>
    %c81 = arith.constant 81 : index
    %507 = memref.load %arg2[%c81] : memref<288xf32, #tpu.memory_space<smem>>
    %508 = vector.extract_strided_slice %1 {offsets = [1, 0, 0], sizes = [1, 16, 16], strides = [1, 1, 1]} : vector<4x16x16xf32> to vector<1x16x16xf32>
    %509 = vector.shape_cast %508 : vector<1x16x16xf32> to vector<16x16xf32>
    %510 = vector.broadcast %507 : f32 to vector<16x16xf32>
    %511 = arith.mulf %510, %509 : vector<16x16xf32>
    %512 = arith.addf %506, %511 : vector<16x16xf32>
    %c82 = arith.constant 82 : index
    %513 = memref.load %arg2[%c82] : memref<288xf32, #tpu.memory_space<smem>>
    %514 = vector.extract_strided_slice %3 {offsets = [1, 0, 0], sizes = [1, 16, 16], strides = [1, 1, 1]} : vector<4x16x16xf32> to vector<1x16x16xf32>
    %515 = vector.shape_cast %514 : vector<1x16x16xf32> to vector<16x16xf32>
    %516 = vector.broadcast %513 : f32 to vector<16x16xf32>
    %517 = arith.mulf %516, %515 : vector<16x16xf32>
    %518 = arith.addf %512, %517 : vector<16x16xf32>
    %c83 = arith.constant 83 : index
    %519 = memref.load %arg2[%c83] : memref<288xf32, #tpu.memory_space<smem>>
    %520 = vector.extract_strided_slice %5 {offsets = [1, 0, 0], sizes = [1, 16, 16], strides = [1, 1, 1]} : vector<4x16x16xf32> to vector<1x16x16xf32>
    %521 = vector.shape_cast %520 : vector<1x16x16xf32> to vector<16x16xf32>
    %522 = vector.broadcast %519 : f32 to vector<16x16xf32>
    %523 = arith.mulf %522, %521 : vector<16x16xf32>
    %524 = arith.addf %518, %523 : vector<16x16xf32>
    %c84 = arith.constant 84 : index
    %525 = memref.load %arg2[%c84] : memref<288xf32, #tpu.memory_space<smem>>
    %526 = vector.extract_strided_slice %7 {offsets = [1, 0, 0], sizes = [1, 16, 16], strides = [1, 1, 1]} : vector<4x16x16xf32> to vector<1x16x16xf32>
    %527 = vector.shape_cast %526 : vector<1x16x16xf32> to vector<16x16xf32>
    %528 = vector.broadcast %525 : f32 to vector<16x16xf32>
    %529 = arith.mulf %528, %527 : vector<16x16xf32>
    %530 = arith.addf %524, %529 : vector<16x16xf32>
    %c85 = arith.constant 85 : index
    %531 = memref.load %arg2[%c85] : memref<288xf32, #tpu.memory_space<smem>>
    %532 = vector.extract_strided_slice %9 {offsets = [1, 0, 0], sizes = [1, 16, 16], strides = [1, 1, 1]} : vector<4x16x16xf32> to vector<1x16x16xf32>
    %533 = vector.shape_cast %532 : vector<1x16x16xf32> to vector<16x16xf32>
    %534 = vector.broadcast %531 : f32 to vector<16x16xf32>
    %535 = arith.mulf %534, %533 : vector<16x16xf32>
    %536 = arith.addf %530, %535 : vector<16x16xf32>
    %c86 = arith.constant 86 : index
    %537 = memref.load %arg2[%c86] : memref<288xf32, #tpu.memory_space<smem>>
    %538 = vector.extract_strided_slice %11 {offsets = [1, 0, 0], sizes = [1, 16, 16], strides = [1, 1, 1]} : vector<4x16x16xf32> to vector<1x16x16xf32>
    %539 = vector.shape_cast %538 : vector<1x16x16xf32> to vector<16x16xf32>
    %540 = vector.broadcast %537 : f32 to vector<16x16xf32>
    %541 = arith.mulf %540, %539 : vector<16x16xf32>
    %542 = arith.addf %536, %541 : vector<16x16xf32>
    %c87 = arith.constant 87 : index
    %543 = memref.load %arg2[%c87] : memref<288xf32, #tpu.memory_space<smem>>
    %544 = vector.extract_strided_slice %13 {offsets = [1, 0, 0], sizes = [1, 16, 16], strides = [1, 1, 1]} : vector<4x16x16xf32> to vector<1x16x16xf32>
    %545 = vector.shape_cast %544 : vector<1x16x16xf32> to vector<16x16xf32>
    %546 = vector.broadcast %543 : f32 to vector<16x16xf32>
    %547 = arith.mulf %546, %545 : vector<16x16xf32>
    %548 = arith.addf %542, %547 : vector<16x16xf32>
    %c88 = arith.constant 88 : index
    %549 = memref.load %arg2[%c88] : memref<288xf32, #tpu.memory_space<smem>>
    %550 = vector.extract_strided_slice %15 {offsets = [1, 0, 0], sizes = [1, 16, 16], strides = [1, 1, 1]} : vector<4x16x16xf32> to vector<1x16x16xf32>
    %551 = vector.shape_cast %550 : vector<1x16x16xf32> to vector<16x16xf32>
    %552 = vector.broadcast %549 : f32 to vector<16x16xf32>
    %553 = arith.mulf %552, %551 : vector<16x16xf32>
    %554 = arith.addf %548, %553 : vector<16x16xf32>
    %c89 = arith.constant 89 : index
    %555 = memref.load %arg2[%c89] : memref<288xf32, #tpu.memory_space<smem>>
    %556 = vector.extract_strided_slice %17 {offsets = [1, 0, 0], sizes = [1, 16, 16], strides = [1, 1, 1]} : vector<4x16x16xf32> to vector<1x16x16xf32>
    %557 = vector.shape_cast %556 : vector<1x16x16xf32> to vector<16x16xf32>
    %558 = vector.broadcast %555 : f32 to vector<16x16xf32>
    %559 = arith.mulf %558, %557 : vector<16x16xf32>
    %560 = arith.addf %554, %559 : vector<16x16xf32>
    %c90 = arith.constant 90 : index
    %561 = memref.load %arg2[%c90] : memref<288xf32, #tpu.memory_space<smem>>
    %562 = vector.extract_strided_slice %1 {offsets = [2, 0, 0], sizes = [1, 16, 16], strides = [1, 1, 1]} : vector<4x16x16xf32> to vector<1x16x16xf32>
    %563 = vector.shape_cast %562 : vector<1x16x16xf32> to vector<16x16xf32>
    %564 = vector.broadcast %561 : f32 to vector<16x16xf32>
    %565 = arith.mulf %564, %563 : vector<16x16xf32>
    %566 = arith.addf %560, %565 : vector<16x16xf32>
    %c91 = arith.constant 91 : index
    %567 = memref.load %arg2[%c91] : memref<288xf32, #tpu.memory_space<smem>>
    %568 = vector.extract_strided_slice %3 {offsets = [2, 0, 0], sizes = [1, 16, 16], strides = [1, 1, 1]} : vector<4x16x16xf32> to vector<1x16x16xf32>
    %569 = vector.shape_cast %568 : vector<1x16x16xf32> to vector<16x16xf32>
    %570 = vector.broadcast %567 : f32 to vector<16x16xf32>
    %571 = arith.mulf %570, %569 : vector<16x16xf32>
    %572 = arith.addf %566, %571 : vector<16x16xf32>
    %c92 = arith.constant 92 : index
    %573 = memref.load %arg2[%c92] : memref<288xf32, #tpu.memory_space<smem>>
    %574 = vector.extract_strided_slice %5 {offsets = [2, 0, 0], sizes = [1, 16, 16], strides = [1, 1, 1]} : vector<4x16x16xf32> to vector<1x16x16xf32>
    %575 = vector.shape_cast %574 : vector<1x16x16xf32> to vector<16x16xf32>
    %576 = vector.broadcast %573 : f32 to vector<16x16xf32>
    %577 = arith.mulf %576, %575 : vector<16x16xf32>
    %578 = arith.addf %572, %577 : vector<16x16xf32>
    %c93 = arith.constant 93 : index
    %579 = memref.load %arg2[%c93] : memref<288xf32, #tpu.memory_space<smem>>
    %580 = vector.extract_strided_slice %7 {offsets = [2, 0, 0], sizes = [1, 16, 16], strides = [1, 1, 1]} : vector<4x16x16xf32> to vector<1x16x16xf32>
    %581 = vector.shape_cast %580 : vector<1x16x16xf32> to vector<16x16xf32>
    %582 = vector.broadcast %579 : f32 to vector<16x16xf32>
    %583 = arith.mulf %582, %581 : vector<16x16xf32>
    %584 = arith.addf %578, %583 : vector<16x16xf32>
    %c94 = arith.constant 94 : index
    %585 = memref.load %arg2[%c94] : memref<288xf32, #tpu.memory_space<smem>>
    %586 = vector.extract_strided_slice %9 {offsets = [2, 0, 0], sizes = [1, 16, 16], strides = [1, 1, 1]} : vector<4x16x16xf32> to vector<1x16x16xf32>
    %587 = vector.shape_cast %586 : vector<1x16x16xf32> to vector<16x16xf32>
    %588 = vector.broadcast %585 : f32 to vector<16x16xf32>
    %589 = arith.mulf %588, %587 : vector<16x16xf32>
    %590 = arith.addf %584, %589 : vector<16x16xf32>
    %c95 = arith.constant 95 : index
    %591 = memref.load %arg2[%c95] : memref<288xf32, #tpu.memory_space<smem>>
    %592 = vector.extract_strided_slice %11 {offsets = [2, 0, 0], sizes = [1, 16, 16], strides = [1, 1, 1]} : vector<4x16x16xf32> to vector<1x16x16xf32>
    %593 = vector.shape_cast %592 : vector<1x16x16xf32> to vector<16x16xf32>
    %594 = vector.broadcast %591 : f32 to vector<16x16xf32>
    %595 = arith.mulf %594, %593 : vector<16x16xf32>
    %596 = arith.addf %590, %595 : vector<16x16xf32>
    %c96 = arith.constant 96 : index
    %597 = memref.load %arg2[%c96] : memref<288xf32, #tpu.memory_space<smem>>
    %598 = vector.extract_strided_slice %13 {offsets = [2, 0, 0], sizes = [1, 16, 16], strides = [1, 1, 1]} : vector<4x16x16xf32> to vector<1x16x16xf32>
    %599 = vector.shape_cast %598 : vector<1x16x16xf32> to vector<16x16xf32>
    %600 = vector.broadcast %597 : f32 to vector<16x16xf32>
    %601 = arith.mulf %600, %599 : vector<16x16xf32>
    %602 = arith.addf %596, %601 : vector<16x16xf32>
    %c97 = arith.constant 97 : index
    %603 = memref.load %arg2[%c97] : memref<288xf32, #tpu.memory_space<smem>>
    %604 = vector.extract_strided_slice %15 {offsets = [2, 0, 0], sizes = [1, 16, 16], strides = [1, 1, 1]} : vector<4x16x16xf32> to vector<1x16x16xf32>
    %605 = vector.shape_cast %604 : vector<1x16x16xf32> to vector<16x16xf32>
    %606 = vector.broadcast %603 : f32 to vector<16x16xf32>
    %607 = arith.mulf %606, %605 : vector<16x16xf32>
    %608 = arith.addf %602, %607 : vector<16x16xf32>
    %c98 = arith.constant 98 : index
    %609 = memref.load %arg2[%c98] : memref<288xf32, #tpu.memory_space<smem>>
    %610 = vector.extract_strided_slice %17 {offsets = [2, 0, 0], sizes = [1, 16, 16], strides = [1, 1, 1]} : vector<4x16x16xf32> to vector<1x16x16xf32>
    %611 = vector.shape_cast %610 : vector<1x16x16xf32> to vector<16x16xf32>
    %612 = vector.broadcast %609 : f32 to vector<16x16xf32>
    %613 = arith.mulf %612, %611 : vector<16x16xf32>
    %614 = arith.addf %608, %613 : vector<16x16xf32>
    %c99 = arith.constant 99 : index
    %615 = memref.load %arg2[%c99] : memref<288xf32, #tpu.memory_space<smem>>
    %616 = vector.extract_strided_slice %1 {offsets = [3, 0, 0], sizes = [1, 16, 16], strides = [1, 1, 1]} : vector<4x16x16xf32> to vector<1x16x16xf32>
    %617 = vector.shape_cast %616 : vector<1x16x16xf32> to vector<16x16xf32>
    %618 = vector.broadcast %615 : f32 to vector<16x16xf32>
    %619 = arith.mulf %618, %617 : vector<16x16xf32>
    %620 = arith.addf %614, %619 : vector<16x16xf32>
    %c100 = arith.constant 100 : index
    %621 = memref.load %arg2[%c100] : memref<288xf32, #tpu.memory_space<smem>>
    %622 = vector.extract_strided_slice %3 {offsets = [3, 0, 0], sizes = [1, 16, 16], strides = [1, 1, 1]} : vector<4x16x16xf32> to vector<1x16x16xf32>
    %623 = vector.shape_cast %622 : vector<1x16x16xf32> to vector<16x16xf32>
    %624 = vector.broadcast %621 : f32 to vector<16x16xf32>
    %625 = arith.mulf %624, %623 : vector<16x16xf32>
    %626 = arith.addf %620, %625 : vector<16x16xf32>
    %c101 = arith.constant 101 : index
    %627 = memref.load %arg2[%c101] : memref<288xf32, #tpu.memory_space<smem>>
    %628 = vector.extract_strided_slice %5 {offsets = [3, 0, 0], sizes = [1, 16, 16], strides = [1, 1, 1]} : vector<4x16x16xf32> to vector<1x16x16xf32>
    %629 = vector.shape_cast %628 : vector<1x16x16xf32> to vector<16x16xf32>
    %630 = vector.broadcast %627 : f32 to vector<16x16xf32>
    %631 = arith.mulf %630, %629 : vector<16x16xf32>
    %632 = arith.addf %626, %631 : vector<16x16xf32>
    %c102 = arith.constant 102 : index
    %633 = memref.load %arg2[%c102] : memref<288xf32, #tpu.memory_space<smem>>
    %634 = vector.extract_strided_slice %7 {offsets = [3, 0, 0], sizes = [1, 16, 16], strides = [1, 1, 1]} : vector<4x16x16xf32> to vector<1x16x16xf32>
    %635 = vector.shape_cast %634 : vector<1x16x16xf32> to vector<16x16xf32>
    %636 = vector.broadcast %633 : f32 to vector<16x16xf32>
    %637 = arith.mulf %636, %635 : vector<16x16xf32>
    %638 = arith.addf %632, %637 : vector<16x16xf32>
    %c103 = arith.constant 103 : index
    %639 = memref.load %arg2[%c103] : memref<288xf32, #tpu.memory_space<smem>>
    %640 = vector.extract_strided_slice %9 {offsets = [3, 0, 0], sizes = [1, 16, 16], strides = [1, 1, 1]} : vector<4x16x16xf32> to vector<1x16x16xf32>
    %641 = vector.shape_cast %640 : vector<1x16x16xf32> to vector<16x16xf32>
    %642 = vector.broadcast %639 : f32 to vector<16x16xf32>
    %643 = arith.mulf %642, %641 : vector<16x16xf32>
    %644 = arith.addf %638, %643 : vector<16x16xf32>
    %c104 = arith.constant 104 : index
    %645 = memref.load %arg2[%c104] : memref<288xf32, #tpu.memory_space<smem>>
    %646 = vector.extract_strided_slice %11 {offsets = [3, 0, 0], sizes = [1, 16, 16], strides = [1, 1, 1]} : vector<4x16x16xf32> to vector<1x16x16xf32>
    %647 = vector.shape_cast %646 : vector<1x16x16xf32> to vector<16x16xf32>
    %648 = vector.broadcast %645 : f32 to vector<16x16xf32>
    %649 = arith.mulf %648, %647 : vector<16x16xf32>
    %650 = arith.addf %644, %649 : vector<16x16xf32>
    %c105 = arith.constant 105 : index
    %651 = memref.load %arg2[%c105] : memref<288xf32, #tpu.memory_space<smem>>
    %652 = vector.extract_strided_slice %13 {offsets = [3, 0, 0], sizes = [1, 16, 16], strides = [1, 1, 1]} : vector<4x16x16xf32> to vector<1x16x16xf32>
    %653 = vector.shape_cast %652 : vector<1x16x16xf32> to vector<16x16xf32>
    %654 = vector.broadcast %651 : f32 to vector<16x16xf32>
    %655 = arith.mulf %654, %653 : vector<16x16xf32>
    %656 = arith.addf %650, %655 : vector<16x16xf32>
    %c106 = arith.constant 106 : index
    %657 = memref.load %arg2[%c106] : memref<288xf32, #tpu.memory_space<smem>>
    %658 = vector.extract_strided_slice %15 {offsets = [3, 0, 0], sizes = [1, 16, 16], strides = [1, 1, 1]} : vector<4x16x16xf32> to vector<1x16x16xf32>
    %659 = vector.shape_cast %658 : vector<1x16x16xf32> to vector<16x16xf32>
    %660 = vector.broadcast %657 : f32 to vector<16x16xf32>
    %661 = arith.mulf %660, %659 : vector<16x16xf32>
    %662 = arith.addf %656, %661 : vector<16x16xf32>
    %c107 = arith.constant 107 : index
    %663 = memref.load %arg2[%c107] : memref<288xf32, #tpu.memory_space<smem>>
    %664 = vector.extract_strided_slice %17 {offsets = [3, 0, 0], sizes = [1, 16, 16], strides = [1, 1, 1]} : vector<4x16x16xf32> to vector<1x16x16xf32>
    %665 = vector.shape_cast %664 : vector<1x16x16xf32> to vector<16x16xf32>
    %666 = vector.broadcast %663 : f32 to vector<16x16xf32>
    %667 = arith.mulf %666, %665 : vector<16x16xf32>
    %668 = arith.addf %662, %667 : vector<16x16xf32>
    %cst_38 = arith.constant 0.000000e+00 : f32
    %669 = vector.broadcast %cst_38 : f32 to vector<16x16xf32>
    %c108 = arith.constant 108 : index
    %670 = memref.load %arg2[%c108] : memref<288xf32, #tpu.memory_space<smem>>
    %671 = vector.extract_strided_slice %1 {offsets = [0, 0, 0], sizes = [1, 16, 16], strides = [1, 1, 1]} : vector<4x16x16xf32> to vector<1x16x16xf32>
    %672 = vector.shape_cast %671 : vector<1x16x16xf32> to vector<16x16xf32>
    %673 = vector.broadcast %670 : f32 to vector<16x16xf32>
    %674 = arith.mulf %673, %672 : vector<16x16xf32>
    %675 = arith.addf %669, %674 : vector<16x16xf32>
    %c109 = arith.constant 109 : index
    %676 = memref.load %arg2[%c109] : memref<288xf32, #tpu.memory_space<smem>>
    %677 = vector.extract_strided_slice %3 {offsets = [0, 0, 0], sizes = [1, 16, 16], strides = [1, 1, 1]} : vector<4x16x16xf32> to vector<1x16x16xf32>
    %678 = vector.shape_cast %677 : vector<1x16x16xf32> to vector<16x16xf32>
    %679 = vector.broadcast %676 : f32 to vector<16x16xf32>
    %680 = arith.mulf %679, %678 : vector<16x16xf32>
    %681 = arith.addf %675, %680 : vector<16x16xf32>
    %c110 = arith.constant 110 : index
    %682 = memref.load %arg2[%c110] : memref<288xf32, #tpu.memory_space<smem>>
    %683 = vector.extract_strided_slice %5 {offsets = [0, 0, 0], sizes = [1, 16, 16], strides = [1, 1, 1]} : vector<4x16x16xf32> to vector<1x16x16xf32>
    %684 = vector.shape_cast %683 : vector<1x16x16xf32> to vector<16x16xf32>
    %685 = vector.broadcast %682 : f32 to vector<16x16xf32>
    %686 = arith.mulf %685, %684 : vector<16x16xf32>
    %687 = arith.addf %681, %686 : vector<16x16xf32>
    %c111 = arith.constant 111 : index
    %688 = memref.load %arg2[%c111] : memref<288xf32, #tpu.memory_space<smem>>
    %689 = vector.extract_strided_slice %7 {offsets = [0, 0, 0], sizes = [1, 16, 16], strides = [1, 1, 1]} : vector<4x16x16xf32> to vector<1x16x16xf32>
    %690 = vector.shape_cast %689 : vector<1x16x16xf32> to vector<16x16xf32>
    %691 = vector.broadcast %688 : f32 to vector<16x16xf32>
    %692 = arith.mulf %691, %690 : vector<16x16xf32>
    %693 = arith.addf %687, %692 : vector<16x16xf32>
    %c112 = arith.constant 112 : index
    %694 = memref.load %arg2[%c112] : memref<288xf32, #tpu.memory_space<smem>>
    %695 = vector.extract_strided_slice %9 {offsets = [0, 0, 0], sizes = [1, 16, 16], strides = [1, 1, 1]} : vector<4x16x16xf32> to vector<1x16x16xf32>
    %696 = vector.shape_cast %695 : vector<1x16x16xf32> to vector<16x16xf32>
    %697 = vector.broadcast %694 : f32 to vector<16x16xf32>
    %698 = arith.mulf %697, %696 : vector<16x16xf32>
    %699 = arith.addf %693, %698 : vector<16x16xf32>
    %c113 = arith.constant 113 : index
    %700 = memref.load %arg2[%c113] : memref<288xf32, #tpu.memory_space<smem>>
    %701 = vector.extract_strided_slice %11 {offsets = [0, 0, 0], sizes = [1, 16, 16], strides = [1, 1, 1]} : vector<4x16x16xf32> to vector<1x16x16xf32>
    %702 = vector.shape_cast %701 : vector<1x16x16xf32> to vector<16x16xf32>
    %703 = vector.broadcast %700 : f32 to vector<16x16xf32>
    %704 = arith.mulf %703, %702 : vector<16x16xf32>
    %705 = arith.addf %699, %704 : vector<16x16xf32>
    %c114 = arith.constant 114 : index
    %706 = memref.load %arg2[%c114] : memref<288xf32, #tpu.memory_space<smem>>
    %707 = vector.extract_strided_slice %13 {offsets = [0, 0, 0], sizes = [1, 16, 16], strides = [1, 1, 1]} : vector<4x16x16xf32> to vector<1x16x16xf32>
    %708 = vector.shape_cast %707 : vector<1x16x16xf32> to vector<16x16xf32>
    %709 = vector.broadcast %706 : f32 to vector<16x16xf32>
    %710 = arith.mulf %709, %708 : vector<16x16xf32>
    %711 = arith.addf %705, %710 : vector<16x16xf32>
    %c115 = arith.constant 115 : index
    %712 = memref.load %arg2[%c115] : memref<288xf32, #tpu.memory_space<smem>>
    %713 = vector.extract_strided_slice %15 {offsets = [0, 0, 0], sizes = [1, 16, 16], strides = [1, 1, 1]} : vector<4x16x16xf32> to vector<1x16x16xf32>
    %714 = vector.shape_cast %713 : vector<1x16x16xf32> to vector<16x16xf32>
    %715 = vector.broadcast %712 : f32 to vector<16x16xf32>
    %716 = arith.mulf %715, %714 : vector<16x16xf32>
    %717 = arith.addf %711, %716 : vector<16x16xf32>
    %c116 = arith.constant 116 : index
    %718 = memref.load %arg2[%c116] : memref<288xf32, #tpu.memory_space<smem>>
    %719 = vector.extract_strided_slice %17 {offsets = [0, 0, 0], sizes = [1, 16, 16], strides = [1, 1, 1]} : vector<4x16x16xf32> to vector<1x16x16xf32>
    %720 = vector.shape_cast %719 : vector<1x16x16xf32> to vector<16x16xf32>
    %721 = vector.broadcast %718 : f32 to vector<16x16xf32>
    %722 = arith.mulf %721, %720 : vector<16x16xf32>
    %723 = arith.addf %717, %722 : vector<16x16xf32>
    %c117 = arith.constant 117 : index
    %724 = memref.load %arg2[%c117] : memref<288xf32, #tpu.memory_space<smem>>
    %725 = vector.extract_strided_slice %1 {offsets = [1, 0, 0], sizes = [1, 16, 16], strides = [1, 1, 1]} : vector<4x16x16xf32> to vector<1x16x16xf32>
    %726 = vector.shape_cast %725 : vector<1x16x16xf32> to vector<16x16xf32>
    %727 = vector.broadcast %724 : f32 to vector<16x16xf32>
    %728 = arith.mulf %727, %726 : vector<16x16xf32>
    %729 = arith.addf %723, %728 : vector<16x16xf32>
    %c118 = arith.constant 118 : index
    %730 = memref.load %arg2[%c118] : memref<288xf32, #tpu.memory_space<smem>>
    %731 = vector.extract_strided_slice %3 {offsets = [1, 0, 0], sizes = [1, 16, 16], strides = [1, 1, 1]} : vector<4x16x16xf32> to vector<1x16x16xf32>
    %732 = vector.shape_cast %731 : vector<1x16x16xf32> to vector<16x16xf32>
    %733 = vector.broadcast %730 : f32 to vector<16x16xf32>
    %734 = arith.mulf %733, %732 : vector<16x16xf32>
    %735 = arith.addf %729, %734 : vector<16x16xf32>
    %c119 = arith.constant 119 : index
    %736 = memref.load %arg2[%c119] : memref<288xf32, #tpu.memory_space<smem>>
    %737 = vector.extract_strided_slice %5 {offsets = [1, 0, 0], sizes = [1, 16, 16], strides = [1, 1, 1]} : vector<4x16x16xf32> to vector<1x16x16xf32>
    %738 = vector.shape_cast %737 : vector<1x16x16xf32> to vector<16x16xf32>
    %739 = vector.broadcast %736 : f32 to vector<16x16xf32>
    %740 = arith.mulf %739, %738 : vector<16x16xf32>
    %741 = arith.addf %735, %740 : vector<16x16xf32>
    %c120 = arith.constant 120 : index
    %742 = memref.load %arg2[%c120] : memref<288xf32, #tpu.memory_space<smem>>
    %743 = vector.extract_strided_slice %7 {offsets = [1, 0, 0], sizes = [1, 16, 16], strides = [1, 1, 1]} : vector<4x16x16xf32> to vector<1x16x16xf32>
    %744 = vector.shape_cast %743 : vector<1x16x16xf32> to vector<16x16xf32>
    %745 = vector.broadcast %742 : f32 to vector<16x16xf32>
    %746 = arith.mulf %745, %744 : vector<16x16xf32>
    %747 = arith.addf %741, %746 : vector<16x16xf32>
    %c121 = arith.constant 121 : index
    %748 = memref.load %arg2[%c121] : memref<288xf32, #tpu.memory_space<smem>>
    %749 = vector.extract_strided_slice %9 {offsets = [1, 0, 0], sizes = [1, 16, 16], strides = [1, 1, 1]} : vector<4x16x16xf32> to vector<1x16x16xf32>
    %750 = vector.shape_cast %749 : vector<1x16x16xf32> to vector<16x16xf32>
    %751 = vector.broadcast %748 : f32 to vector<16x16xf32>
    %752 = arith.mulf %751, %750 : vector<16x16xf32>
    %753 = arith.addf %747, %752 : vector<16x16xf32>
    %c122 = arith.constant 122 : index
    %754 = memref.load %arg2[%c122] : memref<288xf32, #tpu.memory_space<smem>>
    %755 = vector.extract_strided_slice %11 {offsets = [1, 0, 0], sizes = [1, 16, 16], strides = [1, 1, 1]} : vector<4x16x16xf32> to vector<1x16x16xf32>
    %756 = vector.shape_cast %755 : vector<1x16x16xf32> to vector<16x16xf32>
    %757 = vector.broadcast %754 : f32 to vector<16x16xf32>
    %758 = arith.mulf %757, %756 : vector<16x16xf32>
    %759 = arith.addf %753, %758 : vector<16x16xf32>
    %c123 = arith.constant 123 : index
    %760 = memref.load %arg2[%c123] : memref<288xf32, #tpu.memory_space<smem>>
    %761 = vector.extract_strided_slice %13 {offsets = [1, 0, 0], sizes = [1, 16, 16], strides = [1, 1, 1]} : vector<4x16x16xf32> to vector<1x16x16xf32>
    %762 = vector.shape_cast %761 : vector<1x16x16xf32> to vector<16x16xf32>
    %763 = vector.broadcast %760 : f32 to vector<16x16xf32>
    %764 = arith.mulf %763, %762 : vector<16x16xf32>
    %765 = arith.addf %759, %764 : vector<16x16xf32>
    %c124 = arith.constant 124 : index
    %766 = memref.load %arg2[%c124] : memref<288xf32, #tpu.memory_space<smem>>
    %767 = vector.extract_strided_slice %15 {offsets = [1, 0, 0], sizes = [1, 16, 16], strides = [1, 1, 1]} : vector<4x16x16xf32> to vector<1x16x16xf32>
    %768 = vector.shape_cast %767 : vector<1x16x16xf32> to vector<16x16xf32>
    %769 = vector.broadcast %766 : f32 to vector<16x16xf32>
    %770 = arith.mulf %769, %768 : vector<16x16xf32>
    %771 = arith.addf %765, %770 : vector<16x16xf32>
    %c125 = arith.constant 125 : index
    %772 = memref.load %arg2[%c125] : memref<288xf32, #tpu.memory_space<smem>>
    %773 = vector.extract_strided_slice %17 {offsets = [1, 0, 0], sizes = [1, 16, 16], strides = [1, 1, 1]} : vector<4x16x16xf32> to vector<1x16x16xf32>
    %774 = vector.shape_cast %773 : vector<1x16x16xf32> to vector<16x16xf32>
    %775 = vector.broadcast %772 : f32 to vector<16x16xf32>
    %776 = arith.mulf %775, %774 : vector<16x16xf32>
    %777 = arith.addf %771, %776 : vector<16x16xf32>
    %c126 = arith.constant 126 : index
    %778 = memref.load %arg2[%c126] : memref<288xf32, #tpu.memory_space<smem>>
    %779 = vector.extract_strided_slice %1 {offsets = [2, 0, 0], sizes = [1, 16, 16], strides = [1, 1, 1]} : vector<4x16x16xf32> to vector<1x16x16xf32>
    %780 = vector.shape_cast %779 : vector<1x16x16xf32> to vector<16x16xf32>
    %781 = vector.broadcast %778 : f32 to vector<16x16xf32>
    %782 = arith.mulf %781, %780 : vector<16x16xf32>
    %783 = arith.addf %777, %782 : vector<16x16xf32>
    %c127 = arith.constant 127 : index
    %784 = memref.load %arg2[%c127] : memref<288xf32, #tpu.memory_space<smem>>
    %785 = vector.extract_strided_slice %3 {offsets = [2, 0, 0], sizes = [1, 16, 16], strides = [1, 1, 1]} : vector<4x16x16xf32> to vector<1x16x16xf32>
    %786 = vector.shape_cast %785 : vector<1x16x16xf32> to vector<16x16xf32>
    %787 = vector.broadcast %784 : f32 to vector<16x16xf32>
    %788 = arith.mulf %787, %786 : vector<16x16xf32>
    %789 = arith.addf %783, %788 : vector<16x16xf32>
    %c128 = arith.constant 128 : index
    %790 = memref.load %arg2[%c128] : memref<288xf32, #tpu.memory_space<smem>>
    %791 = vector.extract_strided_slice %5 {offsets = [2, 0, 0], sizes = [1, 16, 16], strides = [1, 1, 1]} : vector<4x16x16xf32> to vector<1x16x16xf32>
    %792 = vector.shape_cast %791 : vector<1x16x16xf32> to vector<16x16xf32>
    %793 = vector.broadcast %790 : f32 to vector<16x16xf32>
    %794 = arith.mulf %793, %792 : vector<16x16xf32>
    %795 = arith.addf %789, %794 : vector<16x16xf32>
    %c129 = arith.constant 129 : index
    %796 = memref.load %arg2[%c129] : memref<288xf32, #tpu.memory_space<smem>>
    %797 = vector.extract_strided_slice %7 {offsets = [2, 0, 0], sizes = [1, 16, 16], strides = [1, 1, 1]} : vector<4x16x16xf32> to vector<1x16x16xf32>
    %798 = vector.shape_cast %797 : vector<1x16x16xf32> to vector<16x16xf32>
    %799 = vector.broadcast %796 : f32 to vector<16x16xf32>
    %800 = arith.mulf %799, %798 : vector<16x16xf32>
    %801 = arith.addf %795, %800 : vector<16x16xf32>
    %c130 = arith.constant 130 : index
    %802 = memref.load %arg2[%c130] : memref<288xf32, #tpu.memory_space<smem>>
    %803 = vector.extract_strided_slice %9 {offsets = [2, 0, 0], sizes = [1, 16, 16], strides = [1, 1, 1]} : vector<4x16x16xf32> to vector<1x16x16xf32>
    %804 = vector.shape_cast %803 : vector<1x16x16xf32> to vector<16x16xf32>
    %805 = vector.broadcast %802 : f32 to vector<16x16xf32>
    %806 = arith.mulf %805, %804 : vector<16x16xf32>
    %807 = arith.addf %801, %806 : vector<16x16xf32>
    %c131 = arith.constant 131 : index
    %808 = memref.load %arg2[%c131] : memref<288xf32, #tpu.memory_space<smem>>
    %809 = vector.extract_strided_slice %11 {offsets = [2, 0, 0], sizes = [1, 16, 16], strides = [1, 1, 1]} : vector<4x16x16xf32> to vector<1x16x16xf32>
    %810 = vector.shape_cast %809 : vector<1x16x16xf32> to vector<16x16xf32>
    %811 = vector.broadcast %808 : f32 to vector<16x16xf32>
    %812 = arith.mulf %811, %810 : vector<16x16xf32>
    %813 = arith.addf %807, %812 : vector<16x16xf32>
    %c132 = arith.constant 132 : index
    %814 = memref.load %arg2[%c132] : memref<288xf32, #tpu.memory_space<smem>>
    %815 = vector.extract_strided_slice %13 {offsets = [2, 0, 0], sizes = [1, 16, 16], strides = [1, 1, 1]} : vector<4x16x16xf32> to vector<1x16x16xf32>
    %816 = vector.shape_cast %815 : vector<1x16x16xf32> to vector<16x16xf32>
    %817 = vector.broadcast %814 : f32 to vector<16x16xf32>
    %818 = arith.mulf %817, %816 : vector<16x16xf32>
    %819 = arith.addf %813, %818 : vector<16x16xf32>
    %c133 = arith.constant 133 : index
    %820 = memref.load %arg2[%c133] : memref<288xf32, #tpu.memory_space<smem>>
    %821 = vector.extract_strided_slice %15 {offsets = [2, 0, 0], sizes = [1, 16, 16], strides = [1, 1, 1]} : vector<4x16x16xf32> to vector<1x16x16xf32>
    %822 = vector.shape_cast %821 : vector<1x16x16xf32> to vector<16x16xf32>
    %823 = vector.broadcast %820 : f32 to vector<16x16xf32>
    %824 = arith.mulf %823, %822 : vector<16x16xf32>
    %825 = arith.addf %819, %824 : vector<16x16xf32>
    %c134 = arith.constant 134 : index
    %826 = memref.load %arg2[%c134] : memref<288xf32, #tpu.memory_space<smem>>
    %827 = vector.extract_strided_slice %17 {offsets = [2, 0, 0], sizes = [1, 16, 16], strides = [1, 1, 1]} : vector<4x16x16xf32> to vector<1x16x16xf32>
    %828 = vector.shape_cast %827 : vector<1x16x16xf32> to vector<16x16xf32>
    %829 = vector.broadcast %826 : f32 to vector<16x16xf32>
    %830 = arith.mulf %829, %828 : vector<16x16xf32>
    %831 = arith.addf %825, %830 : vector<16x16xf32>
    %c135 = arith.constant 135 : index
    %832 = memref.load %arg2[%c135] : memref<288xf32, #tpu.memory_space<smem>>
    %833 = vector.extract_strided_slice %1 {offsets = [3, 0, 0], sizes = [1, 16, 16], strides = [1, 1, 1]} : vector<4x16x16xf32> to vector<1x16x16xf32>
    %834 = vector.shape_cast %833 : vector<1x16x16xf32> to vector<16x16xf32>
    %835 = vector.broadcast %832 : f32 to vector<16x16xf32>
    %836 = arith.mulf %835, %834 : vector<16x16xf32>
    %837 = arith.addf %831, %836 : vector<16x16xf32>
    %c136 = arith.constant 136 : index
    %838 = memref.load %arg2[%c136] : memref<288xf32, #tpu.memory_space<smem>>
    %839 = vector.extract_strided_slice %3 {offsets = [3, 0, 0], sizes = [1, 16, 16], strides = [1, 1, 1]} : vector<4x16x16xf32> to vector<1x16x16xf32>
    %840 = vector.shape_cast %839 : vector<1x16x16xf32> to vector<16x16xf32>
    %841 = vector.broadcast %838 : f32 to vector<16x16xf32>
    %842 = arith.mulf %841, %840 : vector<16x16xf32>
    %843 = arith.addf %837, %842 : vector<16x16xf32>
    %c137 = arith.constant 137 : index
    %844 = memref.load %arg2[%c137] : memref<288xf32, #tpu.memory_space<smem>>
    %845 = vector.extract_strided_slice %5 {offsets = [3, 0, 0], sizes = [1, 16, 16], strides = [1, 1, 1]} : vector<4x16x16xf32> to vector<1x16x16xf32>
    %846 = vector.shape_cast %845 : vector<1x16x16xf32> to vector<16x16xf32>
    %847 = vector.broadcast %844 : f32 to vector<16x16xf32>
    %848 = arith.mulf %847, %846 : vector<16x16xf32>
    %849 = arith.addf %843, %848 : vector<16x16xf32>
    %c138 = arith.constant 138 : index
    %850 = memref.load %arg2[%c138] : memref<288xf32, #tpu.memory_space<smem>>
    %851 = vector.extract_strided_slice %7 {offsets = [3, 0, 0], sizes = [1, 16, 16], strides = [1, 1, 1]} : vector<4x16x16xf32> to vector<1x16x16xf32>
    %852 = vector.shape_cast %851 : vector<1x16x16xf32> to vector<16x16xf32>
    %853 = vector.broadcast %850 : f32 to vector<16x16xf32>
    %854 = arith.mulf %853, %852 : vector<16x16xf32>
    %855 = arith.addf %849, %854 : vector<16x16xf32>
    %c139 = arith.constant 139 : index
    %856 = memref.load %arg2[%c139] : memref<288xf32, #tpu.memory_space<smem>>
    %857 = vector.extract_strided_slice %9 {offsets = [3, 0, 0], sizes = [1, 16, 16], strides = [1, 1, 1]} : vector<4x16x16xf32> to vector<1x16x16xf32>
    %858 = vector.shape_cast %857 : vector<1x16x16xf32> to vector<16x16xf32>
    %859 = vector.broadcast %856 : f32 to vector<16x16xf32>
    %860 = arith.mulf %859, %858 : vector<16x16xf32>
    %861 = arith.addf %855, %860 : vector<16x16xf32>
    %c140 = arith.constant 140 : index
    %862 = memref.load %arg2[%c140] : memref<288xf32, #tpu.memory_space<smem>>
    %863 = vector.extract_strided_slice %11 {offsets = [3, 0, 0], sizes = [1, 16, 16], strides = [1, 1, 1]} : vector<4x16x16xf32> to vector<1x16x16xf32>
    %864 = vector.shape_cast %863 : vector<1x16x16xf32> to vector<16x16xf32>
    %865 = vector.broadcast %862 : f32 to vector<16x16xf32>
    %866 = arith.mulf %865, %864 : vector<16x16xf32>
    %867 = arith.addf %861, %866 : vector<16x16xf32>
    %c141 = arith.constant 141 : index
    %868 = memref.load %arg2[%c141] : memref<288xf32, #tpu.memory_space<smem>>
    %869 = vector.extract_strided_slice %13 {offsets = [3, 0, 0], sizes = [1, 16, 16], strides = [1, 1, 1]} : vector<4x16x16xf32> to vector<1x16x16xf32>
    %870 = vector.shape_cast %869 : vector<1x16x16xf32> to vector<16x16xf32>
    %871 = vector.broadcast %868 : f32 to vector<16x16xf32>
    %872 = arith.mulf %871, %870 : vector<16x16xf32>
    %873 = arith.addf %867, %872 : vector<16x16xf32>
    %c142 = arith.constant 142 : index
    %874 = memref.load %arg2[%c142] : memref<288xf32, #tpu.memory_space<smem>>
    %875 = vector.extract_strided_slice %15 {offsets = [3, 0, 0], sizes = [1, 16, 16], strides = [1, 1, 1]} : vector<4x16x16xf32> to vector<1x16x16xf32>
    %876 = vector.shape_cast %875 : vector<1x16x16xf32> to vector<16x16xf32>
    %877 = vector.broadcast %874 : f32 to vector<16x16xf32>
    %878 = arith.mulf %877, %876 : vector<16x16xf32>
    %879 = arith.addf %873, %878 : vector<16x16xf32>
    %c143 = arith.constant 143 : index
    %880 = memref.load %arg2[%c143] : memref<288xf32, #tpu.memory_space<smem>>
    %881 = vector.extract_strided_slice %17 {offsets = [3, 0, 0], sizes = [1, 16, 16], strides = [1, 1, 1]} : vector<4x16x16xf32> to vector<1x16x16xf32>
    %882 = vector.shape_cast %881 : vector<1x16x16xf32> to vector<16x16xf32>
    %883 = vector.broadcast %880 : f32 to vector<16x16xf32>
    %884 = arith.mulf %883, %882 : vector<16x16xf32>
    %885 = arith.addf %879, %884 : vector<16x16xf32>
    %cst_39 = arith.constant 0.000000e+00 : f32
    %886 = vector.broadcast %cst_39 : f32 to vector<16x16xf32>
    %c144 = arith.constant 144 : index
    %887 = memref.load %arg2[%c144] : memref<288xf32, #tpu.memory_space<smem>>
    %888 = vector.extract_strided_slice %1 {offsets = [0, 0, 0], sizes = [1, 16, 16], strides = [1, 1, 1]} : vector<4x16x16xf32> to vector<1x16x16xf32>
    %889 = vector.shape_cast %888 : vector<1x16x16xf32> to vector<16x16xf32>
    %890 = vector.broadcast %887 : f32 to vector<16x16xf32>
    %891 = arith.mulf %890, %889 : vector<16x16xf32>
    %892 = arith.addf %886, %891 : vector<16x16xf32>
    %c145 = arith.constant 145 : index
    %893 = memref.load %arg2[%c145] : memref<288xf32, #tpu.memory_space<smem>>
    %894 = vector.extract_strided_slice %3 {offsets = [0, 0, 0], sizes = [1, 16, 16], strides = [1, 1, 1]} : vector<4x16x16xf32> to vector<1x16x16xf32>
    %895 = vector.shape_cast %894 : vector<1x16x16xf32> to vector<16x16xf32>
    %896 = vector.broadcast %893 : f32 to vector<16x16xf32>
    %897 = arith.mulf %896, %895 : vector<16x16xf32>
    %898 = arith.addf %892, %897 : vector<16x16xf32>
    %c146 = arith.constant 146 : index
    %899 = memref.load %arg2[%c146] : memref<288xf32, #tpu.memory_space<smem>>
    %900 = vector.extract_strided_slice %5 {offsets = [0, 0, 0], sizes = [1, 16, 16], strides = [1, 1, 1]} : vector<4x16x16xf32> to vector<1x16x16xf32>
    %901 = vector.shape_cast %900 : vector<1x16x16xf32> to vector<16x16xf32>
    %902 = vector.broadcast %899 : f32 to vector<16x16xf32>
    %903 = arith.mulf %902, %901 : vector<16x16xf32>
    %904 = arith.addf %898, %903 : vector<16x16xf32>
    %c147 = arith.constant 147 : index
    %905 = memref.load %arg2[%c147] : memref<288xf32, #tpu.memory_space<smem>>
    %906 = vector.extract_strided_slice %7 {offsets = [0, 0, 0], sizes = [1, 16, 16], strides = [1, 1, 1]} : vector<4x16x16xf32> to vector<1x16x16xf32>
    %907 = vector.shape_cast %906 : vector<1x16x16xf32> to vector<16x16xf32>
    %908 = vector.broadcast %905 : f32 to vector<16x16xf32>
    %909 = arith.mulf %908, %907 : vector<16x16xf32>
    %910 = arith.addf %904, %909 : vector<16x16xf32>
    %c148 = arith.constant 148 : index
    %911 = memref.load %arg2[%c148] : memref<288xf32, #tpu.memory_space<smem>>
    %912 = vector.extract_strided_slice %9 {offsets = [0, 0, 0], sizes = [1, 16, 16], strides = [1, 1, 1]} : vector<4x16x16xf32> to vector<1x16x16xf32>
    %913 = vector.shape_cast %912 : vector<1x16x16xf32> to vector<16x16xf32>
    %914 = vector.broadcast %911 : f32 to vector<16x16xf32>
    %915 = arith.mulf %914, %913 : vector<16x16xf32>
    %916 = arith.addf %910, %915 : vector<16x16xf32>
    %c149 = arith.constant 149 : index
    %917 = memref.load %arg2[%c149] : memref<288xf32, #tpu.memory_space<smem>>
    %918 = vector.extract_strided_slice %11 {offsets = [0, 0, 0], sizes = [1, 16, 16], strides = [1, 1, 1]} : vector<4x16x16xf32> to vector<1x16x16xf32>
    %919 = vector.shape_cast %918 : vector<1x16x16xf32> to vector<16x16xf32>
    %920 = vector.broadcast %917 : f32 to vector<16x16xf32>
    %921 = arith.mulf %920, %919 : vector<16x16xf32>
    %922 = arith.addf %916, %921 : vector<16x16xf32>
    %c150 = arith.constant 150 : index
    %923 = memref.load %arg2[%c150] : memref<288xf32, #tpu.memory_space<smem>>
    %924 = vector.extract_strided_slice %13 {offsets = [0, 0, 0], sizes = [1, 16, 16], strides = [1, 1, 1]} : vector<4x16x16xf32> to vector<1x16x16xf32>
    %925 = vector.shape_cast %924 : vector<1x16x16xf32> to vector<16x16xf32>
    %926 = vector.broadcast %923 : f32 to vector<16x16xf32>
    %927 = arith.mulf %926, %925 : vector<16x16xf32>
    %928 = arith.addf %922, %927 : vector<16x16xf32>
    %c151 = arith.constant 151 : index
    %929 = memref.load %arg2[%c151] : memref<288xf32, #tpu.memory_space<smem>>
    %930 = vector.extract_strided_slice %15 {offsets = [0, 0, 0], sizes = [1, 16, 16], strides = [1, 1, 1]} : vector<4x16x16xf32> to vector<1x16x16xf32>
    %931 = vector.shape_cast %930 : vector<1x16x16xf32> to vector<16x16xf32>
    %932 = vector.broadcast %929 : f32 to vector<16x16xf32>
    %933 = arith.mulf %932, %931 : vector<16x16xf32>
    %934 = arith.addf %928, %933 : vector<16x16xf32>
    %c152 = arith.constant 152 : index
    %935 = memref.load %arg2[%c152] : memref<288xf32, #tpu.memory_space<smem>>
    %936 = vector.extract_strided_slice %17 {offsets = [0, 0, 0], sizes = [1, 16, 16], strides = [1, 1, 1]} : vector<4x16x16xf32> to vector<1x16x16xf32>
    %937 = vector.shape_cast %936 : vector<1x16x16xf32> to vector<16x16xf32>
    %938 = vector.broadcast %935 : f32 to vector<16x16xf32>
    %939 = arith.mulf %938, %937 : vector<16x16xf32>
    %940 = arith.addf %934, %939 : vector<16x16xf32>
    %c153 = arith.constant 153 : index
    %941 = memref.load %arg2[%c153] : memref<288xf32, #tpu.memory_space<smem>>
    %942 = vector.extract_strided_slice %1 {offsets = [1, 0, 0], sizes = [1, 16, 16], strides = [1, 1, 1]} : vector<4x16x16xf32> to vector<1x16x16xf32>
    %943 = vector.shape_cast %942 : vector<1x16x16xf32> to vector<16x16xf32>
    %944 = vector.broadcast %941 : f32 to vector<16x16xf32>
    %945 = arith.mulf %944, %943 : vector<16x16xf32>
    %946 = arith.addf %940, %945 : vector<16x16xf32>
    %c154 = arith.constant 154 : index
    %947 = memref.load %arg2[%c154] : memref<288xf32, #tpu.memory_space<smem>>
    %948 = vector.extract_strided_slice %3 {offsets = [1, 0, 0], sizes = [1, 16, 16], strides = [1, 1, 1]} : vector<4x16x16xf32> to vector<1x16x16xf32>
    %949 = vector.shape_cast %948 : vector<1x16x16xf32> to vector<16x16xf32>
    %950 = vector.broadcast %947 : f32 to vector<16x16xf32>
    %951 = arith.mulf %950, %949 : vector<16x16xf32>
    %952 = arith.addf %946, %951 : vector<16x16xf32>
    %c155 = arith.constant 155 : index
    %953 = memref.load %arg2[%c155] : memref<288xf32, #tpu.memory_space<smem>>
    %954 = vector.extract_strided_slice %5 {offsets = [1, 0, 0], sizes = [1, 16, 16], strides = [1, 1, 1]} : vector<4x16x16xf32> to vector<1x16x16xf32>
    %955 = vector.shape_cast %954 : vector<1x16x16xf32> to vector<16x16xf32>
    %956 = vector.broadcast %953 : f32 to vector<16x16xf32>
    %957 = arith.mulf %956, %955 : vector<16x16xf32>
    %958 = arith.addf %952, %957 : vector<16x16xf32>
    %c156 = arith.constant 156 : index
    %959 = memref.load %arg2[%c156] : memref<288xf32, #tpu.memory_space<smem>>
    %960 = vector.extract_strided_slice %7 {offsets = [1, 0, 0], sizes = [1, 16, 16], strides = [1, 1, 1]} : vector<4x16x16xf32> to vector<1x16x16xf32>
    %961 = vector.shape_cast %960 : vector<1x16x16xf32> to vector<16x16xf32>
    %962 = vector.broadcast %959 : f32 to vector<16x16xf32>
    %963 = arith.mulf %962, %961 : vector<16x16xf32>
    %964 = arith.addf %958, %963 : vector<16x16xf32>
    %c157 = arith.constant 157 : index
    %965 = memref.load %arg2[%c157] : memref<288xf32, #tpu.memory_space<smem>>
    %966 = vector.extract_strided_slice %9 {offsets = [1, 0, 0], sizes = [1, 16, 16], strides = [1, 1, 1]} : vector<4x16x16xf32> to vector<1x16x16xf32>
    %967 = vector.shape_cast %966 : vector<1x16x16xf32> to vector<16x16xf32>
    %968 = vector.broadcast %965 : f32 to vector<16x16xf32>
    %969 = arith.mulf %968, %967 : vector<16x16xf32>
    %970 = arith.addf %964, %969 : vector<16x16xf32>
    %c158 = arith.constant 158 : index
    %971 = memref.load %arg2[%c158] : memref<288xf32, #tpu.memory_space<smem>>
    %972 = vector.extract_strided_slice %11 {offsets = [1, 0, 0], sizes = [1, 16, 16], strides = [1, 1, 1]} : vector<4x16x16xf32> to vector<1x16x16xf32>
    %973 = vector.shape_cast %972 : vector<1x16x16xf32> to vector<16x16xf32>
    %974 = vector.broadcast %971 : f32 to vector<16x16xf32>
    %975 = arith.mulf %974, %973 : vector<16x16xf32>
    %976 = arith.addf %970, %975 : vector<16x16xf32>
    %c159 = arith.constant 159 : index
    %977 = memref.load %arg2[%c159] : memref<288xf32, #tpu.memory_space<smem>>
    %978 = vector.extract_strided_slice %13 {offsets = [1, 0, 0], sizes = [1, 16, 16], strides = [1, 1, 1]} : vector<4x16x16xf32> to vector<1x16x16xf32>
    %979 = vector.shape_cast %978 : vector<1x16x16xf32> to vector<16x16xf32>
    %980 = vector.broadcast %977 : f32 to vector<16x16xf32>
    %981 = arith.mulf %980, %979 : vector<16x16xf32>
    %982 = arith.addf %976, %981 : vector<16x16xf32>
    %c160 = arith.constant 160 : index
    %983 = memref.load %arg2[%c160] : memref<288xf32, #tpu.memory_space<smem>>
    %984 = vector.extract_strided_slice %15 {offsets = [1, 0, 0], sizes = [1, 16, 16], strides = [1, 1, 1]} : vector<4x16x16xf32> to vector<1x16x16xf32>
    %985 = vector.shape_cast %984 : vector<1x16x16xf32> to vector<16x16xf32>
    %986 = vector.broadcast %983 : f32 to vector<16x16xf32>
    %987 = arith.mulf %986, %985 : vector<16x16xf32>
    %988 = arith.addf %982, %987 : vector<16x16xf32>
    %c161 = arith.constant 161 : index
    %989 = memref.load %arg2[%c161] : memref<288xf32, #tpu.memory_space<smem>>
    %990 = vector.extract_strided_slice %17 {offsets = [1, 0, 0], sizes = [1, 16, 16], strides = [1, 1, 1]} : vector<4x16x16xf32> to vector<1x16x16xf32>
    %991 = vector.shape_cast %990 : vector<1x16x16xf32> to vector<16x16xf32>
    %992 = vector.broadcast %989 : f32 to vector<16x16xf32>
    %993 = arith.mulf %992, %991 : vector<16x16xf32>
    %994 = arith.addf %988, %993 : vector<16x16xf32>
    %c162 = arith.constant 162 : index
    %995 = memref.load %arg2[%c162] : memref<288xf32, #tpu.memory_space<smem>>
    %996 = vector.extract_strided_slice %1 {offsets = [2, 0, 0], sizes = [1, 16, 16], strides = [1, 1, 1]} : vector<4x16x16xf32> to vector<1x16x16xf32>
    %997 = vector.shape_cast %996 : vector<1x16x16xf32> to vector<16x16xf32>
    %998 = vector.broadcast %995 : f32 to vector<16x16xf32>
    %999 = arith.mulf %998, %997 : vector<16x16xf32>
    %1000 = arith.addf %994, %999 : vector<16x16xf32>
    %c163 = arith.constant 163 : index
    %1001 = memref.load %arg2[%c163] : memref<288xf32, #tpu.memory_space<smem>>
    %1002 = vector.extract_strided_slice %3 {offsets = [2, 0, 0], sizes = [1, 16, 16], strides = [1, 1, 1]} : vector<4x16x16xf32> to vector<1x16x16xf32>
    %1003 = vector.shape_cast %1002 : vector<1x16x16xf32> to vector<16x16xf32>
    %1004 = vector.broadcast %1001 : f32 to vector<16x16xf32>
    %1005 = arith.mulf %1004, %1003 : vector<16x16xf32>
    %1006 = arith.addf %1000, %1005 : vector<16x16xf32>
    %c164 = arith.constant 164 : index
    %1007 = memref.load %arg2[%c164] : memref<288xf32, #tpu.memory_space<smem>>
    %1008 = vector.extract_strided_slice %5 {offsets = [2, 0, 0], sizes = [1, 16, 16], strides = [1, 1, 1]} : vector<4x16x16xf32> to vector<1x16x16xf32>
    %1009 = vector.shape_cast %1008 : vector<1x16x16xf32> to vector<16x16xf32>
    %1010 = vector.broadcast %1007 : f32 to vector<16x16xf32>
    %1011 = arith.mulf %1010, %1009 : vector<16x16xf32>
    %1012 = arith.addf %1006, %1011 : vector<16x16xf32>
    %c165 = arith.constant 165 : index
    %1013 = memref.load %arg2[%c165] : memref<288xf32, #tpu.memory_space<smem>>
    %1014 = vector.extract_strided_slice %7 {offsets = [2, 0, 0], sizes = [1, 16, 16], strides = [1, 1, 1]} : vector<4x16x16xf32> to vector<1x16x16xf32>
    %1015 = vector.shape_cast %1014 : vector<1x16x16xf32> to vector<16x16xf32>
    %1016 = vector.broadcast %1013 : f32 to vector<16x16xf32>
    %1017 = arith.mulf %1016, %1015 : vector<16x16xf32>
    %1018 = arith.addf %1012, %1017 : vector<16x16xf32>
    %c166 = arith.constant 166 : index
    %1019 = memref.load %arg2[%c166] : memref<288xf32, #tpu.memory_space<smem>>
    %1020 = vector.extract_strided_slice %9 {offsets = [2, 0, 0], sizes = [1, 16, 16], strides = [1, 1, 1]} : vector<4x16x16xf32> to vector<1x16x16xf32>
    %1021 = vector.shape_cast %1020 : vector<1x16x16xf32> to vector<16x16xf32>
    %1022 = vector.broadcast %1019 : f32 to vector<16x16xf32>
    %1023 = arith.mulf %1022, %1021 : vector<16x16xf32>
    %1024 = arith.addf %1018, %1023 : vector<16x16xf32>
    %c167 = arith.constant 167 : index
    %1025 = memref.load %arg2[%c167] : memref<288xf32, #tpu.memory_space<smem>>
    %1026 = vector.extract_strided_slice %11 {offsets = [2, 0, 0], sizes = [1, 16, 16], strides = [1, 1, 1]} : vector<4x16x16xf32> to vector<1x16x16xf32>
    %1027 = vector.shape_cast %1026 : vector<1x16x16xf32> to vector<16x16xf32>
    %1028 = vector.broadcast %1025 : f32 to vector<16x16xf32>
    %1029 = arith.mulf %1028, %1027 : vector<16x16xf32>
    %1030 = arith.addf %1024, %1029 : vector<16x16xf32>
    %c168 = arith.constant 168 : index
    %1031 = memref.load %arg2[%c168] : memref<288xf32, #tpu.memory_space<smem>>
    %1032 = vector.extract_strided_slice %13 {offsets = [2, 0, 0], sizes = [1, 16, 16], strides = [1, 1, 1]} : vector<4x16x16xf32> to vector<1x16x16xf32>
    %1033 = vector.shape_cast %1032 : vector<1x16x16xf32> to vector<16x16xf32>
    %1034 = vector.broadcast %1031 : f32 to vector<16x16xf32>
    %1035 = arith.mulf %1034, %1033 : vector<16x16xf32>
    %1036 = arith.addf %1030, %1035 : vector<16x16xf32>
    %c169 = arith.constant 169 : index
    %1037 = memref.load %arg2[%c169] : memref<288xf32, #tpu.memory_space<smem>>
    %1038 = vector.extract_strided_slice %15 {offsets = [2, 0, 0], sizes = [1, 16, 16], strides = [1, 1, 1]} : vector<4x16x16xf32> to vector<1x16x16xf32>
    %1039 = vector.shape_cast %1038 : vector<1x16x16xf32> to vector<16x16xf32>
    %1040 = vector.broadcast %1037 : f32 to vector<16x16xf32>
    %1041 = arith.mulf %1040, %1039 : vector<16x16xf32>
    %1042 = arith.addf %1036, %1041 : vector<16x16xf32>
    %c170 = arith.constant 170 : index
    %1043 = memref.load %arg2[%c170] : memref<288xf32, #tpu.memory_space<smem>>
    %1044 = vector.extract_strided_slice %17 {offsets = [2, 0, 0], sizes = [1, 16, 16], strides = [1, 1, 1]} : vector<4x16x16xf32> to vector<1x16x16xf32>
    %1045 = vector.shape_cast %1044 : vector<1x16x16xf32> to vector<16x16xf32>
    %1046 = vector.broadcast %1043 : f32 to vector<16x16xf32>
    %1047 = arith.mulf %1046, %1045 : vector<16x16xf32>
    %1048 = arith.addf %1042, %1047 : vector<16x16xf32>
    %c171 = arith.constant 171 : index
    %1049 = memref.load %arg2[%c171] : memref<288xf32, #tpu.memory_space<smem>>
    %1050 = vector.extract_strided_slice %1 {offsets = [3, 0, 0], sizes = [1, 16, 16], strides = [1, 1, 1]} : vector<4x16x16xf32> to vector<1x16x16xf32>
    %1051 = vector.shape_cast %1050 : vector<1x16x16xf32> to vector<16x16xf32>
    %1052 = vector.broadcast %1049 : f32 to vector<16x16xf32>
    %1053 = arith.mulf %1052, %1051 : vector<16x16xf32>
    %1054 = arith.addf %1048, %1053 : vector<16x16xf32>
    %c172 = arith.constant 172 : index
    %1055 = memref.load %arg2[%c172] : memref<288xf32, #tpu.memory_space<smem>>
    %1056 = vector.extract_strided_slice %3 {offsets = [3, 0, 0], sizes = [1, 16, 16], strides = [1, 1, 1]} : vector<4x16x16xf32> to vector<1x16x16xf32>
    %1057 = vector.shape_cast %1056 : vector<1x16x16xf32> to vector<16x16xf32>
    %1058 = vector.broadcast %1055 : f32 to vector<16x16xf32>
    %1059 = arith.mulf %1058, %1057 : vector<16x16xf32>
    %1060 = arith.addf %1054, %1059 : vector<16x16xf32>
    %c173 = arith.constant 173 : index
    %1061 = memref.load %arg2[%c173] : memref<288xf32, #tpu.memory_space<smem>>
    %1062 = vector.extract_strided_slice %5 {offsets = [3, 0, 0], sizes = [1, 16, 16], strides = [1, 1, 1]} : vector<4x16x16xf32> to vector<1x16x16xf32>
    %1063 = vector.shape_cast %1062 : vector<1x16x16xf32> to vector<16x16xf32>
    %1064 = vector.broadcast %1061 : f32 to vector<16x16xf32>
    %1065 = arith.mulf %1064, %1063 : vector<16x16xf32>
    %1066 = arith.addf %1060, %1065 : vector<16x16xf32>
    %c174 = arith.constant 174 : index
    %1067 = memref.load %arg2[%c174] : memref<288xf32, #tpu.memory_space<smem>>
    %1068 = vector.extract_strided_slice %7 {offsets = [3, 0, 0], sizes = [1, 16, 16], strides = [1, 1, 1]} : vector<4x16x16xf32> to vector<1x16x16xf32>
    %1069 = vector.shape_cast %1068 : vector<1x16x16xf32> to vector<16x16xf32>
    %1070 = vector.broadcast %1067 : f32 to vector<16x16xf32>
    %1071 = arith.mulf %1070, %1069 : vector<16x16xf32>
    %1072 = arith.addf %1066, %1071 : vector<16x16xf32>
    %c175 = arith.constant 175 : index
    %1073 = memref.load %arg2[%c175] : memref<288xf32, #tpu.memory_space<smem>>
    %1074 = vector.extract_strided_slice %9 {offsets = [3, 0, 0], sizes = [1, 16, 16], strides = [1, 1, 1]} : vector<4x16x16xf32> to vector<1x16x16xf32>
    %1075 = vector.shape_cast %1074 : vector<1x16x16xf32> to vector<16x16xf32>
    %1076 = vector.broadcast %1073 : f32 to vector<16x16xf32>
    %1077 = arith.mulf %1076, %1075 : vector<16x16xf32>
    %1078 = arith.addf %1072, %1077 : vector<16x16xf32>
    %c176 = arith.constant 176 : index
    %1079 = memref.load %arg2[%c176] : memref<288xf32, #tpu.memory_space<smem>>
    %1080 = vector.extract_strided_slice %11 {offsets = [3, 0, 0], sizes = [1, 16, 16], strides = [1, 1, 1]} : vector<4x16x16xf32> to vector<1x16x16xf32>
    %1081 = vector.shape_cast %1080 : vector<1x16x16xf32> to vector<16x16xf32>
    %1082 = vector.broadcast %1079 : f32 to vector<16x16xf32>
    %1083 = arith.mulf %1082, %1081 : vector<16x16xf32>
    %1084 = arith.addf %1078, %1083 : vector<16x16xf32>
    %c177 = arith.constant 177 : index
    %1085 = memref.load %arg2[%c177] : memref<288xf32, #tpu.memory_space<smem>>
    %1086 = vector.extract_strided_slice %13 {offsets = [3, 0, 0], sizes = [1, 16, 16], strides = [1, 1, 1]} : vector<4x16x16xf32> to vector<1x16x16xf32>
    %1087 = vector.shape_cast %1086 : vector<1x16x16xf32> to vector<16x16xf32>
    %1088 = vector.broadcast %1085 : f32 to vector<16x16xf32>
    %1089 = arith.mulf %1088, %1087 : vector<16x16xf32>
    %1090 = arith.addf %1084, %1089 : vector<16x16xf32>
    %c178 = arith.constant 178 : index
    %1091 = memref.load %arg2[%c178] : memref<288xf32, #tpu.memory_space<smem>>
    %1092 = vector.extract_strided_slice %15 {offsets = [3, 0, 0], sizes = [1, 16, 16], strides = [1, 1, 1]} : vector<4x16x16xf32> to vector<1x16x16xf32>
    %1093 = vector.shape_cast %1092 : vector<1x16x16xf32> to vector<16x16xf32>
    %1094 = vector.broadcast %1091 : f32 to vector<16x16xf32>
    %1095 = arith.mulf %1094, %1093 : vector<16x16xf32>
    %1096 = arith.addf %1090, %1095 : vector<16x16xf32>
    %c179 = arith.constant 179 : index
    %1097 = memref.load %arg2[%c179] : memref<288xf32, #tpu.memory_space<smem>>
    %1098 = vector.extract_strided_slice %17 {offsets = [3, 0, 0], sizes = [1, 16, 16], strides = [1, 1, 1]} : vector<4x16x16xf32> to vector<1x16x16xf32>
    %1099 = vector.shape_cast %1098 : vector<1x16x16xf32> to vector<16x16xf32>
    %1100 = vector.broadcast %1097 : f32 to vector<16x16xf32>
    %1101 = arith.mulf %1100, %1099 : vector<16x16xf32>
    %1102 = arith.addf %1096, %1101 : vector<16x16xf32>
    %cst_40 = arith.constant 0.000000e+00 : f32
    %1103 = vector.broadcast %cst_40 : f32 to vector<16x16xf32>
    %c180 = arith.constant 180 : index
    %1104 = memref.load %arg2[%c180] : memref<288xf32, #tpu.memory_space<smem>>
    %1105 = vector.extract_strided_slice %1 {offsets = [0, 0, 0], sizes = [1, 16, 16], strides = [1, 1, 1]} : vector<4x16x16xf32> to vector<1x16x16xf32>
    %1106 = vector.shape_cast %1105 : vector<1x16x16xf32> to vector<16x16xf32>
    %1107 = vector.broadcast %1104 : f32 to vector<16x16xf32>
    %1108 = arith.mulf %1107, %1106 : vector<16x16xf32>
    %1109 = arith.addf %1103, %1108 : vector<16x16xf32>
    %c181 = arith.constant 181 : index
    %1110 = memref.load %arg2[%c181] : memref<288xf32, #tpu.memory_space<smem>>
    %1111 = vector.extract_strided_slice %3 {offsets = [0, 0, 0], sizes = [1, 16, 16], strides = [1, 1, 1]} : vector<4x16x16xf32> to vector<1x16x16xf32>
    %1112 = vector.shape_cast %1111 : vector<1x16x16xf32> to vector<16x16xf32>
    %1113 = vector.broadcast %1110 : f32 to vector<16x16xf32>
    %1114 = arith.mulf %1113, %1112 : vector<16x16xf32>
    %1115 = arith.addf %1109, %1114 : vector<16x16xf32>
    %c182 = arith.constant 182 : index
    %1116 = memref.load %arg2[%c182] : memref<288xf32, #tpu.memory_space<smem>>
    %1117 = vector.extract_strided_slice %5 {offsets = [0, 0, 0], sizes = [1, 16, 16], strides = [1, 1, 1]} : vector<4x16x16xf32> to vector<1x16x16xf32>
    %1118 = vector.shape_cast %1117 : vector<1x16x16xf32> to vector<16x16xf32>
    %1119 = vector.broadcast %1116 : f32 to vector<16x16xf32>
    %1120 = arith.mulf %1119, %1118 : vector<16x16xf32>
    %1121 = arith.addf %1115, %1120 : vector<16x16xf32>
    %c183 = arith.constant 183 : index
    %1122 = memref.load %arg2[%c183] : memref<288xf32, #tpu.memory_space<smem>>
    %1123 = vector.extract_strided_slice %7 {offsets = [0, 0, 0], sizes = [1, 16, 16], strides = [1, 1, 1]} : vector<4x16x16xf32> to vector<1x16x16xf32>
    %1124 = vector.shape_cast %1123 : vector<1x16x16xf32> to vector<16x16xf32>
    %1125 = vector.broadcast %1122 : f32 to vector<16x16xf32>
    %1126 = arith.mulf %1125, %1124 : vector<16x16xf32>
    %1127 = arith.addf %1121, %1126 : vector<16x16xf32>
    %c184 = arith.constant 184 : index
    %1128 = memref.load %arg2[%c184] : memref<288xf32, #tpu.memory_space<smem>>
    %1129 = vector.extract_strided_slice %9 {offsets = [0, 0, 0], sizes = [1, 16, 16], strides = [1, 1, 1]} : vector<4x16x16xf32> to vector<1x16x16xf32>
    %1130 = vector.shape_cast %1129 : vector<1x16x16xf32> to vector<16x16xf32>
    %1131 = vector.broadcast %1128 : f32 to vector<16x16xf32>
    %1132 = arith.mulf %1131, %1130 : vector<16x16xf32>
    %1133 = arith.addf %1127, %1132 : vector<16x16xf32>
    %c185 = arith.constant 185 : index
    %1134 = memref.load %arg2[%c185] : memref<288xf32, #tpu.memory_space<smem>>
    %1135 = vector.extract_strided_slice %11 {offsets = [0, 0, 0], sizes = [1, 16, 16], strides = [1, 1, 1]} : vector<4x16x16xf32> to vector<1x16x16xf32>
    %1136 = vector.shape_cast %1135 : vector<1x16x16xf32> to vector<16x16xf32>
    %1137 = vector.broadcast %1134 : f32 to vector<16x16xf32>
    %1138 = arith.mulf %1137, %1136 : vector<16x16xf32>
    %1139 = arith.addf %1133, %1138 : vector<16x16xf32>
    %c186 = arith.constant 186 : index
    %1140 = memref.load %arg2[%c186] : memref<288xf32, #tpu.memory_space<smem>>
    %1141 = vector.extract_strided_slice %13 {offsets = [0, 0, 0], sizes = [1, 16, 16], strides = [1, 1, 1]} : vector<4x16x16xf32> to vector<1x16x16xf32>
    %1142 = vector.shape_cast %1141 : vector<1x16x16xf32> to vector<16x16xf32>
    %1143 = vector.broadcast %1140 : f32 to vector<16x16xf32>
    %1144 = arith.mulf %1143, %1142 : vector<16x16xf32>
    %1145 = arith.addf %1139, %1144 : vector<16x16xf32>
    %c187 = arith.constant 187 : index
    %1146 = memref.load %arg2[%c187] : memref<288xf32, #tpu.memory_space<smem>>
    %1147 = vector.extract_strided_slice %15 {offsets = [0, 0, 0], sizes = [1, 16, 16], strides = [1, 1, 1]} : vector<4x16x16xf32> to vector<1x16x16xf32>
    %1148 = vector.shape_cast %1147 : vector<1x16x16xf32> to vector<16x16xf32>
    %1149 = vector.broadcast %1146 : f32 to vector<16x16xf32>
    %1150 = arith.mulf %1149, %1148 : vector<16x16xf32>
    %1151 = arith.addf %1145, %1150 : vector<16x16xf32>
    %c188 = arith.constant 188 : index
    %1152 = memref.load %arg2[%c188] : memref<288xf32, #tpu.memory_space<smem>>
    %1153 = vector.extract_strided_slice %17 {offsets = [0, 0, 0], sizes = [1, 16, 16], strides = [1, 1, 1]} : vector<4x16x16xf32> to vector<1x16x16xf32>
    %1154 = vector.shape_cast %1153 : vector<1x16x16xf32> to vector<16x16xf32>
    %1155 = vector.broadcast %1152 : f32 to vector<16x16xf32>
    %1156 = arith.mulf %1155, %1154 : vector<16x16xf32>
    %1157 = arith.addf %1151, %1156 : vector<16x16xf32>
    %c189 = arith.constant 189 : index
    %1158 = memref.load %arg2[%c189] : memref<288xf32, #tpu.memory_space<smem>>
    %1159 = vector.extract_strided_slice %1 {offsets = [1, 0, 0], sizes = [1, 16, 16], strides = [1, 1, 1]} : vector<4x16x16xf32> to vector<1x16x16xf32>
    %1160 = vector.shape_cast %1159 : vector<1x16x16xf32> to vector<16x16xf32>
    %1161 = vector.broadcast %1158 : f32 to vector<16x16xf32>
    %1162 = arith.mulf %1161, %1160 : vector<16x16xf32>
    %1163 = arith.addf %1157, %1162 : vector<16x16xf32>
    %c190 = arith.constant 190 : index
    %1164 = memref.load %arg2[%c190] : memref<288xf32, #tpu.memory_space<smem>>
    %1165 = vector.extract_strided_slice %3 {offsets = [1, 0, 0], sizes = [1, 16, 16], strides = [1, 1, 1]} : vector<4x16x16xf32> to vector<1x16x16xf32>
    %1166 = vector.shape_cast %1165 : vector<1x16x16xf32> to vector<16x16xf32>
    %1167 = vector.broadcast %1164 : f32 to vector<16x16xf32>
    %1168 = arith.mulf %1167, %1166 : vector<16x16xf32>
    %1169 = arith.addf %1163, %1168 : vector<16x16xf32>
    %c191 = arith.constant 191 : index
    %1170 = memref.load %arg2[%c191] : memref<288xf32, #tpu.memory_space<smem>>
    %1171 = vector.extract_strided_slice %5 {offsets = [1, 0, 0], sizes = [1, 16, 16], strides = [1, 1, 1]} : vector<4x16x16xf32> to vector<1x16x16xf32>
    %1172 = vector.shape_cast %1171 : vector<1x16x16xf32> to vector<16x16xf32>
    %1173 = vector.broadcast %1170 : f32 to vector<16x16xf32>
    %1174 = arith.mulf %1173, %1172 : vector<16x16xf32>
    %1175 = arith.addf %1169, %1174 : vector<16x16xf32>
    %c192 = arith.constant 192 : index
    %1176 = memref.load %arg2[%c192] : memref<288xf32, #tpu.memory_space<smem>>
    %1177 = vector.extract_strided_slice %7 {offsets = [1, 0, 0], sizes = [1, 16, 16], strides = [1, 1, 1]} : vector<4x16x16xf32> to vector<1x16x16xf32>
    %1178 = vector.shape_cast %1177 : vector<1x16x16xf32> to vector<16x16xf32>
    %1179 = vector.broadcast %1176 : f32 to vector<16x16xf32>
    %1180 = arith.mulf %1179, %1178 : vector<16x16xf32>
    %1181 = arith.addf %1175, %1180 : vector<16x16xf32>
    %c193 = arith.constant 193 : index
    %1182 = memref.load %arg2[%c193] : memref<288xf32, #tpu.memory_space<smem>>
    %1183 = vector.extract_strided_slice %9 {offsets = [1, 0, 0], sizes = [1, 16, 16], strides = [1, 1, 1]} : vector<4x16x16xf32> to vector<1x16x16xf32>
    %1184 = vector.shape_cast %1183 : vector<1x16x16xf32> to vector<16x16xf32>
    %1185 = vector.broadcast %1182 : f32 to vector<16x16xf32>
    %1186 = arith.mulf %1185, %1184 : vector<16x16xf32>
    %1187 = arith.addf %1181, %1186 : vector<16x16xf32>
    %c194 = arith.constant 194 : index
    %1188 = memref.load %arg2[%c194] : memref<288xf32, #tpu.memory_space<smem>>
    %1189 = vector.extract_strided_slice %11 {offsets = [1, 0, 0], sizes = [1, 16, 16], strides = [1, 1, 1]} : vector<4x16x16xf32> to vector<1x16x16xf32>
    %1190 = vector.shape_cast %1189 : vector<1x16x16xf32> to vector<16x16xf32>
    %1191 = vector.broadcast %1188 : f32 to vector<16x16xf32>
    %1192 = arith.mulf %1191, %1190 : vector<16x16xf32>
    %1193 = arith.addf %1187, %1192 : vector<16x16xf32>
    %c195 = arith.constant 195 : index
    %1194 = memref.load %arg2[%c195] : memref<288xf32, #tpu.memory_space<smem>>
    %1195 = vector.extract_strided_slice %13 {offsets = [1, 0, 0], sizes = [1, 16, 16], strides = [1, 1, 1]} : vector<4x16x16xf32> to vector<1x16x16xf32>
    %1196 = vector.shape_cast %1195 : vector<1x16x16xf32> to vector<16x16xf32>
    %1197 = vector.broadcast %1194 : f32 to vector<16x16xf32>
    %1198 = arith.mulf %1197, %1196 : vector<16x16xf32>
    %1199 = arith.addf %1193, %1198 : vector<16x16xf32>
    %c196 = arith.constant 196 : index
    %1200 = memref.load %arg2[%c196] : memref<288xf32, #tpu.memory_space<smem>>
    %1201 = vector.extract_strided_slice %15 {offsets = [1, 0, 0], sizes = [1, 16, 16], strides = [1, 1, 1]} : vector<4x16x16xf32> to vector<1x16x16xf32>
    %1202 = vector.shape_cast %1201 : vector<1x16x16xf32> to vector<16x16xf32>
    %1203 = vector.broadcast %1200 : f32 to vector<16x16xf32>
    %1204 = arith.mulf %1203, %1202 : vector<16x16xf32>
    %1205 = arith.addf %1199, %1204 : vector<16x16xf32>
    %c197 = arith.constant 197 : index
    %1206 = memref.load %arg2[%c197] : memref<288xf32, #tpu.memory_space<smem>>
    %1207 = vector.extract_strided_slice %17 {offsets = [1, 0, 0], sizes = [1, 16, 16], strides = [1, 1, 1]} : vector<4x16x16xf32> to vector<1x16x16xf32>
    %1208 = vector.shape_cast %1207 : vector<1x16x16xf32> to vector<16x16xf32>
    %1209 = vector.broadcast %1206 : f32 to vector<16x16xf32>
    %1210 = arith.mulf %1209, %1208 : vector<16x16xf32>
    %1211 = arith.addf %1205, %1210 : vector<16x16xf32>
    %c198 = arith.constant 198 : index
    %1212 = memref.load %arg2[%c198] : memref<288xf32, #tpu.memory_space<smem>>
    %1213 = vector.extract_strided_slice %1 {offsets = [2, 0, 0], sizes = [1, 16, 16], strides = [1, 1, 1]} : vector<4x16x16xf32> to vector<1x16x16xf32>
    %1214 = vector.shape_cast %1213 : vector<1x16x16xf32> to vector<16x16xf32>
    %1215 = vector.broadcast %1212 : f32 to vector<16x16xf32>
    %1216 = arith.mulf %1215, %1214 : vector<16x16xf32>
    %1217 = arith.addf %1211, %1216 : vector<16x16xf32>
    %c199 = arith.constant 199 : index
    %1218 = memref.load %arg2[%c199] : memref<288xf32, #tpu.memory_space<smem>>
    %1219 = vector.extract_strided_slice %3 {offsets = [2, 0, 0], sizes = [1, 16, 16], strides = [1, 1, 1]} : vector<4x16x16xf32> to vector<1x16x16xf32>
    %1220 = vector.shape_cast %1219 : vector<1x16x16xf32> to vector<16x16xf32>
    %1221 = vector.broadcast %1218 : f32 to vector<16x16xf32>
    %1222 = arith.mulf %1221, %1220 : vector<16x16xf32>
    %1223 = arith.addf %1217, %1222 : vector<16x16xf32>
    %c200 = arith.constant 200 : index
    %1224 = memref.load %arg2[%c200] : memref<288xf32, #tpu.memory_space<smem>>
    %1225 = vector.extract_strided_slice %5 {offsets = [2, 0, 0], sizes = [1, 16, 16], strides = [1, 1, 1]} : vector<4x16x16xf32> to vector<1x16x16xf32>
    %1226 = vector.shape_cast %1225 : vector<1x16x16xf32> to vector<16x16xf32>
    %1227 = vector.broadcast %1224 : f32 to vector<16x16xf32>
    %1228 = arith.mulf %1227, %1226 : vector<16x16xf32>
    %1229 = arith.addf %1223, %1228 : vector<16x16xf32>
    %c201 = arith.constant 201 : index
    %1230 = memref.load %arg2[%c201] : memref<288xf32, #tpu.memory_space<smem>>
    %1231 = vector.extract_strided_slice %7 {offsets = [2, 0, 0], sizes = [1, 16, 16], strides = [1, 1, 1]} : vector<4x16x16xf32> to vector<1x16x16xf32>
    %1232 = vector.shape_cast %1231 : vector<1x16x16xf32> to vector<16x16xf32>
    %1233 = vector.broadcast %1230 : f32 to vector<16x16xf32>
    %1234 = arith.mulf %1233, %1232 : vector<16x16xf32>
    %1235 = arith.addf %1229, %1234 : vector<16x16xf32>
    %c202 = arith.constant 202 : index
    %1236 = memref.load %arg2[%c202] : memref<288xf32, #tpu.memory_space<smem>>
    %1237 = vector.extract_strided_slice %9 {offsets = [2, 0, 0], sizes = [1, 16, 16], strides = [1, 1, 1]} : vector<4x16x16xf32> to vector<1x16x16xf32>
    %1238 = vector.shape_cast %1237 : vector<1x16x16xf32> to vector<16x16xf32>
    %1239 = vector.broadcast %1236 : f32 to vector<16x16xf32>
    %1240 = arith.mulf %1239, %1238 : vector<16x16xf32>
    %1241 = arith.addf %1235, %1240 : vector<16x16xf32>
    %c203 = arith.constant 203 : index
    %1242 = memref.load %arg2[%c203] : memref<288xf32, #tpu.memory_space<smem>>
    %1243 = vector.extract_strided_slice %11 {offsets = [2, 0, 0], sizes = [1, 16, 16], strides = [1, 1, 1]} : vector<4x16x16xf32> to vector<1x16x16xf32>
    %1244 = vector.shape_cast %1243 : vector<1x16x16xf32> to vector<16x16xf32>
    %1245 = vector.broadcast %1242 : f32 to vector<16x16xf32>
    %1246 = arith.mulf %1245, %1244 : vector<16x16xf32>
    %1247 = arith.addf %1241, %1246 : vector<16x16xf32>
    %c204 = arith.constant 204 : index
    %1248 = memref.load %arg2[%c204] : memref<288xf32, #tpu.memory_space<smem>>
    %1249 = vector.extract_strided_slice %13 {offsets = [2, 0, 0], sizes = [1, 16, 16], strides = [1, 1, 1]} : vector<4x16x16xf32> to vector<1x16x16xf32>
    %1250 = vector.shape_cast %1249 : vector<1x16x16xf32> to vector<16x16xf32>
    %1251 = vector.broadcast %1248 : f32 to vector<16x16xf32>
    %1252 = arith.mulf %1251, %1250 : vector<16x16xf32>
    %1253 = arith.addf %1247, %1252 : vector<16x16xf32>
    %c205 = arith.constant 205 : index
    %1254 = memref.load %arg2[%c205] : memref<288xf32, #tpu.memory_space<smem>>
    %1255 = vector.extract_strided_slice %15 {offsets = [2, 0, 0], sizes = [1, 16, 16], strides = [1, 1, 1]} : vector<4x16x16xf32> to vector<1x16x16xf32>
    %1256 = vector.shape_cast %1255 : vector<1x16x16xf32> to vector<16x16xf32>
    %1257 = vector.broadcast %1254 : f32 to vector<16x16xf32>
    %1258 = arith.mulf %1257, %1256 : vector<16x16xf32>
    %1259 = arith.addf %1253, %1258 : vector<16x16xf32>
    %c206 = arith.constant 206 : index
    %1260 = memref.load %arg2[%c206] : memref<288xf32, #tpu.memory_space<smem>>
    %1261 = vector.extract_strided_slice %17 {offsets = [2, 0, 0], sizes = [1, 16, 16], strides = [1, 1, 1]} : vector<4x16x16xf32> to vector<1x16x16xf32>
    %1262 = vector.shape_cast %1261 : vector<1x16x16xf32> to vector<16x16xf32>
    %1263 = vector.broadcast %1260 : f32 to vector<16x16xf32>
    %1264 = arith.mulf %1263, %1262 : vector<16x16xf32>
    %1265 = arith.addf %1259, %1264 : vector<16x16xf32>
    %c207 = arith.constant 207 : index
    %1266 = memref.load %arg2[%c207] : memref<288xf32, #tpu.memory_space<smem>>
    %1267 = vector.extract_strided_slice %1 {offsets = [3, 0, 0], sizes = [1, 16, 16], strides = [1, 1, 1]} : vector<4x16x16xf32> to vector<1x16x16xf32>
    %1268 = vector.shape_cast %1267 : vector<1x16x16xf32> to vector<16x16xf32>
    %1269 = vector.broadcast %1266 : f32 to vector<16x16xf32>
    %1270 = arith.mulf %1269, %1268 : vector<16x16xf32>
    %1271 = arith.addf %1265, %1270 : vector<16x16xf32>
    %c208 = arith.constant 208 : index
    %1272 = memref.load %arg2[%c208] : memref<288xf32, #tpu.memory_space<smem>>
    %1273 = vector.extract_strided_slice %3 {offsets = [3, 0, 0], sizes = [1, 16, 16], strides = [1, 1, 1]} : vector<4x16x16xf32> to vector<1x16x16xf32>
    %1274 = vector.shape_cast %1273 : vector<1x16x16xf32> to vector<16x16xf32>
    %1275 = vector.broadcast %1272 : f32 to vector<16x16xf32>
    %1276 = arith.mulf %1275, %1274 : vector<16x16xf32>
    %1277 = arith.addf %1271, %1276 : vector<16x16xf32>
    %c209 = arith.constant 209 : index
    %1278 = memref.load %arg2[%c209] : memref<288xf32, #tpu.memory_space<smem>>
    %1279 = vector.extract_strided_slice %5 {offsets = [3, 0, 0], sizes = [1, 16, 16], strides = [1, 1, 1]} : vector<4x16x16xf32> to vector<1x16x16xf32>
    %1280 = vector.shape_cast %1279 : vector<1x16x16xf32> to vector<16x16xf32>
    %1281 = vector.broadcast %1278 : f32 to vector<16x16xf32>
    %1282 = arith.mulf %1281, %1280 : vector<16x16xf32>
    %1283 = arith.addf %1277, %1282 : vector<16x16xf32>
    %c210 = arith.constant 210 : index
    %1284 = memref.load %arg2[%c210] : memref<288xf32, #tpu.memory_space<smem>>
    %1285 = vector.extract_strided_slice %7 {offsets = [3, 0, 0], sizes = [1, 16, 16], strides = [1, 1, 1]} : vector<4x16x16xf32> to vector<1x16x16xf32>
    %1286 = vector.shape_cast %1285 : vector<1x16x16xf32> to vector<16x16xf32>
    %1287 = vector.broadcast %1284 : f32 to vector<16x16xf32>
    %1288 = arith.mulf %1287, %1286 : vector<16x16xf32>
    %1289 = arith.addf %1283, %1288 : vector<16x16xf32>
    %c211 = arith.constant 211 : index
    %1290 = memref.load %arg2[%c211] : memref<288xf32, #tpu.memory_space<smem>>
    %1291 = vector.extract_strided_slice %9 {offsets = [3, 0, 0], sizes = [1, 16, 16], strides = [1, 1, 1]} : vector<4x16x16xf32> to vector<1x16x16xf32>
    %1292 = vector.shape_cast %1291 : vector<1x16x16xf32> to vector<16x16xf32>
    %1293 = vector.broadcast %1290 : f32 to vector<16x16xf32>
    %1294 = arith.mulf %1293, %1292 : vector<16x16xf32>
    %1295 = arith.addf %1289, %1294 : vector<16x16xf32>
    %c212 = arith.constant 212 : index
    %1296 = memref.load %arg2[%c212] : memref<288xf32, #tpu.memory_space<smem>>
    %1297 = vector.extract_strided_slice %11 {offsets = [3, 0, 0], sizes = [1, 16, 16], strides = [1, 1, 1]} : vector<4x16x16xf32> to vector<1x16x16xf32>
    %1298 = vector.shape_cast %1297 : vector<1x16x16xf32> to vector<16x16xf32>
    %1299 = vector.broadcast %1296 : f32 to vector<16x16xf32>
    %1300 = arith.mulf %1299, %1298 : vector<16x16xf32>
    %1301 = arith.addf %1295, %1300 : vector<16x16xf32>
    %c213 = arith.constant 213 : index
    %1302 = memref.load %arg2[%c213] : memref<288xf32, #tpu.memory_space<smem>>
    %1303 = vector.extract_strided_slice %13 {offsets = [3, 0, 0], sizes = [1, 16, 16], strides = [1, 1, 1]} : vector<4x16x16xf32> to vector<1x16x16xf32>
    %1304 = vector.shape_cast %1303 : vector<1x16x16xf32> to vector<16x16xf32>
    %1305 = vector.broadcast %1302 : f32 to vector<16x16xf32>
    %1306 = arith.mulf %1305, %1304 : vector<16x16xf32>
    %1307 = arith.addf %1301, %1306 : vector<16x16xf32>
    %c214 = arith.constant 214 : index
    %1308 = memref.load %arg2[%c214] : memref<288xf32, #tpu.memory_space<smem>>
    %1309 = vector.extract_strided_slice %15 {offsets = [3, 0, 0], sizes = [1, 16, 16], strides = [1, 1, 1]} : vector<4x16x16xf32> to vector<1x16x16xf32>
    %1310 = vector.shape_cast %1309 : vector<1x16x16xf32> to vector<16x16xf32>
    %1311 = vector.broadcast %1308 : f32 to vector<16x16xf32>
    %1312 = arith.mulf %1311, %1310 : vector<16x16xf32>
    %1313 = arith.addf %1307, %1312 : vector<16x16xf32>
    %c215 = arith.constant 215 : index
    %1314 = memref.load %arg2[%c215] : memref<288xf32, #tpu.memory_space<smem>>
    %1315 = vector.extract_strided_slice %17 {offsets = [3, 0, 0], sizes = [1, 16, 16], strides = [1, 1, 1]} : vector<4x16x16xf32> to vector<1x16x16xf32>
    %1316 = vector.shape_cast %1315 : vector<1x16x16xf32> to vector<16x16xf32>
    %1317 = vector.broadcast %1314 : f32 to vector<16x16xf32>
    %1318 = arith.mulf %1317, %1316 : vector<16x16xf32>
    %1319 = arith.addf %1313, %1318 : vector<16x16xf32>
    %cst_41 = arith.constant 0.000000e+00 : f32
    %1320 = vector.broadcast %cst_41 : f32 to vector<16x16xf32>
    %c216 = arith.constant 216 : index
    %1321 = memref.load %arg2[%c216] : memref<288xf32, #tpu.memory_space<smem>>
    %1322 = vector.extract_strided_slice %1 {offsets = [0, 0, 0], sizes = [1, 16, 16], strides = [1, 1, 1]} : vector<4x16x16xf32> to vector<1x16x16xf32>
    %1323 = vector.shape_cast %1322 : vector<1x16x16xf32> to vector<16x16xf32>
    %1324 = vector.broadcast %1321 : f32 to vector<16x16xf32>
    %1325 = arith.mulf %1324, %1323 : vector<16x16xf32>
    %1326 = arith.addf %1320, %1325 : vector<16x16xf32>
    %c217 = arith.constant 217 : index
    %1327 = memref.load %arg2[%c217] : memref<288xf32, #tpu.memory_space<smem>>
    %1328 = vector.extract_strided_slice %3 {offsets = [0, 0, 0], sizes = [1, 16, 16], strides = [1, 1, 1]} : vector<4x16x16xf32> to vector<1x16x16xf32>
    %1329 = vector.shape_cast %1328 : vector<1x16x16xf32> to vector<16x16xf32>
    %1330 = vector.broadcast %1327 : f32 to vector<16x16xf32>
    %1331 = arith.mulf %1330, %1329 : vector<16x16xf32>
    %1332 = arith.addf %1326, %1331 : vector<16x16xf32>
    %c218 = arith.constant 218 : index
    %1333 = memref.load %arg2[%c218] : memref<288xf32, #tpu.memory_space<smem>>
    %1334 = vector.extract_strided_slice %5 {offsets = [0, 0, 0], sizes = [1, 16, 16], strides = [1, 1, 1]} : vector<4x16x16xf32> to vector<1x16x16xf32>
    %1335 = vector.shape_cast %1334 : vector<1x16x16xf32> to vector<16x16xf32>
    %1336 = vector.broadcast %1333 : f32 to vector<16x16xf32>
    %1337 = arith.mulf %1336, %1335 : vector<16x16xf32>
    %1338 = arith.addf %1332, %1337 : vector<16x16xf32>
    %c219 = arith.constant 219 : index
    %1339 = memref.load %arg2[%c219] : memref<288xf32, #tpu.memory_space<smem>>
    %1340 = vector.extract_strided_slice %7 {offsets = [0, 0, 0], sizes = [1, 16, 16], strides = [1, 1, 1]} : vector<4x16x16xf32> to vector<1x16x16xf32>
    %1341 = vector.shape_cast %1340 : vector<1x16x16xf32> to vector<16x16xf32>
    %1342 = vector.broadcast %1339 : f32 to vector<16x16xf32>
    %1343 = arith.mulf %1342, %1341 : vector<16x16xf32>
    %1344 = arith.addf %1338, %1343 : vector<16x16xf32>
    %c220 = arith.constant 220 : index
    %1345 = memref.load %arg2[%c220] : memref<288xf32, #tpu.memory_space<smem>>
    %1346 = vector.extract_strided_slice %9 {offsets = [0, 0, 0], sizes = [1, 16, 16], strides = [1, 1, 1]} : vector<4x16x16xf32> to vector<1x16x16xf32>
    %1347 = vector.shape_cast %1346 : vector<1x16x16xf32> to vector<16x16xf32>
    %1348 = vector.broadcast %1345 : f32 to vector<16x16xf32>
    %1349 = arith.mulf %1348, %1347 : vector<16x16xf32>
    %1350 = arith.addf %1344, %1349 : vector<16x16xf32>
    %c221 = arith.constant 221 : index
    %1351 = memref.load %arg2[%c221] : memref<288xf32, #tpu.memory_space<smem>>
    %1352 = vector.extract_strided_slice %11 {offsets = [0, 0, 0], sizes = [1, 16, 16], strides = [1, 1, 1]} : vector<4x16x16xf32> to vector<1x16x16xf32>
    %1353 = vector.shape_cast %1352 : vector<1x16x16xf32> to vector<16x16xf32>
    %1354 = vector.broadcast %1351 : f32 to vector<16x16xf32>
    %1355 = arith.mulf %1354, %1353 : vector<16x16xf32>
    %1356 = arith.addf %1350, %1355 : vector<16x16xf32>
    %c222 = arith.constant 222 : index
    %1357 = memref.load %arg2[%c222] : memref<288xf32, #tpu.memory_space<smem>>
    %1358 = vector.extract_strided_slice %13 {offsets = [0, 0, 0], sizes = [1, 16, 16], strides = [1, 1, 1]} : vector<4x16x16xf32> to vector<1x16x16xf32>
    %1359 = vector.shape_cast %1358 : vector<1x16x16xf32> to vector<16x16xf32>
    %1360 = vector.broadcast %1357 : f32 to vector<16x16xf32>
    %1361 = arith.mulf %1360, %1359 : vector<16x16xf32>
    %1362 = arith.addf %1356, %1361 : vector<16x16xf32>
    %c223 = arith.constant 223 : index
    %1363 = memref.load %arg2[%c223] : memref<288xf32, #tpu.memory_space<smem>>
    %1364 = vector.extract_strided_slice %15 {offsets = [0, 0, 0], sizes = [1, 16, 16], strides = [1, 1, 1]} : vector<4x16x16xf32> to vector<1x16x16xf32>
    %1365 = vector.shape_cast %1364 : vector<1x16x16xf32> to vector<16x16xf32>
    %1366 = vector.broadcast %1363 : f32 to vector<16x16xf32>
    %1367 = arith.mulf %1366, %1365 : vector<16x16xf32>
    %1368 = arith.addf %1362, %1367 : vector<16x16xf32>
    %c224 = arith.constant 224 : index
    %1369 = memref.load %arg2[%c224] : memref<288xf32, #tpu.memory_space<smem>>
    %1370 = vector.extract_strided_slice %17 {offsets = [0, 0, 0], sizes = [1, 16, 16], strides = [1, 1, 1]} : vector<4x16x16xf32> to vector<1x16x16xf32>
    %1371 = vector.shape_cast %1370 : vector<1x16x16xf32> to vector<16x16xf32>
    %1372 = vector.broadcast %1369 : f32 to vector<16x16xf32>
    %1373 = arith.mulf %1372, %1371 : vector<16x16xf32>
    %1374 = arith.addf %1368, %1373 : vector<16x16xf32>
    %c225 = arith.constant 225 : index
    %1375 = memref.load %arg2[%c225] : memref<288xf32, #tpu.memory_space<smem>>
    %1376 = vector.extract_strided_slice %1 {offsets = [1, 0, 0], sizes = [1, 16, 16], strides = [1, 1, 1]} : vector<4x16x16xf32> to vector<1x16x16xf32>
    %1377 = vector.shape_cast %1376 : vector<1x16x16xf32> to vector<16x16xf32>
    %1378 = vector.broadcast %1375 : f32 to vector<16x16xf32>
    %1379 = arith.mulf %1378, %1377 : vector<16x16xf32>
    %1380 = arith.addf %1374, %1379 : vector<16x16xf32>
    %c226 = arith.constant 226 : index
    %1381 = memref.load %arg2[%c226] : memref<288xf32, #tpu.memory_space<smem>>
    %1382 = vector.extract_strided_slice %3 {offsets = [1, 0, 0], sizes = [1, 16, 16], strides = [1, 1, 1]} : vector<4x16x16xf32> to vector<1x16x16xf32>
    %1383 = vector.shape_cast %1382 : vector<1x16x16xf32> to vector<16x16xf32>
    %1384 = vector.broadcast %1381 : f32 to vector<16x16xf32>
    %1385 = arith.mulf %1384, %1383 : vector<16x16xf32>
    %1386 = arith.addf %1380, %1385 : vector<16x16xf32>
    %c227 = arith.constant 227 : index
    %1387 = memref.load %arg2[%c227] : memref<288xf32, #tpu.memory_space<smem>>
    %1388 = vector.extract_strided_slice %5 {offsets = [1, 0, 0], sizes = [1, 16, 16], strides = [1, 1, 1]} : vector<4x16x16xf32> to vector<1x16x16xf32>
    %1389 = vector.shape_cast %1388 : vector<1x16x16xf32> to vector<16x16xf32>
    %1390 = vector.broadcast %1387 : f32 to vector<16x16xf32>
    %1391 = arith.mulf %1390, %1389 : vector<16x16xf32>
    %1392 = arith.addf %1386, %1391 : vector<16x16xf32>
    %c228 = arith.constant 228 : index
    %1393 = memref.load %arg2[%c228] : memref<288xf32, #tpu.memory_space<smem>>
    %1394 = vector.extract_strided_slice %7 {offsets = [1, 0, 0], sizes = [1, 16, 16], strides = [1, 1, 1]} : vector<4x16x16xf32> to vector<1x16x16xf32>
    %1395 = vector.shape_cast %1394 : vector<1x16x16xf32> to vector<16x16xf32>
    %1396 = vector.broadcast %1393 : f32 to vector<16x16xf32>
    %1397 = arith.mulf %1396, %1395 : vector<16x16xf32>
    %1398 = arith.addf %1392, %1397 : vector<16x16xf32>
    %c229 = arith.constant 229 : index
    %1399 = memref.load %arg2[%c229] : memref<288xf32, #tpu.memory_space<smem>>
    %1400 = vector.extract_strided_slice %9 {offsets = [1, 0, 0], sizes = [1, 16, 16], strides = [1, 1, 1]} : vector<4x16x16xf32> to vector<1x16x16xf32>
    %1401 = vector.shape_cast %1400 : vector<1x16x16xf32> to vector<16x16xf32>
    %1402 = vector.broadcast %1399 : f32 to vector<16x16xf32>
    %1403 = arith.mulf %1402, %1401 : vector<16x16xf32>
    %1404 = arith.addf %1398, %1403 : vector<16x16xf32>
    %c230 = arith.constant 230 : index
    %1405 = memref.load %arg2[%c230] : memref<288xf32, #tpu.memory_space<smem>>
    %1406 = vector.extract_strided_slice %11 {offsets = [1, 0, 0], sizes = [1, 16, 16], strides = [1, 1, 1]} : vector<4x16x16xf32> to vector<1x16x16xf32>
    %1407 = vector.shape_cast %1406 : vector<1x16x16xf32> to vector<16x16xf32>
    %1408 = vector.broadcast %1405 : f32 to vector<16x16xf32>
    %1409 = arith.mulf %1408, %1407 : vector<16x16xf32>
    %1410 = arith.addf %1404, %1409 : vector<16x16xf32>
    %c231 = arith.constant 231 : index
    %1411 = memref.load %arg2[%c231] : memref<288xf32, #tpu.memory_space<smem>>
    %1412 = vector.extract_strided_slice %13 {offsets = [1, 0, 0], sizes = [1, 16, 16], strides = [1, 1, 1]} : vector<4x16x16xf32> to vector<1x16x16xf32>
    %1413 = vector.shape_cast %1412 : vector<1x16x16xf32> to vector<16x16xf32>
    %1414 = vector.broadcast %1411 : f32 to vector<16x16xf32>
    %1415 = arith.mulf %1414, %1413 : vector<16x16xf32>
    %1416 = arith.addf %1410, %1415 : vector<16x16xf32>
    %c232 = arith.constant 232 : index
    %1417 = memref.load %arg2[%c232] : memref<288xf32, #tpu.memory_space<smem>>
    %1418 = vector.extract_strided_slice %15 {offsets = [1, 0, 0], sizes = [1, 16, 16], strides = [1, 1, 1]} : vector<4x16x16xf32> to vector<1x16x16xf32>
    %1419 = vector.shape_cast %1418 : vector<1x16x16xf32> to vector<16x16xf32>
    %1420 = vector.broadcast %1417 : f32 to vector<16x16xf32>
    %1421 = arith.mulf %1420, %1419 : vector<16x16xf32>
    %1422 = arith.addf %1416, %1421 : vector<16x16xf32>
    %c233 = arith.constant 233 : index
    %1423 = memref.load %arg2[%c233] : memref<288xf32, #tpu.memory_space<smem>>
    %1424 = vector.extract_strided_slice %17 {offsets = [1, 0, 0], sizes = [1, 16, 16], strides = [1, 1, 1]} : vector<4x16x16xf32> to vector<1x16x16xf32>
    %1425 = vector.shape_cast %1424 : vector<1x16x16xf32> to vector<16x16xf32>
    %1426 = vector.broadcast %1423 : f32 to vector<16x16xf32>
    %1427 = arith.mulf %1426, %1425 : vector<16x16xf32>
    %1428 = arith.addf %1422, %1427 : vector<16x16xf32>
    %c234 = arith.constant 234 : index
    %1429 = memref.load %arg2[%c234] : memref<288xf32, #tpu.memory_space<smem>>
    %1430 = vector.extract_strided_slice %1 {offsets = [2, 0, 0], sizes = [1, 16, 16], strides = [1, 1, 1]} : vector<4x16x16xf32> to vector<1x16x16xf32>
    %1431 = vector.shape_cast %1430 : vector<1x16x16xf32> to vector<16x16xf32>
    %1432 = vector.broadcast %1429 : f32 to vector<16x16xf32>
    %1433 = arith.mulf %1432, %1431 : vector<16x16xf32>
    %1434 = arith.addf %1428, %1433 : vector<16x16xf32>
    %c235 = arith.constant 235 : index
    %1435 = memref.load %arg2[%c235] : memref<288xf32, #tpu.memory_space<smem>>
    %1436 = vector.extract_strided_slice %3 {offsets = [2, 0, 0], sizes = [1, 16, 16], strides = [1, 1, 1]} : vector<4x16x16xf32> to vector<1x16x16xf32>
    %1437 = vector.shape_cast %1436 : vector<1x16x16xf32> to vector<16x16xf32>
    %1438 = vector.broadcast %1435 : f32 to vector<16x16xf32>
    %1439 = arith.mulf %1438, %1437 : vector<16x16xf32>
    %1440 = arith.addf %1434, %1439 : vector<16x16xf32>
    %c236 = arith.constant 236 : index
    %1441 = memref.load %arg2[%c236] : memref<288xf32, #tpu.memory_space<smem>>
    %1442 = vector.extract_strided_slice %5 {offsets = [2, 0, 0], sizes = [1, 16, 16], strides = [1, 1, 1]} : vector<4x16x16xf32> to vector<1x16x16xf32>
    %1443 = vector.shape_cast %1442 : vector<1x16x16xf32> to vector<16x16xf32>
    %1444 = vector.broadcast %1441 : f32 to vector<16x16xf32>
    %1445 = arith.mulf %1444, %1443 : vector<16x16xf32>
    %1446 = arith.addf %1440, %1445 : vector<16x16xf32>
    %c237 = arith.constant 237 : index
    %1447 = memref.load %arg2[%c237] : memref<288xf32, #tpu.memory_space<smem>>
    %1448 = vector.extract_strided_slice %7 {offsets = [2, 0, 0], sizes = [1, 16, 16], strides = [1, 1, 1]} : vector<4x16x16xf32> to vector<1x16x16xf32>
    %1449 = vector.shape_cast %1448 : vector<1x16x16xf32> to vector<16x16xf32>
    %1450 = vector.broadcast %1447 : f32 to vector<16x16xf32>
    %1451 = arith.mulf %1450, %1449 : vector<16x16xf32>
    %1452 = arith.addf %1446, %1451 : vector<16x16xf32>
    %c238 = arith.constant 238 : index
    %1453 = memref.load %arg2[%c238] : memref<288xf32, #tpu.memory_space<smem>>
    %1454 = vector.extract_strided_slice %9 {offsets = [2, 0, 0], sizes = [1, 16, 16], strides = [1, 1, 1]} : vector<4x16x16xf32> to vector<1x16x16xf32>
    %1455 = vector.shape_cast %1454 : vector<1x16x16xf32> to vector<16x16xf32>
    %1456 = vector.broadcast %1453 : f32 to vector<16x16xf32>
    %1457 = arith.mulf %1456, %1455 : vector<16x16xf32>
    %1458 = arith.addf %1452, %1457 : vector<16x16xf32>
    %c239 = arith.constant 239 : index
    %1459 = memref.load %arg2[%c239] : memref<288xf32, #tpu.memory_space<smem>>
    %1460 = vector.extract_strided_slice %11 {offsets = [2, 0, 0], sizes = [1, 16, 16], strides = [1, 1, 1]} : vector<4x16x16xf32> to vector<1x16x16xf32>
    %1461 = vector.shape_cast %1460 : vector<1x16x16xf32> to vector<16x16xf32>
    %1462 = vector.broadcast %1459 : f32 to vector<16x16xf32>
    %1463 = arith.mulf %1462, %1461 : vector<16x16xf32>
    %1464 = arith.addf %1458, %1463 : vector<16x16xf32>
    %c240 = arith.constant 240 : index
    %1465 = memref.load %arg2[%c240] : memref<288xf32, #tpu.memory_space<smem>>
    %1466 = vector.extract_strided_slice %13 {offsets = [2, 0, 0], sizes = [1, 16, 16], strides = [1, 1, 1]} : vector<4x16x16xf32> to vector<1x16x16xf32>
    %1467 = vector.shape_cast %1466 : vector<1x16x16xf32> to vector<16x16xf32>
    %1468 = vector.broadcast %1465 : f32 to vector<16x16xf32>
    %1469 = arith.mulf %1468, %1467 : vector<16x16xf32>
    %1470 = arith.addf %1464, %1469 : vector<16x16xf32>
    %c241 = arith.constant 241 : index
    %1471 = memref.load %arg2[%c241] : memref<288xf32, #tpu.memory_space<smem>>
    %1472 = vector.extract_strided_slice %15 {offsets = [2, 0, 0], sizes = [1, 16, 16], strides = [1, 1, 1]} : vector<4x16x16xf32> to vector<1x16x16xf32>
    %1473 = vector.shape_cast %1472 : vector<1x16x16xf32> to vector<16x16xf32>
    %1474 = vector.broadcast %1471 : f32 to vector<16x16xf32>
    %1475 = arith.mulf %1474, %1473 : vector<16x16xf32>
    %1476 = arith.addf %1470, %1475 : vector<16x16xf32>
    %c242 = arith.constant 242 : index
    %1477 = memref.load %arg2[%c242] : memref<288xf32, #tpu.memory_space<smem>>
    %1478 = vector.extract_strided_slice %17 {offsets = [2, 0, 0], sizes = [1, 16, 16], strides = [1, 1, 1]} : vector<4x16x16xf32> to vector<1x16x16xf32>
    %1479 = vector.shape_cast %1478 : vector<1x16x16xf32> to vector<16x16xf32>
    %1480 = vector.broadcast %1477 : f32 to vector<16x16xf32>
    %1481 = arith.mulf %1480, %1479 : vector<16x16xf32>
    %1482 = arith.addf %1476, %1481 : vector<16x16xf32>
    %c243 = arith.constant 243 : index
    %1483 = memref.load %arg2[%c243] : memref<288xf32, #tpu.memory_space<smem>>
    %1484 = vector.extract_strided_slice %1 {offsets = [3, 0, 0], sizes = [1, 16, 16], strides = [1, 1, 1]} : vector<4x16x16xf32> to vector<1x16x16xf32>
    %1485 = vector.shape_cast %1484 : vector<1x16x16xf32> to vector<16x16xf32>
    %1486 = vector.broadcast %1483 : f32 to vector<16x16xf32>
    %1487 = arith.mulf %1486, %1485 : vector<16x16xf32>
    %1488 = arith.addf %1482, %1487 : vector<16x16xf32>
    %c244 = arith.constant 244 : index
    %1489 = memref.load %arg2[%c244] : memref<288xf32, #tpu.memory_space<smem>>
    %1490 = vector.extract_strided_slice %3 {offsets = [3, 0, 0], sizes = [1, 16, 16], strides = [1, 1, 1]} : vector<4x16x16xf32> to vector<1x16x16xf32>
    %1491 = vector.shape_cast %1490 : vector<1x16x16xf32> to vector<16x16xf32>
    %1492 = vector.broadcast %1489 : f32 to vector<16x16xf32>
    %1493 = arith.mulf %1492, %1491 : vector<16x16xf32>
    %1494 = arith.addf %1488, %1493 : vector<16x16xf32>
    %c245 = arith.constant 245 : index
    %1495 = memref.load %arg2[%c245] : memref<288xf32, #tpu.memory_space<smem>>
    %1496 = vector.extract_strided_slice %5 {offsets = [3, 0, 0], sizes = [1, 16, 16], strides = [1, 1, 1]} : vector<4x16x16xf32> to vector<1x16x16xf32>
    %1497 = vector.shape_cast %1496 : vector<1x16x16xf32> to vector<16x16xf32>
    %1498 = vector.broadcast %1495 : f32 to vector<16x16xf32>
    %1499 = arith.mulf %1498, %1497 : vector<16x16xf32>
    %1500 = arith.addf %1494, %1499 : vector<16x16xf32>
    %c246 = arith.constant 246 : index
    %1501 = memref.load %arg2[%c246] : memref<288xf32, #tpu.memory_space<smem>>
    %1502 = vector.extract_strided_slice %7 {offsets = [3, 0, 0], sizes = [1, 16, 16], strides = [1, 1, 1]} : vector<4x16x16xf32> to vector<1x16x16xf32>
    %1503 = vector.shape_cast %1502 : vector<1x16x16xf32> to vector<16x16xf32>
    %1504 = vector.broadcast %1501 : f32 to vector<16x16xf32>
    %1505 = arith.mulf %1504, %1503 : vector<16x16xf32>
    %1506 = arith.addf %1500, %1505 : vector<16x16xf32>
    %c247 = arith.constant 247 : index
    %1507 = memref.load %arg2[%c247] : memref<288xf32, #tpu.memory_space<smem>>
    %1508 = vector.extract_strided_slice %9 {offsets = [3, 0, 0], sizes = [1, 16, 16], strides = [1, 1, 1]} : vector<4x16x16xf32> to vector<1x16x16xf32>
    %1509 = vector.shape_cast %1508 : vector<1x16x16xf32> to vector<16x16xf32>
    %1510 = vector.broadcast %1507 : f32 to vector<16x16xf32>
    %1511 = arith.mulf %1510, %1509 : vector<16x16xf32>
    %1512 = arith.addf %1506, %1511 : vector<16x16xf32>
    %c248 = arith.constant 248 : index
    %1513 = memref.load %arg2[%c248] : memref<288xf32, #tpu.memory_space<smem>>
    %1514 = vector.extract_strided_slice %11 {offsets = [3, 0, 0], sizes = [1, 16, 16], strides = [1, 1, 1]} : vector<4x16x16xf32> to vector<1x16x16xf32>
    %1515 = vector.shape_cast %1514 : vector<1x16x16xf32> to vector<16x16xf32>
    %1516 = vector.broadcast %1513 : f32 to vector<16x16xf32>
    %1517 = arith.mulf %1516, %1515 : vector<16x16xf32>
    %1518 = arith.addf %1512, %1517 : vector<16x16xf32>
    %c249 = arith.constant 249 : index
    %1519 = memref.load %arg2[%c249] : memref<288xf32, #tpu.memory_space<smem>>
    %1520 = vector.extract_strided_slice %13 {offsets = [3, 0, 0], sizes = [1, 16, 16], strides = [1, 1, 1]} : vector<4x16x16xf32> to vector<1x16x16xf32>
    %1521 = vector.shape_cast %1520 : vector<1x16x16xf32> to vector<16x16xf32>
    %1522 = vector.broadcast %1519 : f32 to vector<16x16xf32>
    %1523 = arith.mulf %1522, %1521 : vector<16x16xf32>
    %1524 = arith.addf %1518, %1523 : vector<16x16xf32>
    %c250 = arith.constant 250 : index
    %1525 = memref.load %arg2[%c250] : memref<288xf32, #tpu.memory_space<smem>>
    %1526 = vector.extract_strided_slice %15 {offsets = [3, 0, 0], sizes = [1, 16, 16], strides = [1, 1, 1]} : vector<4x16x16xf32> to vector<1x16x16xf32>
    %1527 = vector.shape_cast %1526 : vector<1x16x16xf32> to vector<16x16xf32>
    %1528 = vector.broadcast %1525 : f32 to vector<16x16xf32>
    %1529 = arith.mulf %1528, %1527 : vector<16x16xf32>
    %1530 = arith.addf %1524, %1529 : vector<16x16xf32>
    %c251 = arith.constant 251 : index
    %1531 = memref.load %arg2[%c251] : memref<288xf32, #tpu.memory_space<smem>>
    %1532 = vector.extract_strided_slice %17 {offsets = [3, 0, 0], sizes = [1, 16, 16], strides = [1, 1, 1]} : vector<4x16x16xf32> to vector<1x16x16xf32>
    %1533 = vector.shape_cast %1532 : vector<1x16x16xf32> to vector<16x16xf32>
    %1534 = vector.broadcast %1531 : f32 to vector<16x16xf32>
    %1535 = arith.mulf %1534, %1533 : vector<16x16xf32>
    %1536 = arith.addf %1530, %1535 : vector<16x16xf32>
    %cst_42 = arith.constant 0.000000e+00 : f32
    %1537 = vector.broadcast %cst_42 : f32 to vector<16x16xf32>
    %c252 = arith.constant 252 : index
    %1538 = memref.load %arg2[%c252] : memref<288xf32, #tpu.memory_space<smem>>
    %1539 = vector.extract_strided_slice %1 {offsets = [0, 0, 0], sizes = [1, 16, 16], strides = [1, 1, 1]} : vector<4x16x16xf32> to vector<1x16x16xf32>
    %1540 = vector.shape_cast %1539 : vector<1x16x16xf32> to vector<16x16xf32>
    %1541 = vector.broadcast %1538 : f32 to vector<16x16xf32>
    %1542 = arith.mulf %1541, %1540 : vector<16x16xf32>
    %1543 = arith.addf %1537, %1542 : vector<16x16xf32>
    %c253 = arith.constant 253 : index
    %1544 = memref.load %arg2[%c253] : memref<288xf32, #tpu.memory_space<smem>>
    %1545 = vector.extract_strided_slice %3 {offsets = [0, 0, 0], sizes = [1, 16, 16], strides = [1, 1, 1]} : vector<4x16x16xf32> to vector<1x16x16xf32>
    %1546 = vector.shape_cast %1545 : vector<1x16x16xf32> to vector<16x16xf32>
    %1547 = vector.broadcast %1544 : f32 to vector<16x16xf32>
    %1548 = arith.mulf %1547, %1546 : vector<16x16xf32>
    %1549 = arith.addf %1543, %1548 : vector<16x16xf32>
    %c254 = arith.constant 254 : index
    %1550 = memref.load %arg2[%c254] : memref<288xf32, #tpu.memory_space<smem>>
    %1551 = vector.extract_strided_slice %5 {offsets = [0, 0, 0], sizes = [1, 16, 16], strides = [1, 1, 1]} : vector<4x16x16xf32> to vector<1x16x16xf32>
    %1552 = vector.shape_cast %1551 : vector<1x16x16xf32> to vector<16x16xf32>
    %1553 = vector.broadcast %1550 : f32 to vector<16x16xf32>
    %1554 = arith.mulf %1553, %1552 : vector<16x16xf32>
    %1555 = arith.addf %1549, %1554 : vector<16x16xf32>
    %c255 = arith.constant 255 : index
    %1556 = memref.load %arg2[%c255] : memref<288xf32, #tpu.memory_space<smem>>
    %1557 = vector.extract_strided_slice %7 {offsets = [0, 0, 0], sizes = [1, 16, 16], strides = [1, 1, 1]} : vector<4x16x16xf32> to vector<1x16x16xf32>
    %1558 = vector.shape_cast %1557 : vector<1x16x16xf32> to vector<16x16xf32>
    %1559 = vector.broadcast %1556 : f32 to vector<16x16xf32>
    %1560 = arith.mulf %1559, %1558 : vector<16x16xf32>
    %1561 = arith.addf %1555, %1560 : vector<16x16xf32>
    %c256 = arith.constant 256 : index
    %1562 = memref.load %arg2[%c256] : memref<288xf32, #tpu.memory_space<smem>>
    %1563 = vector.extract_strided_slice %9 {offsets = [0, 0, 0], sizes = [1, 16, 16], strides = [1, 1, 1]} : vector<4x16x16xf32> to vector<1x16x16xf32>
    %1564 = vector.shape_cast %1563 : vector<1x16x16xf32> to vector<16x16xf32>
    %1565 = vector.broadcast %1562 : f32 to vector<16x16xf32>
    %1566 = arith.mulf %1565, %1564 : vector<16x16xf32>
    %1567 = arith.addf %1561, %1566 : vector<16x16xf32>
    %c257 = arith.constant 257 : index
    %1568 = memref.load %arg2[%c257] : memref<288xf32, #tpu.memory_space<smem>>
    %1569 = vector.extract_strided_slice %11 {offsets = [0, 0, 0], sizes = [1, 16, 16], strides = [1, 1, 1]} : vector<4x16x16xf32> to vector<1x16x16xf32>
    %1570 = vector.shape_cast %1569 : vector<1x16x16xf32> to vector<16x16xf32>
    %1571 = vector.broadcast %1568 : f32 to vector<16x16xf32>
    %1572 = arith.mulf %1571, %1570 : vector<16x16xf32>
    %1573 = arith.addf %1567, %1572 : vector<16x16xf32>
    %c258 = arith.constant 258 : index
    %1574 = memref.load %arg2[%c258] : memref<288xf32, #tpu.memory_space<smem>>
    %1575 = vector.extract_strided_slice %13 {offsets = [0, 0, 0], sizes = [1, 16, 16], strides = [1, 1, 1]} : vector<4x16x16xf32> to vector<1x16x16xf32>
    %1576 = vector.shape_cast %1575 : vector<1x16x16xf32> to vector<16x16xf32>
    %1577 = vector.broadcast %1574 : f32 to vector<16x16xf32>
    %1578 = arith.mulf %1577, %1576 : vector<16x16xf32>
    %1579 = arith.addf %1573, %1578 : vector<16x16xf32>
    %c259 = arith.constant 259 : index
    %1580 = memref.load %arg2[%c259] : memref<288xf32, #tpu.memory_space<smem>>
    %1581 = vector.extract_strided_slice %15 {offsets = [0, 0, 0], sizes = [1, 16, 16], strides = [1, 1, 1]} : vector<4x16x16xf32> to vector<1x16x16xf32>
    %1582 = vector.shape_cast %1581 : vector<1x16x16xf32> to vector<16x16xf32>
    %1583 = vector.broadcast %1580 : f32 to vector<16x16xf32>
    %1584 = arith.mulf %1583, %1582 : vector<16x16xf32>
    %1585 = arith.addf %1579, %1584 : vector<16x16xf32>
    %c260 = arith.constant 260 : index
    %1586 = memref.load %arg2[%c260] : memref<288xf32, #tpu.memory_space<smem>>
    %1587 = vector.extract_strided_slice %17 {offsets = [0, 0, 0], sizes = [1, 16, 16], strides = [1, 1, 1]} : vector<4x16x16xf32> to vector<1x16x16xf32>
    %1588 = vector.shape_cast %1587 : vector<1x16x16xf32> to vector<16x16xf32>
    %1589 = vector.broadcast %1586 : f32 to vector<16x16xf32>
    %1590 = arith.mulf %1589, %1588 : vector<16x16xf32>
    %1591 = arith.addf %1585, %1590 : vector<16x16xf32>
    %c261 = arith.constant 261 : index
    %1592 = memref.load %arg2[%c261] : memref<288xf32, #tpu.memory_space<smem>>
    %1593 = vector.extract_strided_slice %1 {offsets = [1, 0, 0], sizes = [1, 16, 16], strides = [1, 1, 1]} : vector<4x16x16xf32> to vector<1x16x16xf32>
    %1594 = vector.shape_cast %1593 : vector<1x16x16xf32> to vector<16x16xf32>
    %1595 = vector.broadcast %1592 : f32 to vector<16x16xf32>
    %1596 = arith.mulf %1595, %1594 : vector<16x16xf32>
    %1597 = arith.addf %1591, %1596 : vector<16x16xf32>
    %c262 = arith.constant 262 : index
    %1598 = memref.load %arg2[%c262] : memref<288xf32, #tpu.memory_space<smem>>
    %1599 = vector.extract_strided_slice %3 {offsets = [1, 0, 0], sizes = [1, 16, 16], strides = [1, 1, 1]} : vector<4x16x16xf32> to vector<1x16x16xf32>
    %1600 = vector.shape_cast %1599 : vector<1x16x16xf32> to vector<16x16xf32>
    %1601 = vector.broadcast %1598 : f32 to vector<16x16xf32>
    %1602 = arith.mulf %1601, %1600 : vector<16x16xf32>
    %1603 = arith.addf %1597, %1602 : vector<16x16xf32>
    %c263 = arith.constant 263 : index
    %1604 = memref.load %arg2[%c263] : memref<288xf32, #tpu.memory_space<smem>>
    %1605 = vector.extract_strided_slice %5 {offsets = [1, 0, 0], sizes = [1, 16, 16], strides = [1, 1, 1]} : vector<4x16x16xf32> to vector<1x16x16xf32>
    %1606 = vector.shape_cast %1605 : vector<1x16x16xf32> to vector<16x16xf32>
    %1607 = vector.broadcast %1604 : f32 to vector<16x16xf32>
    %1608 = arith.mulf %1607, %1606 : vector<16x16xf32>
    %1609 = arith.addf %1603, %1608 : vector<16x16xf32>
    %c264 = arith.constant 264 : index
    %1610 = memref.load %arg2[%c264] : memref<288xf32, #tpu.memory_space<smem>>
    %1611 = vector.extract_strided_slice %7 {offsets = [1, 0, 0], sizes = [1, 16, 16], strides = [1, 1, 1]} : vector<4x16x16xf32> to vector<1x16x16xf32>
    %1612 = vector.shape_cast %1611 : vector<1x16x16xf32> to vector<16x16xf32>
    %1613 = vector.broadcast %1610 : f32 to vector<16x16xf32>
    %1614 = arith.mulf %1613, %1612 : vector<16x16xf32>
    %1615 = arith.addf %1609, %1614 : vector<16x16xf32>
    %c265 = arith.constant 265 : index
    %1616 = memref.load %arg2[%c265] : memref<288xf32, #tpu.memory_space<smem>>
    %1617 = vector.extract_strided_slice %9 {offsets = [1, 0, 0], sizes = [1, 16, 16], strides = [1, 1, 1]} : vector<4x16x16xf32> to vector<1x16x16xf32>
    %1618 = vector.shape_cast %1617 : vector<1x16x16xf32> to vector<16x16xf32>
    %1619 = vector.broadcast %1616 : f32 to vector<16x16xf32>
    %1620 = arith.mulf %1619, %1618 : vector<16x16xf32>
    %1621 = arith.addf %1615, %1620 : vector<16x16xf32>
    %c266 = arith.constant 266 : index
    %1622 = memref.load %arg2[%c266] : memref<288xf32, #tpu.memory_space<smem>>
    %1623 = vector.extract_strided_slice %11 {offsets = [1, 0, 0], sizes = [1, 16, 16], strides = [1, 1, 1]} : vector<4x16x16xf32> to vector<1x16x16xf32>
    %1624 = vector.shape_cast %1623 : vector<1x16x16xf32> to vector<16x16xf32>
    %1625 = vector.broadcast %1622 : f32 to vector<16x16xf32>
    %1626 = arith.mulf %1625, %1624 : vector<16x16xf32>
    %1627 = arith.addf %1621, %1626 : vector<16x16xf32>
    %c267 = arith.constant 267 : index
    %1628 = memref.load %arg2[%c267] : memref<288xf32, #tpu.memory_space<smem>>
    %1629 = vector.extract_strided_slice %13 {offsets = [1, 0, 0], sizes = [1, 16, 16], strides = [1, 1, 1]} : vector<4x16x16xf32> to vector<1x16x16xf32>
    %1630 = vector.shape_cast %1629 : vector<1x16x16xf32> to vector<16x16xf32>
    %1631 = vector.broadcast %1628 : f32 to vector<16x16xf32>
    %1632 = arith.mulf %1631, %1630 : vector<16x16xf32>
    %1633 = arith.addf %1627, %1632 : vector<16x16xf32>
    %c268 = arith.constant 268 : index
    %1634 = memref.load %arg2[%c268] : memref<288xf32, #tpu.memory_space<smem>>
    %1635 = vector.extract_strided_slice %15 {offsets = [1, 0, 0], sizes = [1, 16, 16], strides = [1, 1, 1]} : vector<4x16x16xf32> to vector<1x16x16xf32>
    %1636 = vector.shape_cast %1635 : vector<1x16x16xf32> to vector<16x16xf32>
    %1637 = vector.broadcast %1634 : f32 to vector<16x16xf32>
    %1638 = arith.mulf %1637, %1636 : vector<16x16xf32>
    %1639 = arith.addf %1633, %1638 : vector<16x16xf32>
    %c269 = arith.constant 269 : index
    %1640 = memref.load %arg2[%c269] : memref<288xf32, #tpu.memory_space<smem>>
    %1641 = vector.extract_strided_slice %17 {offsets = [1, 0, 0], sizes = [1, 16, 16], strides = [1, 1, 1]} : vector<4x16x16xf32> to vector<1x16x16xf32>
    %1642 = vector.shape_cast %1641 : vector<1x16x16xf32> to vector<16x16xf32>
    %1643 = vector.broadcast %1640 : f32 to vector<16x16xf32>
    %1644 = arith.mulf %1643, %1642 : vector<16x16xf32>
    %1645 = arith.addf %1639, %1644 : vector<16x16xf32>
    %c270 = arith.constant 270 : index
    %1646 = memref.load %arg2[%c270] : memref<288xf32, #tpu.memory_space<smem>>
    %1647 = vector.extract_strided_slice %1 {offsets = [2, 0, 0], sizes = [1, 16, 16], strides = [1, 1, 1]} : vector<4x16x16xf32> to vector<1x16x16xf32>
    %1648 = vector.shape_cast %1647 : vector<1x16x16xf32> to vector<16x16xf32>
    %1649 = vector.broadcast %1646 : f32 to vector<16x16xf32>
    %1650 = arith.mulf %1649, %1648 : vector<16x16xf32>
    %1651 = arith.addf %1645, %1650 : vector<16x16xf32>
    %c271 = arith.constant 271 : index
    %1652 = memref.load %arg2[%c271] : memref<288xf32, #tpu.memory_space<smem>>
    %1653 = vector.extract_strided_slice %3 {offsets = [2, 0, 0], sizes = [1, 16, 16], strides = [1, 1, 1]} : vector<4x16x16xf32> to vector<1x16x16xf32>
    %1654 = vector.shape_cast %1653 : vector<1x16x16xf32> to vector<16x16xf32>
    %1655 = vector.broadcast %1652 : f32 to vector<16x16xf32>
    %1656 = arith.mulf %1655, %1654 : vector<16x16xf32>
    %1657 = arith.addf %1651, %1656 : vector<16x16xf32>
    %c272 = arith.constant 272 : index
    %1658 = memref.load %arg2[%c272] : memref<288xf32, #tpu.memory_space<smem>>
    %1659 = vector.extract_strided_slice %5 {offsets = [2, 0, 0], sizes = [1, 16, 16], strides = [1, 1, 1]} : vector<4x16x16xf32> to vector<1x16x16xf32>
    %1660 = vector.shape_cast %1659 : vector<1x16x16xf32> to vector<16x16xf32>
    %1661 = vector.broadcast %1658 : f32 to vector<16x16xf32>
    %1662 = arith.mulf %1661, %1660 : vector<16x16xf32>
    %1663 = arith.addf %1657, %1662 : vector<16x16xf32>
    %c273 = arith.constant 273 : index
    %1664 = memref.load %arg2[%c273] : memref<288xf32, #tpu.memory_space<smem>>
    %1665 = vector.extract_strided_slice %7 {offsets = [2, 0, 0], sizes = [1, 16, 16], strides = [1, 1, 1]} : vector<4x16x16xf32> to vector<1x16x16xf32>
    %1666 = vector.shape_cast %1665 : vector<1x16x16xf32> to vector<16x16xf32>
    %1667 = vector.broadcast %1664 : f32 to vector<16x16xf32>
    %1668 = arith.mulf %1667, %1666 : vector<16x16xf32>
    %1669 = arith.addf %1663, %1668 : vector<16x16xf32>
    %c274 = arith.constant 274 : index
    %1670 = memref.load %arg2[%c274] : memref<288xf32, #tpu.memory_space<smem>>
    %1671 = vector.extract_strided_slice %9 {offsets = [2, 0, 0], sizes = [1, 16, 16], strides = [1, 1, 1]} : vector<4x16x16xf32> to vector<1x16x16xf32>
    %1672 = vector.shape_cast %1671 : vector<1x16x16xf32> to vector<16x16xf32>
    %1673 = vector.broadcast %1670 : f32 to vector<16x16xf32>
    %1674 = arith.mulf %1673, %1672 : vector<16x16xf32>
    %1675 = arith.addf %1669, %1674 : vector<16x16xf32>
    %c275 = arith.constant 275 : index
    %1676 = memref.load %arg2[%c275] : memref<288xf32, #tpu.memory_space<smem>>
    %1677 = vector.extract_strided_slice %11 {offsets = [2, 0, 0], sizes = [1, 16, 16], strides = [1, 1, 1]} : vector<4x16x16xf32> to vector<1x16x16xf32>
    %1678 = vector.shape_cast %1677 : vector<1x16x16xf32> to vector<16x16xf32>
    %1679 = vector.broadcast %1676 : f32 to vector<16x16xf32>
    %1680 = arith.mulf %1679, %1678 : vector<16x16xf32>
    %1681 = arith.addf %1675, %1680 : vector<16x16xf32>
    %c276 = arith.constant 276 : index
    %1682 = memref.load %arg2[%c276] : memref<288xf32, #tpu.memory_space<smem>>
    %1683 = vector.extract_strided_slice %13 {offsets = [2, 0, 0], sizes = [1, 16, 16], strides = [1, 1, 1]} : vector<4x16x16xf32> to vector<1x16x16xf32>
    %1684 = vector.shape_cast %1683 : vector<1x16x16xf32> to vector<16x16xf32>
    %1685 = vector.broadcast %1682 : f32 to vector<16x16xf32>
    %1686 = arith.mulf %1685, %1684 : vector<16x16xf32>
    %1687 = arith.addf %1681, %1686 : vector<16x16xf32>
    %c277 = arith.constant 277 : index
    %1688 = memref.load %arg2[%c277] : memref<288xf32, #tpu.memory_space<smem>>
    %1689 = vector.extract_strided_slice %15 {offsets = [2, 0, 0], sizes = [1, 16, 16], strides = [1, 1, 1]} : vector<4x16x16xf32> to vector<1x16x16xf32>
    %1690 = vector.shape_cast %1689 : vector<1x16x16xf32> to vector<16x16xf32>
    %1691 = vector.broadcast %1688 : f32 to vector<16x16xf32>
    %1692 = arith.mulf %1691, %1690 : vector<16x16xf32>
    %1693 = arith.addf %1687, %1692 : vector<16x16xf32>
    %c278 = arith.constant 278 : index
    %1694 = memref.load %arg2[%c278] : memref<288xf32, #tpu.memory_space<smem>>
    %1695 = vector.extract_strided_slice %17 {offsets = [2, 0, 0], sizes = [1, 16, 16], strides = [1, 1, 1]} : vector<4x16x16xf32> to vector<1x16x16xf32>
    %1696 = vector.shape_cast %1695 : vector<1x16x16xf32> to vector<16x16xf32>
    %1697 = vector.broadcast %1694 : f32 to vector<16x16xf32>
    %1698 = arith.mulf %1697, %1696 : vector<16x16xf32>
    %1699 = arith.addf %1693, %1698 : vector<16x16xf32>
    %c279 = arith.constant 279 : index
    %1700 = memref.load %arg2[%c279] : memref<288xf32, #tpu.memory_space<smem>>
    %1701 = vector.extract_strided_slice %1 {offsets = [3, 0, 0], sizes = [1, 16, 16], strides = [1, 1, 1]} : vector<4x16x16xf32> to vector<1x16x16xf32>
    %1702 = vector.shape_cast %1701 : vector<1x16x16xf32> to vector<16x16xf32>
    %1703 = vector.broadcast %1700 : f32 to vector<16x16xf32>
    %1704 = arith.mulf %1703, %1702 : vector<16x16xf32>
    %1705 = arith.addf %1699, %1704 : vector<16x16xf32>
    %c280 = arith.constant 280 : index
    %1706 = memref.load %arg2[%c280] : memref<288xf32, #tpu.memory_space<smem>>
    %1707 = vector.extract_strided_slice %3 {offsets = [3, 0, 0], sizes = [1, 16, 16], strides = [1, 1, 1]} : vector<4x16x16xf32> to vector<1x16x16xf32>
    %1708 = vector.shape_cast %1707 : vector<1x16x16xf32> to vector<16x16xf32>
    %1709 = vector.broadcast %1706 : f32 to vector<16x16xf32>
    %1710 = arith.mulf %1709, %1708 : vector<16x16xf32>
    %1711 = arith.addf %1705, %1710 : vector<16x16xf32>
    %c281 = arith.constant 281 : index
    %1712 = memref.load %arg2[%c281] : memref<288xf32, #tpu.memory_space<smem>>
    %1713 = vector.extract_strided_slice %5 {offsets = [3, 0, 0], sizes = [1, 16, 16], strides = [1, 1, 1]} : vector<4x16x16xf32> to vector<1x16x16xf32>
    %1714 = vector.shape_cast %1713 : vector<1x16x16xf32> to vector<16x16xf32>
    %1715 = vector.broadcast %1712 : f32 to vector<16x16xf32>
    %1716 = arith.mulf %1715, %1714 : vector<16x16xf32>
    %1717 = arith.addf %1711, %1716 : vector<16x16xf32>
    %c282 = arith.constant 282 : index
    %1718 = memref.load %arg2[%c282] : memref<288xf32, #tpu.memory_space<smem>>
    %1719 = vector.extract_strided_slice %7 {offsets = [3, 0, 0], sizes = [1, 16, 16], strides = [1, 1, 1]} : vector<4x16x16xf32> to vector<1x16x16xf32>
    %1720 = vector.shape_cast %1719 : vector<1x16x16xf32> to vector<16x16xf32>
    %1721 = vector.broadcast %1718 : f32 to vector<16x16xf32>
    %1722 = arith.mulf %1721, %1720 : vector<16x16xf32>
    %1723 = arith.addf %1717, %1722 : vector<16x16xf32>
    %c283 = arith.constant 283 : index
    %1724 = memref.load %arg2[%c283] : memref<288xf32, #tpu.memory_space<smem>>
    %1725 = vector.extract_strided_slice %9 {offsets = [3, 0, 0], sizes = [1, 16, 16], strides = [1, 1, 1]} : vector<4x16x16xf32> to vector<1x16x16xf32>
    %1726 = vector.shape_cast %1725 : vector<1x16x16xf32> to vector<16x16xf32>
    %1727 = vector.broadcast %1724 : f32 to vector<16x16xf32>
    %1728 = arith.mulf %1727, %1726 : vector<16x16xf32>
    %1729 = arith.addf %1723, %1728 : vector<16x16xf32>
    %c284 = arith.constant 284 : index
    %1730 = memref.load %arg2[%c284] : memref<288xf32, #tpu.memory_space<smem>>
    %1731 = vector.extract_strided_slice %11 {offsets = [3, 0, 0], sizes = [1, 16, 16], strides = [1, 1, 1]} : vector<4x16x16xf32> to vector<1x16x16xf32>
    %1732 = vector.shape_cast %1731 : vector<1x16x16xf32> to vector<16x16xf32>
    %1733 = vector.broadcast %1730 : f32 to vector<16x16xf32>
    %1734 = arith.mulf %1733, %1732 : vector<16x16xf32>
    %1735 = arith.addf %1729, %1734 : vector<16x16xf32>
    %c285 = arith.constant 285 : index
    %1736 = memref.load %arg2[%c285] : memref<288xf32, #tpu.memory_space<smem>>
    %1737 = vector.extract_strided_slice %13 {offsets = [3, 0, 0], sizes = [1, 16, 16], strides = [1, 1, 1]} : vector<4x16x16xf32> to vector<1x16x16xf32>
    %1738 = vector.shape_cast %1737 : vector<1x16x16xf32> to vector<16x16xf32>
    %1739 = vector.broadcast %1736 : f32 to vector<16x16xf32>
    %1740 = arith.mulf %1739, %1738 : vector<16x16xf32>
    %1741 = arith.addf %1735, %1740 : vector<16x16xf32>
    %c286 = arith.constant 286 : index
    %1742 = memref.load %arg2[%c286] : memref<288xf32, #tpu.memory_space<smem>>
    %1743 = vector.extract_strided_slice %15 {offsets = [3, 0, 0], sizes = [1, 16, 16], strides = [1, 1, 1]} : vector<4x16x16xf32> to vector<1x16x16xf32>
    %1744 = vector.shape_cast %1743 : vector<1x16x16xf32> to vector<16x16xf32>
    %1745 = vector.broadcast %1742 : f32 to vector<16x16xf32>
    %1746 = arith.mulf %1745, %1744 : vector<16x16xf32>
    %1747 = arith.addf %1741, %1746 : vector<16x16xf32>
    %c287 = arith.constant 287 : index
    %1748 = memref.load %arg2[%c287] : memref<288xf32, #tpu.memory_space<smem>>
    %1749 = vector.extract_strided_slice %17 {offsets = [3, 0, 0], sizes = [1, 16, 16], strides = [1, 1, 1]} : vector<4x16x16xf32> to vector<1x16x16xf32>
    %1750 = vector.shape_cast %1749 : vector<1x16x16xf32> to vector<16x16xf32>
    %1751 = vector.broadcast %1748 : f32 to vector<16x16xf32>
    %1752 = arith.mulf %1751, %1750 : vector<16x16xf32>
    %1753 = arith.addf %1747, %1752 : vector<16x16xf32>
    %1754 = tpu.concatenate %234, %451, %668, %885, %1102, %1319, %1536, %1753 in 0 : vector<16x16xf32>, vector<16x16xf32>, vector<16x16xf32>, vector<16x16xf32>, vector<16x16xf32>, vector<16x16xf32>, vector<16x16xf32>, vector<16x16xf32> -> vector<128x16xf32>
    %c0_43 = arith.constant 0 : index
    %c0_44 = arith.constant 0 : index
    %1755 = vector.load %arg4[%c0_43, %c0_44] : memref<16x32xf32, #tpu.memory_space<vmem>>, vector<16x32xf32>
    %cst_45 = arith.constant dense<0.000000e+00> : vector<128x32xf32>
    %1756 = tpu.matmul %1754, %1755, %cst_45 {dimension_numbers = #tpu.dot_dimension_numbers<[1], [0], [0], [1], [0, 0, 1, 1], [], []>} : vector<128x16xf32>, vector<16x32xf32>, vector<128x32xf32> -> vector<128x32xf32>
    %c0_46 = arith.constant 0 : index
    %c0_47 = arith.constant 0 : index
    %1757 = vector.load %arg3[%c0_46, %c0_47] : memref<32x16xf32, #tpu.memory_space<vmem>>, vector<32x16xf32>
    %1758 = vector.extract_strided_slice %1756 {offsets = [0, 0], sizes = [16, 32], strides = [1, 1]} : vector<128x32xf32> to vector<16x32xf32>
    %cst_48 = arith.constant dense<0.000000e+00> : vector<32x32xf32>
    %1759 = tpu.matmul %1757, %1758, %cst_48 {dimension_numbers = #tpu.dot_dimension_numbers<[1], [0], [0], [1], [0, 0, 1, 1], [], []>} : vector<32x16xf32>, vector<16x32xf32>, vector<32x32xf32> -> vector<32x32xf32>
    %c0_49 = arith.constant 0 : index
    %c0_50 = arith.constant 0 : index
    %c0_51 = arith.constant 0 : index
    %c0_52 = arith.constant 0 : index
    %1760 = vector.load %arg5[%c0_49, %c0_50, %c0_51, %c0_52] : memref<1x8x32x32xf32, #tpu.memory_space<vmem>>, vector<1x1x32x32xf32>
    %1761 = vector.shape_cast %1760 : vector<1x1x32x32xf32> to vector<32x32xf32>
    %1762 = vector.shape_cast %1759 : vector<32x32xf32> to vector<1x1x32x32xf32>
    tpu.vector_store %arg5[%c0_49, %c0_50, %c0_51, %c0_52], %1762 {strides = array<i32>} : memref<1x8x32x32xf32, #tpu.memory_space<vmem>>, vector<1x1x32x32xf32>,
    %1763 = vector.extract_strided_slice %1756 {offsets = [16, 0], sizes = [16, 32], strides = [1, 1]} : vector<128x32xf32> to vector<16x32xf32>
    %cst_53 = arith.constant dense<0.000000e+00> : vector<32x32xf32>
    %1764 = tpu.matmul %1757, %1763, %cst_53 {dimension_numbers = #tpu.dot_dimension_numbers<[1], [0], [0], [1], [0, 0, 1, 1], [], []>} : vector<32x16xf32>, vector<16x32xf32>, vector<32x32xf32> -> vector<32x32xf32>
    %c0_54 = arith.constant 0 : index
    %c1_55 = arith.constant 1 : index
    %c0_56 = arith.constant 0 : index
    %c0_57 = arith.constant 0 : index
    %1765 = vector.load %arg5[%c0_54, %c1_55, %c0_56, %c0_57] : memref<1x8x32x32xf32, #tpu.memory_space<vmem>>, vector<1x1x32x32xf32>
    %1766 = vector.shape_cast %1765 : vector<1x1x32x32xf32> to vector<32x32xf32>
    %1767 = vector.shape_cast %1764 : vector<32x32xf32> to vector<1x1x32x32xf32>
    tpu.vector_store %arg5[%c0_54, %c1_55, %c0_56, %c0_57], %1767 {strides = array<i32>} : memref<1x8x32x32xf32, #tpu.memory_space<vmem>>, vector<1x1x32x32xf32>,
    %1768 = vector.extract_strided_slice %1756 {offsets = [32, 0], sizes = [16, 32], strides = [1, 1]} : vector<128x32xf32> to vector<16x32xf32>
    %cst_58 = arith.constant dense<0.000000e+00> : vector<32x32xf32>
    %1769 = tpu.matmul %1757, %1768, %cst_58 {dimension_numbers = #tpu.dot_dimension_numbers<[1], [0], [0], [1], [0, 0, 1, 1], [], []>} : vector<32x16xf32>, vector<16x32xf32>, vector<32x32xf32> -> vector<32x32xf32>
    %c0_59 = arith.constant 0 : index
    %c2_60 = arith.constant 2 : index
    %c0_61 = arith.constant 0 : index
    %c0_62 = arith.constant 0 : index
    %1770 = vector.load %arg5[%c0_59, %c2_60, %c0_61, %c0_62] : memref<1x8x32x32xf32, #tpu.memory_space<vmem>>, vector<1x1x32x32xf32>
    %1771 = vector.shape_cast %1770 : vector<1x1x32x32xf32> to vector<32x32xf32>
    %1772 = vector.shape_cast %1769 : vector<32x32xf32> to vector<1x1x32x32xf32>
    tpu.vector_store %arg5[%c0_59, %c2_60, %c0_61, %c0_62], %1772 {strides = array<i32>} : memref<1x8x32x32xf32, #tpu.memory_space<vmem>>, vector<1x1x32x32xf32>,
    %1773 = vector.extract_strided_slice %1756 {offsets = [48, 0], sizes = [16, 32], strides = [1, 1]} : vector<128x32xf32> to vector<16x32xf32>
    %cst_63 = arith.constant dense<0.000000e+00> : vector<32x32xf32>
    %1774 = tpu.matmul %1757, %1773, %cst_63 {dimension_numbers = #tpu.dot_dimension_numbers<[1], [0], [0], [1], [0, 0, 1, 1], [], []>} : vector<32x16xf32>, vector<16x32xf32>, vector<32x32xf32> -> vector<32x32xf32>
    %c0_64 = arith.constant 0 : index
    %c3_65 = arith.constant 3 : index
    %c0_66 = arith.constant 0 : index
    %c0_67 = arith.constant 0 : index
    %1775 = vector.load %arg5[%c0_64, %c3_65, %c0_66, %c0_67] : memref<1x8x32x32xf32, #tpu.memory_space<vmem>>, vector<1x1x32x32xf32>
    %1776 = vector.shape_cast %1775 : vector<1x1x32x32xf32> to vector<32x32xf32>
    %1777 = vector.shape_cast %1774 : vector<32x32xf32> to vector<1x1x32x32xf32>
    tpu.vector_store %arg5[%c0_64, %c3_65, %c0_66, %c0_67], %1777 {strides = array<i32>} : memref<1x8x32x32xf32, #tpu.memory_space<vmem>>, vector<1x1x32x32xf32>,
    %1778 = vector.extract_strided_slice %1756 {offsets = [64, 0], sizes = [16, 32], strides = [1, 1]} : vector<128x32xf32> to vector<16x32xf32>
    %cst_68 = arith.constant dense<0.000000e+00> : vector<32x32xf32>
    %1779 = tpu.matmul %1757, %1778, %cst_68 {dimension_numbers = #tpu.dot_dimension_numbers<[1], [0], [0], [1], [0, 0, 1, 1], [], []>} : vector<32x16xf32>, vector<16x32xf32>, vector<32x32xf32> -> vector<32x32xf32>
    %c0_69 = arith.constant 0 : index
    %c4_70 = arith.constant 4 : index
    %c0_71 = arith.constant 0 : index
    %c0_72 = arith.constant 0 : index
    %1780 = vector.load %arg5[%c0_69, %c4_70, %c0_71, %c0_72] : memref<1x8x32x32xf32, #tpu.memory_space<vmem>>, vector<1x1x32x32xf32>
    %1781 = vector.shape_cast %1780 : vector<1x1x32x32xf32> to vector<32x32xf32>
    %1782 = vector.shape_cast %1779 : vector<32x32xf32> to vector<1x1x32x32xf32>
    tpu.vector_store %arg5[%c0_69, %c4_70, %c0_71, %c0_72], %1782 {strides = array<i32>} : memref<1x8x32x32xf32, #tpu.memory_space<vmem>>, vector<1x1x32x32xf32>,
    %1783 = vector.extract_strided_slice %1756 {offsets = [80, 0], sizes = [16, 32], strides = [1, 1]} : vector<128x32xf32> to vector<16x32xf32>
    %cst_73 = arith.constant dense<0.000000e+00> : vector<32x32xf32>
    %1784 = tpu.matmul %1757, %1783, %cst_73 {dimension_numbers = #tpu.dot_dimension_numbers<[1], [0], [0], [1], [0, 0, 1, 1], [], []>} : vector<32x16xf32>, vector<16x32xf32>, vector<32x32xf32> -> vector<32x32xf32>
    %c0_74 = arith.constant 0 : index
    %c5_75 = arith.constant 5 : index
    %c0_76 = arith.constant 0 : index
    %c0_77 = arith.constant 0 : index
    %1785 = vector.load %arg5[%c0_74, %c5_75, %c0_76, %c0_77] : memref<1x8x32x32xf32, #tpu.memory_space<vmem>>, vector<1x1x32x32xf32>
    %1786 = vector.shape_cast %1785 : vector<1x1x32x32xf32> to vector<32x32xf32>
    %1787 = vector.shape_cast %1784 : vector<32x32xf32> to vector<1x1x32x32xf32>
    tpu.vector_store %arg5[%c0_74, %c5_75, %c0_76, %c0_77], %1787 {strides = array<i32>} : memref<1x8x32x32xf32, #tpu.memory_space<vmem>>, vector<1x1x32x32xf32>,
    %1788 = vector.extract_strided_slice %1756 {offsets = [96, 0], sizes = [16, 32], strides = [1, 1]} : vector<128x32xf32> to vector<16x32xf32>
    %cst_78 = arith.constant dense<0.000000e+00> : vector<32x32xf32>
    %1789 = tpu.matmul %1757, %1788, %cst_78 {dimension_numbers = #tpu.dot_dimension_numbers<[1], [0], [0], [1], [0, 0, 1, 1], [], []>} : vector<32x16xf32>, vector<16x32xf32>, vector<32x32xf32> -> vector<32x32xf32>
    %c0_79 = arith.constant 0 : index
    %c6_80 = arith.constant 6 : index
    %c0_81 = arith.constant 0 : index
    %c0_82 = arith.constant 0 : index
    %1790 = vector.load %arg5[%c0_79, %c6_80, %c0_81, %c0_82] : memref<1x8x32x32xf32, #tpu.memory_space<vmem>>, vector<1x1x32x32xf32>
    %1791 = vector.shape_cast %1790 : vector<1x1x32x32xf32> to vector<32x32xf32>
    %1792 = vector.shape_cast %1789 : vector<32x32xf32> to vector<1x1x32x32xf32>
    tpu.vector_store %arg5[%c0_79, %c6_80, %c0_81, %c0_82], %1792 {strides = array<i32>} : memref<1x8x32x32xf32, #tpu.memory_space<vmem>>, vector<1x1x32x32xf32>,
    %1793 = vector.extract_strided_slice %1756 {offsets = [112, 0], sizes = [16, 32], strides = [1, 1]} : vector<128x32xf32> to vector<16x32xf32>
    %cst_83 = arith.constant dense<0.000000e+00> : vector<32x32xf32>
    %1794 = tpu.matmul %1757, %1793, %cst_83 {dimension_numbers = #tpu.dot_dimension_numbers<[1], [0], [0], [1], [0, 0, 1, 1], [], []>} : vector<32x16xf32>, vector<16x32xf32>, vector<32x32xf32> -> vector<32x32xf32>
    %c0_84 = arith.constant 0 : index
    %c7_85 = arith.constant 7 : index
    %c0_86 = arith.constant 0 : index
    %c0_87 = arith.constant 0 : index
    %1795 = vector.load %arg5[%c0_84, %c7_85, %c0_86, %c0_87] : memref<1x8x32x32xf32, #tpu.memory_space<vmem>>, vector<1x1x32x32xf32>
    %1796 = vector.shape_cast %1795 : vector<1x1x32x32xf32> to vector<32x32xf32>
    %1797 = vector.shape_cast %1794 : vector<32x32xf32> to vector<1x1x32x32xf32>
    tpu.vector_store %arg5[%c0_84, %c7_85, %c0_86, %c0_87], %1797 {strides = array<i32>} : memref<1x8x32x32xf32, #tpu.memory_space<vmem>>, vector<1x1x32x32xf32>,
    return
  }
  func.func @transform_0(%arg0: i32) -> (i32, i32, i32, i32) {
    %c0_i32 = arith.constant 0 : i32
    %c0_i32_0 = arith.constant 0 : i32
    %c0_i32_1 = arith.constant 0 : i32
    %c0_i32_2 = arith.constant 0 : i32
    return %arg0, %c0_i32, %c0_i32_0, %c0_i32_1 : i32, i32, i32, i32
  }
  func.func @transform_1(%arg0: i32) -> i32 {
    %c0_i32 = arith.constant 0 : i32
    %c0_i32_0 = arith.constant 0 : i32
    return %c0_i32 : i32
  }
  func.func @transform_2(%arg0: i32) -> (i32, i32) {
    %c0_i32 = arith.constant 0 : i32
    %c0_i32_0 = arith.constant 0 : i32
    %c0_i32_1 = arith.constant 0 : i32
    return %c0_i32, %c0_i32_0 : i32, i32
  }
  func.func @transform_3(%arg0: i32) -> (i32, i32) {
    %c0_i32 = arith.constant 0 : i32
    %c0_i32_0 = arith.constant 0 : i32
    %c0_i32_1 = arith.constant 0 : i32
    return %c0_i32, %c0_i32_0 : i32, i32
  }
  func.func @transform_4(%arg0: i32) -> (i32, i32, i32, i32) {
    %c0_i32 = arith.constant 0 : i32
    %c0_i32_0 = arith.constant 0 : i32
    %c0_i32_1 = arith.constant 0 : i32
    %c0_i32_2 = arith.constant 0 : i32
    return %arg0, %c0_i32, %c0_i32_0, %c0_i32_1 : i32, i32, i32, i32
  }
}

</mosaic_0001>

<llo_original>
// kernel: tpu_custom_call.1
$region0: #{tpu_custom_call.1}
  #allocation0 [shape = 'u32[]', space=smem, size = 0x4, offset = 0x4, fixed_abs, tag = 'smem constant byte address 0x4 - core index']
  #allocation1 [shape = 'u32[72,128]{1,0:T(1,128)}', space=vmem, size = 0x9000, scoped, tag = 'internal scratch']
  %s0 = inlined_call_operand.vmem [shape: f32[2,4,18,18], index: 0, kind: input, shape index: {}]
  %s1 = inlined_call_operand.vmem [shape: f32[288], index: 1, kind: input, shape index: {}]
  %s2 = inlined_call_operand.vmem [shape: f32[32,16], index: 2, kind: input, shape index: {}]
  %s3 = inlined_call_operand.vmem [shape: f32[16,32], index: 3, kind: input, shape index: {}]
  %s4 = inlined_call_operand.hbm [shape: f32[2,8,32,32], index: 4, kind: output, shape index: {}]
  %s5 = sld [smem:[#allocation0]]
  $region53: #{tpu_custom_call.1} parent=0
    _
  %s7 = ssub.s32 1, %s5
  %s8 = scalar_select 0, %s7, %s5
  $region1: #{tpu_custom_call.1} parent=0
    #allocation2 [shape = 'u8[1536]{0}', space=smem, size = 0x600, scoped, tag = 'input window, operand 1, single buffered']
    #allocation3 [shape = 's32[2]{0}', space=sflag, size = 0x8, scoped, tag = 'scoped memory for tpu_custom_call.1']
    #allocation4 [shape = 's32[2]{0}', space=sflag, size = 0x8, scoped, tag = 'scoped memory for tpu_custom_call.1']
    #allocation5 [shape = 'u8[262144]{0}', space=vmem, size = 0x40000, scoped, tag = 'output window, operand 0']
    %9 = vsyncpa [#allocation4], 0
    %10 = vsyncpa [#allocation3], 0
    %s11 = scalar_lea.sflag [#allocation3], 1
    %12 = vsyncpa %s11, 0
    loop: start=0, step=1, limit=4
    $region2: #{tpu_custom_call.1} parent=1 // loop_pre_header
      _
    $region3: #{tpu_custom_call.1} parent=1 // loop_header
      %s14 = sphi 0, %s18
      %p15 = scmp.ge.s32.totalorder %s14, 4
      %s24 = sphi 0, %s26
      %s27 = sphi 0, %s24
      %s28 = sphi 0, %s27
      %s44 = sphi 0, %s28
      %s48 = sphi 0, %s48
      %s50 = sphi 0, %s48
      %s51 = sphi 0, %s50
      %s65 = sphi 0, %s51
      %s69 = sphi 0, %s69
      %s71 = sphi 0, %s69
      %s72 = sphi 0, %s71
      %s86 = sphi 0, %s72
      %s90 = sphi 0, %s90
      %s92 = sphi 0, %s90
      %s93 = sphi 0, %s92
      %s107 = sphi 0, %s93
      %s113 = sphi 0, %s115
      %s116 = sphi 0, %s113
      %s117 = sphi 0, %s116
      %s133 = sphi 0, %s117
    $region4: #{tpu_custom_call.1} parent=1 // loop_header_branch
      %17 = sbr.rel (%p15) target = $region8
    $region5: #{tpu_custom_call.1} parent=1 // loop_body
      %s19 = ssub.s32 %s14, 1
      %s20 = ssub.s32 %s14, 2
      %s21 = sadd.s32 %s14, 1
      %s22 = ssub.s32 %s14, %s21
      %p23 = scmp.eq.s32.totalorder %s22, 0
      %s25 = sadd.s32 %s24, 1
      %s26 = scalar_select %p23, %s24, %s25
      %p29 = pneg %p23
      %p30 = scmp.eq.s32.totalorder %s14, 1
      %p31 = por %p29, %p30
      %p32 = scmp.ne.s32.totalorder %s24, %s27
      %p33 = scmp.eq.s32.totalorder %s14, 0
      %p34 = por %p32, %p33
      %p35 = scmp.ne.s32.totalorder %s24, %s27
      %p36 = scmp.eq.s32.totalorder %s19, 1
      %p37 = por %p35, %p36
      %p38 = scmp.ne.s32.totalorder %s27, %s28
      %p39 = scmp.eq.s32.totalorder %s19, 0
      %p40 = por %p38, %p39
      %p41 = scmp.ne.s32.totalorder %s27, %s28
      %p42 = scmp.eq.s32.totalorder %s20, 1
      %p43 = por %p41, %p42
      %p45 = scmp.ne.s32.totalorder %s28, %s44
      %p46 = scmp.eq.s32.totalorder %s20, 0
      %p47 = por %p45, %p46
      %s49 = sadd.s32 %s48, 1
      %p52 = scmp.eq.s32.totalorder %s14, 1
      %p53 = scmp.ne.s32.totalorder %s48, %s50
      %p54 = scmp.eq.s32.totalorder %s14, 0
      %p55 = por %p53, %p54
      %p56 = scmp.ne.s32.totalorder %s48, %s50
      %p57 = scmp.eq.s32.totalorder %s19, 1
      %p58 = por %p56, %p57
      %p59 = scmp.ne.s32.totalorder %s50, %s51
      %p60 = scmp.eq.s32.totalorder %s19, 0
      %p61 = por %p59, %p60
      %p62 = scmp.ne.s32.totalorder %s50, %s51
      %p63 = scmp.eq.s32.totalorder %s20, 1
      %p64 = por %p62, %p63
      %p66 = scmp.ne.s32.totalorder %s51, %s65
      %p67 = scmp.eq.s32.totalorder %s20, 0
      %p68 = por %p66, %p67
      %s70 = sadd.s32 %s69, 1
      %p73 = scmp.eq.s32.totalorder %s14, 1
      %p74 = scmp.ne.s32.totalorder %s69, %s71
      %p75 = scmp.eq.s32.totalorder %s14, 0
      %p76 = por %p74, %p75
      %p77 = scmp.ne.s32.totalorder %s69, %s71
      %p78 = scmp.eq.s32.totalorder %s19, 1
      %p79 = por %p77, %p78
      %p80 = scmp.ne.s32.totalorder %s71, %s72
      %p81 = scmp.eq.s32.totalorder %s19, 0
      %p82 = por %p80, %p81
      %p83 = scmp.ne.s32.totalorder %s71, %s72
      %p84 = scmp.eq.s32.totalorder %s20, 1
      %p85 = por %p83, %p84
      %p87 = scmp.ne.s32.totalorder %s72, %s86
      %p88 = scmp.eq.s32.totalorder %s20, 0
      %p89 = por %p87, %p88
      %s91 = sadd.s32 %s90, 1
      %p94 = scmp.eq.s32.totalorder %s14, 1
      %p95 = scmp.ne.s32.totalorder %s90, %s92
      %p96 = scmp.eq.s32.totalorder %s14, 0
      %p97 = por %p95, %p96
      %p98 = scmp.ne.s32.totalorder %s90, %s92
      %p99 = scmp.eq.s32.totalorder %s19, 1
      %p100 = por %p98, %p99
      %p101 = scmp.ne.s32.totalorder %s92, %s93
      %p102 = scmp.eq.s32.totalorder %s19, 0
      %p103 = por %p101, %p102
      %p104 = scmp.ne.s32.totalorder %s92, %s93
      %p105 = scmp.eq.s32.totalorder %s20, 1
      %p106 = por %p104, %p105
      %p108 = scmp.ne.s32.totalorder %s93, %s107
      %p109 = scmp.eq.s32.totalorder %s20, 0
      %p110 = por %p108, %p109
      %s111 = ssub.s32 %s14, %s21
      %p112 = scmp.eq.s32.totalorder %s111, 0
      %s114 = sadd.s32 %s113, 1
      %s115 = scalar_select %p112, %s113, %s114
      %p118 = pneg %p112
      %p119 = scmp.eq.s32.totalorder %s14, 1
      %p120 = por %p118, %p119
      %p121 = scmp.ne.s32.totalorder %s113, %s116
      %p122 = scmp.eq.s32.totalorder %s14, 0
      %p123 = por %p121, %p122
      %p124 = scmp.ne.s32.totalorder %s113, %s116
      %p125 = scmp.eq.s32.totalorder %s19, 1
      %p126 = por %p124, %p125
      %p127 = scmp.ne.s32.totalorder %s116, %s117
      %p128 = scmp.eq.s32.totalorder %s19, 0
      %p129 = por %p127, %p128
      %p130 = scmp.ne.s32.totalorder %s116, %s117
      %p131 = scmp.eq.s32.totalorder %s20, 1
      %p132 = por %p130, %p131
      %p134 = scmp.ne.s32.totalorder %s117, %s133
      %p135 = scmp.eq.s32.totalorder %s20, 0
      %p136 = por %p134, %p135
      %p137 = scmp.le.s32.totalorder 1, %s14
      %p138 = scmp.lt.s32.totalorder %s14, 3
      %p139 = pnand %p137, %p138
      %p140 = pneg %p139
      // Predicated region
      $region9: #{tpu_custom_call.1} parent=5 // pred_check
        _
      $region10: #{tpu_custom_call.1} parent=5 // pred_check_branch
        %142 = sbr.rel (%p139) target = $region12
      $region11: #{tpu_custom_call.1} parent=5 // pred_region
        %s143 = ssub.s32 %s14, 1
        // Predicated region
        $region13: #{tpu_custom_call.1} parent=11 // pred_check
          %p144 = pneg %p61
        $region14: #{tpu_custom_call.1} parent=11 // pred_check_branch
          %146 = sbr.rel (%p144) target = $region16
        $region15: #{tpu_custom_call.1} parent=11 // pred_region
          %148 = vsyncadd [#allocation4], 0
          %s150 = sshll.u32 %s1, 4
          %s151 = int_to_ptr.vmem [resolvable:$true] %s150
          %153 = dma.vmem_to_smem %s151, 48, [#allocation2], [#allocation4]
        $region16: #{tpu_custom_call.1} parent=11 // pred_fallthru
          _
        // Predicated region
        $region17: #{tpu_custom_call.1} parent=11 // pred_check
          %p154 = pneg %p82
        $region18: #{tpu_custom_call.1} parent=11 // pred_check_branch
          %156 = sbr.rel (%p154) target = $region20
        $region19: #{tpu_custom_call.1} parent=11 // pred_region
          _
        $region20: #{tpu_custom_call.1} parent=11 // pred_fallthru
          _
        // Predicated region
        $region21: #{tpu_custom_call.1} parent=11 // pred_check
          %p157 = pneg %p103
        $region22: #{tpu_custom_call.1} parent=11 // pred_check_branch
          %159 = sbr.rel (%p157) target = $region24
        $region23: #{tpu_custom_call.1} parent=11 // pred_region
          _
        $region24: #{tpu_custom_call.1} parent=11 // pred_fallthru
          _
      $region12: #{tpu_custom_call.1} parent=5 // pred_fallthru
        _
      %p160 = scmp.lt.s32.totalorder %s14, 2
      // Predicated region
      $region25: #{tpu_custom_call.1} parent=5 // pred_check
        %p161 = pneg %p160
      $region26: #{tpu_custom_call.1} parent=5 // pred_check_branch
        %163 = sbr.rel (%p161) target = $region28
      $region27: #{tpu_custom_call.1} parent=5 // pred_region
        // Predicated region
        $region29: #{tpu_custom_call.1} parent=27 // pred_check
          %p164 = pneg %p34
        $region30: #{tpu_custom_call.1} parent=27 // pred_check_branch
          %166 = sbr.rel (%p164) target = $region32
        $region31: #{tpu_custom_call.1} parent=27 // pred_region
          %p167 = scmp.lt.s32.totalorder %s14, 1
          %s168 = scalar_select %p167, %s14, 1
          %s169 = smul.addr %s168, 12
          %s170 = smul.addr %s169, 8
          %s171 = scalar_lea.vmem %s0, %s170
        $region32: #{tpu_custom_call.1} parent=27 // pred_fallthru
          _
      $region28: #{tpu_custom_call.1} parent=5 // pred_fallthru
        _
      %p172 = scmp.le.s32.totalorder 1, %s14
      %p173 = scmp.lt.s32.totalorder %s14, 3
      %p174 = pnand %p172, %p173
      %p175 = pneg %p174
      // Predicated region
      $region33: #{tpu_custom_call.1} parent=5 // pred_check
        _
      $region34: #{tpu_custom_call.1} parent=5 // pred_check_branch
        %177 = sbr.rel (%p174) target = $region36
      $region35: #{tpu_custom_call.1} parent=5 // pred_region
        %s178 = ssub.s32 %s14, 1
        // Predicated region
        $region37: #{tpu_custom_call.1} parent=35 // pred_check
          %p179 = pneg %p61
        $region38: #{tpu_custom_call.1} parent=35 // pred_check_branch
          %181 = sbr.rel (%p179) target = $region40
        $region39: #{tpu_custom_call.1} parent=35 // pred_region
          %183 = dma.done [#allocation4], 48
        $region40: #{tpu_custom_call.1} parent=35 // pred_fallthru
          _
        %184 = sfence
        %p185 = scmp.lt.s32.totalorder %s19, 1
        %s186 = scalar_select %p185, %s19, 1
        %s187 = smul.addr %s186, 12
        %s188 = smul.addr %s187, 8
        %s189 = scalar_lea.vmem %s0, %s188
        %p190 = pneg %p40
        %p191 = pneg %p37
        %p192 = pneg %p61
        %p193 = pneg %p58
        %p194 = pneg %p82
        %p195 = pneg %p79
        %p196 = pneg %p103
        %p197 = pneg %p100
        %p198 = pneg %p129
        %p199 = pneg %p126
        %s200 = sand.u32 %s116, 1
        %s201 = scalar_lea.sflag [#allocation3], %s200
        %s202 = sand.u32 %s116, 1
        %s203 = smul.addr %s202, 256
        %s204 = scalar_lea.vmem [#allocation5], %s203
        %p205 = scmp.lt.s32.totalorder %s19, 1
        %s206 = scalar_select %p205, %s19, 1
        %s207 = smul.addr %s206, 12
        %s208 = smul.addr %s207, 8
        %s209 = scalar_lea.vmem %s0, %s208
        %v210 = vld [vmem:[%s209] sm:$0xff]
        %v211 = vld [vmem:[%s209 + $0x8] sm:$0xff]
        %v212 = vld [vmem:[%s209 + $0x18] sm:$0xff]
        %v213 = vld [vmem:[%s209 + $0x20] sm:$0xff]
        %v214 = vld [vmem:[%s209 + $0x30] sm:$0xff]
        %v215 = vld [vmem:[%s209 + $0x38] sm:$0xff]
        %v216 = vld [vmem:[%s209 + $0x48] sm:$0xff]
        %v217 = vld [vmem:[%s209 + $0x50] sm:$0xff]
        %v218 = vld [vmem:[%s209 + $0x1] sm:$0xff]
        %v219 = vld [vmem:[%s209 + $0x9] sm:$0xff]
        %v220 = vld [vmem:[%s209 + $0x19] sm:$0xff]
        %v221 = vld [vmem:[%s209 + $0x21] sm:$0xff]
        %v222 = vld [vmem:[%s209 + $0x31] sm:$0xff]
        %v223 = vld [vmem:[%s209 + $0x39] sm:$0xff]
        %v224 = vld [vmem:[%s209 + $0x49] sm:$0xff]
        %v225 = vld [vmem:[%s209 + $0x51] sm:$0xff]
        %v226 = vld [vmem:[%s209 + $0x2] sm:$0xff]
        %v227 = vld [vmem:[%s209 + $0xa] sm:$0xff]
        %v228 = vld [vmem:[%s209 + $0x1a] sm:$0xff]
        %v229 = vld [vmem:[%s209 + $0x22] sm:$0xff]
        %v230 = vld [vmem:[%s209 + $0x32] sm:$0xff]
        %v231 = vld [vmem:[%s209 + $0x3a] sm:$0xff]
        %v232 = vld [vmem:[%s209 + $0x4a] sm:$0xff]
        %v233 = vld [vmem:[%s209 + $0x52] sm:$0xff]
        %s234 = sld [smem:[#allocation2]]
        %v235 = vstv %s234
        %v236 = vmul.f32 %v235, %v210
        %v237 = vmul.f32 %v235, %v211
        %v238 = vadd.f32 %v236, 0.0
        %v239 = vadd.f32 %v237, 0.0
        %s240 = sld [smem:[#allocation2 + $0x1]]
        %v241 = vstv %s240
        %v242 = vmul.f32 %v241, %v210
        %v243 = vmul.f32 %v241, %v211
        %246 = vrot.lane.b32.xlu0 %v242, 127
        %v247 = vpop.permute.xlu0 %246
        %248 = vrot.lane.b32.xlu0 %v243, 127
        %v249 = vpop.permute.xlu0 %248
        %v252 = vadd.f32 %v238, %v247
        %v253 = vadd.f32 %v239, %v249
        %s254 = sld [smem:[#allocation2 + $0x2]]
        %v255 = vstv %s254
        %v256 = vmul.f32 %v255, %v210
        %v257 = vmul.f32 %v255, %v211
        %260 = vrot.lane.b32.xlu0 %v256, 126
        %v261 = vpop.permute.xlu0 %260
        %262 = vrot.lane.b32.xlu0 %v257, 126
        %v263 = vpop.permute.xlu0 %262
        %v266 = vadd.f32 %v252, %v261
        %v267 = vadd.f32 %v253, %v263
        %s268 = sld [smem:[#allocation2 + $0x3]]
        %v269 = vstv %s268
        %v270 = vmul.f32 %v269, %v218
        %v271 = vmul.f32 %v269, %v219
        %v272 = vadd.f32 %v266, %v270
        %v273 = vadd.f32 %v267, %v271
        %s274 = sld [smem:[#allocation2 + $0x4]]
        %v275 = vstv %s274
        %v276 = vmul.f32 %v275, %v218
        %v277 = vmul.f32 %v275, %v219
        %280 = vrot.lane.b32.xlu0 %v276, 127
        %v281 = vpop.permute.xlu0 %280
        %282 = vrot.lane.b32.xlu0 %v277, 127
        %v283 = vpop.permute.xlu0 %282
        %v286 = vadd.f32 %v272, %v281
        %v287 = vadd.f32 %v273, %v283
        %s288 = sld [smem:[#allocation2 + $0x5]]
        %v289 = vstv %s288
        %v290 = vmul.f32 %v289, %v218
        %v291 = vmul.f32 %v289, %v219
        %294 = vrot.lane.b32.xlu0 %v290, 126
        %v295 = vpop.permute.xlu0 %294
        %296 = vrot.lane.b32.xlu0 %v291, 126
        %v297 = vpop.permute.xlu0 %296
        %v300 = vadd.f32 %v286, %v295
        %v301 = vadd.f32 %v287, %v297
        %s302 = sld [smem:[#allocation2 + $0x6]]
        %v303 = vstv %s302
        %v304 = vmul.f32 %v303, %v226
        %v305 = vmul.f32 %v303, %v227
        %v306 = vadd.f32 %v300, %v304
        %v307 = vadd.f32 %v301, %v305
        %s308 = sld [smem:[#allocation2 + $0x7]]
        %v309 = vstv %s308
        %v310 = vmul.f32 %v309, %v226
        %v311 = vmul.f32 %v309, %v227
        %314 = vrot.lane.b32.xlu0 %v310, 127
        %v315 = vpop.permute.xlu0 %314
        %316 = vrot.lane.b32.xlu0 %v311, 127
        %v317 = vpop.permute.xlu0 %316
        %v320 = vadd.f32 %v306, %v315
        %v321 = vadd.f32 %v307, %v317
        %s322 = sld [smem:[#allocation2 + $0x8]]
        %v323 = vstv %s322
        %v324 = vmul.f32 %v323, %v226
        %v325 = vmul.f32 %v323, %v227
        %328 = vrot.lane.b32.xlu0 %v324, 126
        %v329 = vpop.permute.xlu0 %328
        %330 = vrot.lane.b32.xlu0 %v325, 126
        %v331 = vpop.permute.xlu0 %330
        %v334 = vadd.f32 %v320, %v329
        %v335 = vadd.f32 %v321, %v331
        %s336 = sld [smem:[#allocation2 + $0x9]]
        %v337 = vstv %s336
        %v338 = vmul.f32 %v337, %v212
        %v339 = vmul.f32 %v337, %v213
        %v340 = vadd.f32 %v334, %v338
        %v341 = vadd.f32 %v335, %v339
        %s342 = sld [smem:[#allocation2 + $0xa]]
        %v343 = vstv %s342
        %v344 = vmul.f32 %v343, %v212
        %v345 = vmul.f32 %v343, %v213
        %348 = vrot.lane.b32.xlu0 %v344, 127
        %v349 = vpop.permute.xlu0 %348
        %350 = vrot.lane.b32.xlu0 %v345, 127
        %v351 = vpop.permute.xlu0 %350
        %v354 = vadd.f32 %v340, %v349
        %v355 = vadd.f32 %v341, %v351
        %s356 = sld [smem:[#allocation2 + $0xb]]
        %v357 = vstv %s356
        %v358 = vmul.f32 %v357, %v212
        %v359 = vmul.f32 %v357, %v213
        %362 = vrot.lane.b32.xlu0 %v358, 126
        %v363 = vpop.permute.xlu0 %362
        %364 = vrot.lane.b32.xlu0 %v359, 126
        %v365 = vpop.permute.xlu0 %364
        %v368 = vadd.f32 %v354, %v363
        %v369 = vadd.f32 %v355, %v365
        %s370 = sld [smem:[#allocation2 + $0xc]]
        %v371 = vstv %s370
        %v372 = vmul.f32 %v371, %v220
        %v373 = vmul.f32 %v371, %v221
        %v374 = vadd.f32 %v368, %v372
        %v375 = vadd.f32 %v369, %v373
        %s376 = sld [smem:[#allocation2 + $0xd]]
        %v377 = vstv %s376
        %v378 = vmul.f32 %v377, %v220
        %v379 = vmul.f32 %v377, %v221
        %382 = vrot.lane.b32.xlu0 %v378, 127
        %v383 = vpop.permute.xlu0 %382
        %384 = vrot.lane.b32.xlu0 %v379, 127
        %v385 = vpop.permute.xlu0 %384
        %v388 = vadd.f32 %v374, %v383
        %v389 = vadd.f32 %v375, %v385
        %s390 = sld [smem:[#allocation2 + $0xe]]
        %v391 = vstv %s390
        %v392 = vmul.f32 %v391, %v220
        %v393 = vmul.f32 %v391, %v221
        %396 = vrot.lane.b32.xlu0 %v392, 126
        %v397 = vpop.permute.xlu0 %396
        %398 = vrot.lane.b32.xlu0 %v393, 126
        %v399 = vpop.permute.xlu0 %398
        %v402 = vadd.f32 %v388, %v397
        %v403 = vadd.f32 %v389, %v399
        %s404 = sld [smem:[#allocation2 + $0xf]]
        %v405 = vstv %s404
        %v406 = vmul.f32 %v405, %v228
        %v407 = vmul.f32 %v405, %v229
        %v408 = vadd.f32 %v402, %v406
        %v409 = vadd.f32 %v403, %v407
        %s410 = sld [smem:[#allocation2 + $0x10]]
        %v411 = vstv %s410
        %v412 = vmul.f32 %v411, %v228
        %v413 = vmul.f32 %v411, %v229
        %416 = vrot.lane.b32.xlu0 %v412, 127
        %v417 = vpop.permute.xlu0 %416
        %418 = vrot.lane.b32.xlu0 %v413, 127
        %v419 = vpop.permute.xlu0 %418
        %v422 = vadd.f32 %v408, %v417
        %v423 = vadd.f32 %v409, %v419
        %s424 = sld [smem:[#allocation2 + $0x11]]
        %v425 = vstv %s424
        %v426 = vmul.f32 %v425, %v228
        %v427 = vmul.f32 %v425, %v229
        %430 = vrot.lane.b32.xlu0 %v426, 126
        %v431 = vpop.permute.xlu0 %430
        %432 = vrot.lane.b32.xlu0 %v427, 126
        %v433 = vpop.permute.xlu0 %432
        %v436 = vadd.f32 %v422, %v431
        %v437 = vadd.f32 %v423, %v433
        %s438 = sld [smem:[#allocation2 + $0x12]]
        %v439 = vstv %s438
        %v440 = vmul.f32 %v439, %v214
        %v441 = vmul.f32 %v439, %v215
        %v442 = vadd.f32 %v436, %v440
        %v443 = vadd.f32 %v437, %v441
        %s444 = sld [smem:[#allocation2 + $0x13]]
        %v445 = vstv %s444
        %v446 = vmul.f32 %v445, %v214
        %v447 = vmul.f32 %v445, %v215
        %450 = vrot.lane.b32.xlu0 %v446, 127
        %v451 = vpop.permute.xlu0 %450
        %452 = vrot.lane.b32.xlu0 %v447, 127
        %v453 = vpop.permute.xlu0 %452
        %v456 = vadd.f32 %v442, %v451
        %v457 = vadd.f32 %v443, %v453
        %s458 = sld [smem:[#allocation2 + $0x14]]
        %v459 = vstv %s458
        %v460 = vmul.f32 %v459, %v214
        %v461 = vmul.f32 %v459, %v215
        %464 = vrot.lane.b32.xlu0 %v460, 126
        %v465 = vpop.permute.xlu0 %464
        %466 = vrot.lane.b32.xlu0 %v461, 126
        %v467 = vpop.permute.xlu0 %466
        %v470 = vadd.f32 %v456, %v465
        %v471 = vadd.f32 %v457, %v467
        %s472 = sld [smem:[#allocation2 + $0x15]]
        %v473 = vstv %s472
        %v474 = vmul.f32 %v473, %v222
        %v475 = vmul.f32 %v473, %v223
        %v476 = vadd.f32 %v470, %v474
        %v477 = vadd.f32 %v471, %v475
        %s478 = sld [smem:[#allocation2 + $0x16]]
        %v479 = vstv %s478
        %v480 = vmul.f32 %v479, %v222
        %v481 = vmul.f32 %v479, %v223
        %484 = vrot.lane.b32.xlu0 %v480, 127
        %v485 = vpop.permute.xlu0 %484
        %486 = vrot.lane.b32.xlu0 %v481, 127
        %v487 = vpop.permute.xlu0 %486
        %v490 = vadd.f32 %v476, %v485
        %v491 = vadd.f32 %v477, %v487
        %s492 = sld [smem:[#allocation2 + $0x17]]
        %v493 = vstv %s492
        %v494 = vmul.f32 %v493, %v222
        %v495 = vmul.f32 %v493, %v223
        %498 = vrot.lane.b32.xlu0 %v494, 126
        %v499 = vpop.permute.xlu0 %498
        %500 = vrot.lane.b32.xlu0 %v495, 126
        %v501 = vpop.permute.xlu0 %500
        %v504 = vadd.f32 %v490, %v499
        %v505 = vadd.f32 %v491, %v501
        %s506 = sld [smem:[#allocation2 + $0x18]]
        %v507 = vstv %s506
        %v508 = vmul.f32 %v507, %v230
        %v509 = vmul.f32 %v507, %v231
        %v510 = vadd.f32 %v504, %v508
        %v511 = vadd.f32 %v505, %v509
        %s512 = sld [smem:[#allocation2 + $0x19]]
        %v513 = vstv %s512
        %v514 = vmul.f32 %v513, %v230
        %v515 = vmul.f32 %v513, %v231
        %518 = vrot.lane.b32.xlu0 %v514, 127
        %v519 = vpop.permute.xlu0 %518
        %520 = vrot.lane.b32.xlu0 %v515, 127
        %v521 = vpop.permute.xlu0 %520
        %v524 = vadd.f32 %v510, %v519
        %v525 = vadd.f32 %v511, %v521
        %s526 = sld [smem:[#allocation2 + $0x1a]]
        %v527 = vstv %s526
        %v528 = vmul.f32 %v527, %v230
        %v529 = vmul.f32 %v527, %v231
        %532 = vrot.lane.b32.xlu0 %v528, 126
        %v533 = vpop.permute.xlu0 %532
        %534 = vrot.lane.b32.xlu0 %v529, 126
        %v535 = vpop.permute.xlu0 %534
        %v538 = vadd.f32 %v524, %v533
        %v539 = vadd.f32 %v525, %v535
        %s540 = sld [smem:[#allocation2 + $0x1b]]
        %v541 = vstv %s540
        %v542 = vmul.f32 %v541, %v216
        %v543 = vmul.f32 %v541, %v217
        %v544 = vadd.f32 %v538, %v542
        %v545 = vadd.f32 %v539, %v543
        %s546 = sld [smem:[#allocation2 + $0x1c]]
        %v547 = vstv %s546
        %v548 = vmul.f32 %v547, %v216
        %v549 = vmul.f32 %v547, %v217
        %552 = vrot.lane.b32.xlu0 %v548, 127
        %v553 = vpop.permute.xlu0 %552
        %554 = vrot.lane.b32.xlu0 %v549, 127
        %v555 = vpop.permute.xlu0 %554
        %v558 = vadd.f32 %v544, %v553
        %v559 = vadd.f32 %v545, %v555
        %s560 = sld [smem:[#allocation2 + $0x1d]]
        %v561 = vstv %s560
        %v562 = vmul.f32 %v561, %v216
        %v563 = vmul.f32 %v561, %v217
        %566 = vrot.lane.b32.xlu0 %v562, 126
        %v567 = vpop.permute.xlu0 %566
        %568 = vrot.lane.b32.xlu0 %v563, 126
        %v569 = vpop.permute.xlu0 %568
        %v572 = vadd.f32 %v558, %v567
        %v573 = vadd.f32 %v559, %v569
        %s574 = sld [smem:[#allocation2 + $0x1e]]
        %v575 = vstv %s574
        %v576 = vmul.f32 %v575, %v224
        %v577 = vmul.f32 %v575, %v225
        %v578 = vadd.f32 %v572, %v576
        %v579 = vadd.f32 %v573, %v577
        %s580 = sld [smem:[#allocation2 + $0x1f]]
        %v581 = vstv %s580
        %v582 = vmul.f32 %v581, %v224
        %v583 = vmul.f32 %v581, %v225
        %586 = vrot.lane.b32.xlu0 %v582, 127
        %v587 = vpop.permute.xlu0 %586
        %588 = vrot.lane.b32.xlu0 %v583, 127
        %v589 = vpop.permute.xlu0 %588
        %v592 = vadd.f32 %v578, %v587
        %v593 = vadd.f32 %v579, %v589
        %s594 = sld [smem:[#allocation2 + $0x20]]
        %v595 = vstv %s594
        %v596 = vmul.f32 %v595, %v224
        %v597 = vmul.f32 %v595, %v225
        %600 = vrot.lane.b32.xlu0 %v596, 126
        %v601 = vpop.permute.xlu0 %600
        %602 = vrot.lane.b32.xlu0 %v597, 126
        %v603 = vpop.permute.xlu0 %602
        %v606 = vadd.f32 %v592, %v601
        %v607 = vadd.f32 %v593, %v603
        %s608 = sld [smem:[#allocation2 + $0x21]]
        %v609 = vstv %s608
        %v610 = vmul.f32 %v609, %v232
        %v611 = vmul.f32 %v609, %v233
        %v612 = vadd.f32 %v606, %v610
        %v613 = vadd.f32 %v607, %v611
        %s614 = sld [smem:[#allocation2 + $0x22]]
        %v615 = vstv %s614
        %v616 = vmul.f32 %v615, %v232
        %v617 = vmul.f32 %v615, %v233
        %620 = vrot.lane.b32.xlu0 %v616, 127
        %v621 = vpop.permute.xlu0 %620
        %622 = vrot.lane.b32.xlu0 %v617, 127
        %v623 = vpop.permute.xlu0 %622
        %v626 = vadd.f32 %v612, %v621
        %v627 = vadd.f32 %v613, %v623
        %s628 = sld [smem:[#allocation2 + $0x23]]
        %v629 = vstv %s628
        %v630 = vmul.f32 %v629, %v232
        %v631 = vmul.f32 %v629, %v233
        %634 = vrot.lane.b32.xlu0 %v630, 126
        %v635 = vpop.permute.xlu0 %634
        %636 = vrot.lane.b32.xlu0 %v631, 126
        %v637 = vpop.permute.xlu0 %636
        %v640 = vadd.f32 %v626, %v635
        %v641 = vadd.f32 %v627, %v637
        %s642 = sld [smem:[#allocation2 + $0x24]]
        %v643 = vstv %s642
        %v644 = vmul.f32 %v643, %v210
        %v645 = vmul.f32 %v643, %v211
        %v646 = vadd.f32 %v644, 0.0
        %v647 = vadd.f32 %v645, 0.0
        %s648 = sld [smem:[#allocation2 + $0x25]]
        %v649 = vstv %s648
        %v650 = vmul.f32 %v649, %v210
        %v651 = vmul.f32 %v649, %v211
        %654 = vrot.lane.b32.xlu0 %v650, 127
        %v655 = vpop.permute.xlu0 %654
        %656 = vrot.lane.b32.xlu0 %v651, 127
        %v657 = vpop.permute.xlu0 %656
        %v660 = vadd.f32 %v646, %v655
        %v661 = vadd.f32 %v647, %v657
        %s662 = sld [smem:[#allocation2 + $0x26]]
        %v663 = vstv %s662
        %v664 = vmul.f32 %v663, %v210
        %v665 = vmul.f32 %v663, %v211
        %668 = vrot.lane.b32.xlu0 %v664, 126
        %v669 = vpop.permute.xlu0 %668
        %670 = vrot.lane.b32.xlu0 %v665, 126
        %v671 = vpop.permute.xlu0 %670
        %v674 = vadd.f32 %v660, %v669
        %v675 = vadd.f32 %v661, %v671
        %s676 = sld [smem:[#allocation2 + $0x27]]
        %v677 = vstv %s676
        %v678 = vmul.f32 %v677, %v218
        %v679 = vmul.f32 %v677, %v219
        %v680 = vadd.f32 %v674, %v678
        %v681 = vadd.f32 %v675, %v679
        %s682 = sld [smem:[#allocation2 + $0x28]]
        %v683 = vstv %s682
        %v684 = vmul.f32 %v683, %v218
        %v685 = vmul.f32 %v683, %v219
        %688 = vrot.lane.b32.xlu0 %v684, 127
        %v689 = vpop.permute.xlu0 %688
        %690 = vrot.lane.b32.xlu0 %v685, 127
        %v691 = vpop.permute.xlu0 %690
        %v694 = vadd.f32 %v680, %v689
        %v695 = vadd.f32 %v681, %v691
        %s696 = sld [smem:[#allocation2 + $0x29]]
        %v697 = vstv %s696
        %v698 = vmul.f32 %v697, %v218
        %v699 = vmul.f32 %v697, %v219
        %702 = vrot.lane.b32.xlu0 %v698, 126
        %v703 = vpop.permute.xlu0 %702
        %704 = vrot.lane.b32.xlu0 %v699, 126
        %v705 = vpop.permute.xlu0 %704
        %v708 = vadd.f32 %v694, %v703
        %v709 = vadd.f32 %v695, %v705
        %s710 = sld [smem:[#allocation2 + $0x2a]]
        %v711 = vstv %s710
        %v712 = vmul.f32 %v711, %v226
        %v713 = vmul.f32 %v711, %v227
        %v714 = vadd.f32 %v708, %v712
        %v715 = vadd.f32 %v709, %v713
        %s716 = sld [smem:[#allocation2 + $0x2b]]
        %v717 = vstv %s716
        %v718 = vmul.f32 %v717, %v226
        %v719 = vmul.f32 %v717, %v227
        %722 = vrot.lane.b32.xlu0 %v718, 127
        %v723 = vpop.permute.xlu0 %722
        %724 = vrot.lane.b32.xlu0 %v719, 127
        %v725 = vpop.permute.xlu0 %724
        %v728 = vadd.f32 %v714, %v723
        %v729 = vadd.f32 %v715, %v725
        %s730 = sld [smem:[#allocation2 + $0x2c]]
        %v731 = vstv %s730
        %v732 = vmul.f32 %v731, %v226
        %v733 = vmul.f32 %v731, %v227
        %736 = vrot.lane.b32.xlu0 %v732, 126
        %v737 = vpop.permute.xlu0 %736
        %738 = vrot.lane.b32.xlu0 %v733, 126
        %v739 = vpop.permute.xlu0 %738
        %v742 = vadd.f32 %v728, %v737
        %v743 = vadd.f32 %v729, %v739
        %s744 = sld [smem:[#allocation2 + $0x2d]]
        %v745 = vstv %s744
        %v746 = vmul.f32 %v745, %v212
        %v747 = vmul.f32 %v745, %v213
        %v748 = vadd.f32 %v742, %v746
        %v749 = vadd.f32 %v743, %v747
        %s750 = sld [smem:[#allocation2 + $0x2e]]
        %v751 = vstv %s750
        %v752 = vmul.f32 %v751, %v212
        %v753 = vmul.f32 %v751, %v213
        %756 = vrot.lane.b32.xlu0 %v752, 127
        %v757 = vpop.permute.xlu0 %756
        %758 = vrot.lane.b32.xlu0 %v753, 127
        %v759 = vpop.permute.xlu0 %758
        %v762 = vadd.f32 %v748, %v757
        %v763 = vadd.f32 %v749, %v759
        %s764 = sld [smem:[#allocation2 + $0x2f]]
        %v765 = vstv %s764
        %v766 = vmul.f32 %v765, %v212
        %v767 = vmul.f32 %v765, %v213
        %770 = vrot.lane.b32.xlu0 %v766, 126
        %v771 = vpop.permute.xlu0 %770
        %772 = vrot.lane.b32.xlu0 %v767, 126
        %v773 = vpop.permute.xlu0 %772
        %v776 = vadd.f32 %v762, %v771
        %v777 = vadd.f32 %v763, %v773
        %s778 = sld [smem:[#allocation2 + $0x30]]
        %v779 = vstv %s778
        %v780 = vmul.f32 %v779, %v220
        %v781 = vmul.f32 %v779, %v221
        %v782 = vadd.f32 %v776, %v780
        %v783 = vadd.f32 %v777, %v781
        %s784 = sld [smem:[#allocation2 + $0x31]]
        %v785 = vstv %s784
        %v786 = vmul.f32 %v785, %v220
        %v787 = vmul.f32 %v785, %v221
        %790 = vrot.lane.b32.xlu0 %v786, 127
        %v791 = vpop.permute.xlu0 %790
        %792 = vrot.lane.b32.xlu0 %v787, 127
        %v793 = vpop.permute.xlu0 %792
        %v796 = vadd.f32 %v782, %v791
        %v797 = vadd.f32 %v783, %v793
        %s798 = sld [smem:[#allocation2 + $0x32]]
        %v799 = vstv %s798
        %v800 = vmul.f32 %v799, %v220
        %v801 = vmul.f32 %v799, %v221
        %804 = vrot.lane.b32.xlu0 %v800, 126
        %v805 = vpop.permute.xlu0 %804
        %806 = vrot.lane.b32.xlu0 %v801, 126
        %v807 = vpop.permute.xlu0 %806
        %v810 = vadd.f32 %v796, %v805
        %v811 = vadd.f32 %v797, %v807
        %s812 = sld [smem:[#allocation2 + $0x33]]
        %v813 = vstv %s812
        %v814 = vmul.f32 %v813, %v228
        %v815 = vmul.f32 %v813, %v229
        %v816 = vadd.f32 %v810, %v814
        %v817 = vadd.f32 %v811, %v815
        %s818 = sld [smem:[#allocation2 + $0x34]]
        %v819 = vstv %s818
        %v820 = vmul.f32 %v819, %v228
        %v821 = vmul.f32 %v819, %v229
        %824 = vrot.lane.b32.xlu0 %v820, 127
        %v825 = vpop.permute.xlu0 %824
        %826 = vrot.lane.b32.xlu0 %v821, 127
        %v827 = vpop.permute.xlu0 %826
        %v830 = vadd.f32 %v816, %v825
        %v831 = vadd.f32 %v817, %v827
        %s832 = sld [smem:[#allocation2 + $0x35]]
        %v833 = vstv %s832
        %v834 = vmul.f32 %v833, %v228
        %v835 = vmul.f32 %v833, %v229
        %838 = vrot.lane.b32.xlu0 %v834, 126
        %v839 = vpop.permute.xlu0 %838
        %840 = vrot.lane.b32.xlu0 %v835, 126
        %v841 = vpop.permute.xlu0 %840
        %v844 = vadd.f32 %v830, %v839
        %v845 = vadd.f32 %v831, %v841
        %s846 = sld [smem:[#allocation2 + $0x36]]
        %v847 = vstv %s846
        %v848 = vmul.f32 %v847, %v214
        %v849 = vmul.f32 %v847, %v215
        %v850 = vadd.f32 %v844, %v848
        %v851 = vadd.f32 %v845, %v849
        %s852 = sld [smem:[#allocation2 + $0x37]]
        %v853 = vstv %s852
        %v854 = vmul.f32 %v853, %v214
        %v855 = vmul.f32 %v853, %v215
        %858 = vrot.lane.b32.xlu0 %v854, 127
        %v859 = vpop.permute.xlu0 %858
        %860 = vrot.lane.b32.xlu0 %v855, 127
        %v861 = vpop.permute.xlu0 %860
        %v864 = vadd.f32 %v850, %v859
        %v865 = vadd.f32 %v851, %v861
        %s866 = sld [smem:[#allocation2 + $0x38]]
        %v867 = vstv %s866
        %v868 = vmul.f32 %v867, %v214
        %v869 = vmul.f32 %v867, %v215
        %872 = vrot.lane.b32.xlu0 %v868, 126
        %v873 = vpop.permute.xlu0 %872
        %874 = vrot.lane.b32.xlu0 %v869, 126
        %v875 = vpop.permute.xlu0 %874
        %v878 = vadd.f32 %v864, %v873
        %v879 = vadd.f32 %v865, %v875
        %s880 = sld [smem:[#allocation2 + $0x39]]
        %v881 = vstv %s880
        %v882 = vmul.f32 %v881, %v222
        %v883 = vmul.f32 %v881, %v223
        %v884 = vadd.f32 %v878, %v882
        %v885 = vadd.f32 %v879, %v883
        %s886 = sld [smem:[#allocation2 + $0x3a]]
        %v887 = vstv %s886
        %v888 = vmul.f32 %v887, %v222
        %v889 = vmul.f32 %v887, %v223
        %892 = vrot.lane.b32.xlu0 %v888, 127
        %v893 = vpop.permute.xlu0 %892
        %894 = vrot.lane.b32.xlu0 %v889, 127
        %v895 = vpop.permute.xlu0 %894
        %v898 = vadd.f32 %v884, %v893
        %v899 = vadd.f32 %v885, %v895
        %s900 = sld [smem:[#allocation2 + $0x3b]]
        %v901 = vstv %s900
        %v902 = vmul.f32 %v901, %v222
        %v903 = vmul.f32 %v901, %v223
        %906 = vrot.lane.b32.xlu0 %v902, 126
        %v907 = vpop.permute.xlu0 %906
        %908 = vrot.lane.b32.xlu0 %v903, 126
        %v909 = vpop.permute.xlu0 %908
        %v912 = vadd.f32 %v898, %v907
        %v913 = vadd.f32 %v899, %v909
        %s914 = sld [smem:[#allocation2 + $0x3c]]
        %v915 = vstv %s914
        %v916 = vmul.f32 %v915, %v230
        %v917 = vmul.f32 %v915, %v231
        %v918 = vadd.f32 %v912, %v916
        %v919 = vadd.f32 %v913, %v917
        %s920 = sld [smem:[#allocation2 + $0x3d]]
        %v921 = vstv %s920
        %v922 = vmul.f32 %v921, %v230
        %v923 = vmul.f32 %v921, %v231
        %926 = vrot.lane.b32.xlu0 %v922, 127
        %v927 = vpop.permute.xlu0 %926
        %928 = vrot.lane.b32.xlu0 %v923, 127
        %v929 = vpop.permute.xlu0 %928
        %v932 = vadd.f32 %v918, %v927
        %v933 = vadd.f32 %v919, %v929
        %s934 = sld [smem:[#allocation2 + $0x3e]]
        %v935 = vstv %s934
        %v936 = vmul.f32 %v935, %v230
        %v937 = vmul.f32 %v935, %v231
        %940 = vrot.lane.b32.xlu0 %v936, 126
        %v941 = vpop.permute.xlu0 %940
        %942 = vrot.lane.b32.xlu0 %v937, 126
        %v943 = vpop.permute.xlu0 %942
        %v946 = vadd.f32 %v932, %v941
        %v947 = vadd.f32 %v933, %v943
        %s948 = sld [smem:[#allocation2 + $0x3f]]
        %v949 = vstv %s948
        %v950 = vmul.f32 %v949, %v216
        %v951 = vmul.f32 %v949, %v217
        %v952 = vadd.f32 %v946, %v950
        %v953 = vadd.f32 %v947, %v951
        %s954 = sld [smem:[#allocation2 + $0x40]]
        %v955 = vstv %s954
        %v956 = vmul.f32 %v955, %v216
        %v957 = vmul.f32 %v955, %v217
        %960 = vrot.lane.b32.xlu0 %v956, 127
        %v961 = vpop.permute.xlu0 %960
        %962 = vrot.lane.b32.xlu0 %v957, 127
        %v963 = vpop.permute.xlu0 %962
        %v966 = vadd.f32 %v952, %v961
        %v967 = vadd.f32 %v953, %v963
        %s968 = sld [smem:[#allocation2 + $0x41]]
        %v969 = vstv %s968
        %v970 = vmul.f32 %v969, %v216
        %v971 = vmul.f32 %v969, %v217
        %974 = vrot.lane.b32.xlu0 %v970, 126
        %v975 = vpop.permute.xlu0 %974
        %976 = vrot.lane.b32.xlu0 %v971, 126
        %v977 = vpop.permute.xlu0 %976
        %v980 = vadd.f32 %v966, %v975
        %v981 = vadd.f32 %v967, %v977
        %s982 = sld [smem:[#allocation2 + $0x42]]
        %v983 = vstv %s982
        %v984 = vmul.f32 %v983, %v224
        %v985 = vmul.f32 %v983, %v225
        %v986 = vadd.f32 %v980, %v984
        %v987 = vadd.f32 %v981, %v985
        %s988 = sld [smem:[#allocation2 + $0x43]]
        %v989 = vstv %s988
        %v990 = vmul.f32 %v989, %v224
        %v991 = vmul.f32 %v989, %v225
        %994 = vrot.lane.b32.xlu0 %v990, 127
        %v995 = vpop.permute.xlu0 %994
        %996 = vrot.lane.b32.xlu0 %v991, 127
        %v997 = vpop.permute.xlu0 %996
        %v1000 = vadd.f32 %v986, %v995
        %v1001 = vadd.f32 %v987, %v997
        %s1002 = sld [smem:[#allocation2 + $0x44]]
        %v1003 = vstv %s1002
        %v1004 = vmul.f32 %v1003, %v224
        %v1005 = vmul.f32 %v1003, %v225
        %1008 = vrot.lane.b32.xlu0 %v1004, 126
        %v1009 = vpop.permute.xlu0 %1008
        %1010 = vrot.lane.b32.xlu0 %v1005, 126
        %v1011 = vpop.permute.xlu0 %1010
        %v1014 = vadd.f32 %v1000, %v1009
        %v1015 = vadd.f32 %v1001, %v1011
        %s1016 = sld [smem:[#allocation2 + $0x45]]
        %v1017 = vstv %s1016
        %v1018 = vmul.f32 %v1017, %v232
        %v1019 = vmul.f32 %v1017, %v233
        %v1020 = vadd.f32 %v1014, %v1018
        %v1021 = vadd.f32 %v1015, %v1019
        %s1022 = sld [smem:[#allocation2 + $0x46]]
        %v1023 = vstv %s1022
        %v1024 = vmul.f32 %v1023, %v232
        %v1025 = vmul.f32 %v1023, %v233
        %1028 = vrot.lane.b32.xlu0 %v1024, 127
        %v1029 = vpop.permute.xlu0 %1028
        %1030 = vrot.lane.b32.xlu0 %v1025, 127
        %v1031 = vpop.permute.xlu0 %1030
        %v1034 = vadd.f32 %v1020, %v1029
        %v1035 = vadd.f32 %v1021, %v1031
        %s1036 = sld [smem:[#allocation2 + $0x47]]
        %v1037 = vstv %s1036
        %v1038 = vmul.f32 %v1037, %v232
        %v1039 = vmul.f32 %v1037, %v233
        %1042 = vrot.lane.b32.xlu0 %v1038, 126
        %v1043 = vpop.permute.xlu0 %1042
        %1044 = vrot.lane.b32.xlu0 %v1039, 126
        %v1045 = vpop.permute.xlu0 %1044
        %v1048 = vadd.f32 %v1034, %v1043
        %v1049 = vadd.f32 %v1035, %v1045
        %s1050 = sld [smem:[#allocation2 + $0x48]]
        %v1051 = vstv %s1050
        %v1052 = vmul.f32 %v1051, %v210
        %v1053 = vmul.f32 %v1051, %v211
        %v1054 = vadd.f32 %v1052, 0.0
        %v1055 = vadd.f32 %v1053, 0.0
        %s1056 = sld [smem:[#allocation2 + $0x49]]
        %v1057 = vstv %s1056
        %v1058 = vmul.f32 %v1057, %v210
        %v1059 = vmul.f32 %v1057, %v211
        %1062 = vrot.lane.b32.xlu0 %v1058, 127
        %v1063 = vpop.permute.xlu0 %1062
        %1064 = vrot.lane.b32.xlu0 %v1059, 127
        %v1065 = vpop.permute.xlu0 %1064
        %v1068 = vadd.f32 %v1054, %v1063
        %v1069 = vadd.f32 %v1055, %v1065
        %s1070 = sld [smem:[#allocation2 + $0x4a]]
        %v1071 = vstv %s1070
        %v1072 = vmul.f32 %v1071, %v210
        %v1073 = vmul.f32 %v1071, %v211
        %1076 = vrot.lane.b32.xlu0 %v1072, 126
        %v1077 = vpop.permute.xlu0 %1076
        %1078 = vrot.lane.b32.xlu0 %v1073, 126
        %v1079 = vpop.permute.xlu0 %1078
        %v1082 = vadd.f32 %v1068, %v1077
        %v1083 = vadd.f32 %v1069, %v1079
        %s1084 = sld [smem:[#allocation2 + $0x4b]]
        %v1085 = vstv %s1084
        %v1086 = vmul.f32 %v1085, %v218
        %v1087 = vmul.f32 %v1085, %v219
        %v1088 = vadd.f32 %v1082, %v1086
        %v1089 = vadd.f32 %v1083, %v1087
        %s1090 = sld [smem:[#allocation2 + $0x4c]]
        %v1091 = vstv %s1090
        %v1092 = vmul.f32 %v1091, %v218
        %v1093 = vmul.f32 %v1091, %v219
        %1096 = vrot.lane.b32.xlu0 %v1092, 127
        %v1097 = vpop.permute.xlu0 %1096
        %1098 = vrot.lane.b32.xlu0 %v1093, 127
        %v1099 = vpop.permute.xlu0 %1098
        %v1102 = vadd.f32 %v1088, %v1097
        %v1103 = vadd.f32 %v1089, %v1099
        %s1104 = sld [smem:[#allocation2 + $0x4d]]
        %v1105 = vstv %s1104
        %v1106 = vmul.f32 %v1105, %v218
        %v1107 = vmul.f32 %v1105, %v219
        %1110 = vrot.lane.b32.xlu0 %v1106, 126
        %v1111 = vpop.permute.xlu0 %1110
        %1112 = vrot.lane.b32.xlu0 %v1107, 126
        %v1113 = vpop.permute.xlu0 %1112
        %v1116 = vadd.f32 %v1102, %v1111
        %v1117 = vadd.f32 %v1103, %v1113
        %s1118 = sld [smem:[#allocation2 + $0x4e]]
        %v1119 = vstv %s1118
        %v1120 = vmul.f32 %v1119, %v226
        %v1121 = vmul.f32 %v1119, %v227
        %v1122 = vadd.f32 %v1116, %v1120
        %v1123 = vadd.f32 %v1117, %v1121
        %s1124 = sld [smem:[#allocation2 + $0x4f]]
        %v1125 = vstv %s1124
        %v1126 = vmul.f32 %v1125, %v226
        %v1127 = vmul.f32 %v1125, %v227
        %1130 = vrot.lane.b32.xlu0 %v1126, 127
        %v1131 = vpop.permute.xlu0 %1130
        %1132 = vrot.lane.b32.xlu0 %v1127, 127
        %v1133 = vpop.permute.xlu0 %1132
        %v1136 = vadd.f32 %v1122, %v1131
        %v1137 = vadd.f32 %v1123, %v1133
        %s1138 = sld [smem:[#allocation2 + $0x50]]
        %v1139 = vstv %s1138
        %v1140 = vmul.f32 %v1139, %v226
        %v1141 = vmul.f32 %v1139, %v227
        %1144 = vrot.lane.b32.xlu0 %v1140, 126
        %v1145 = vpop.permute.xlu0 %1144
        %1146 = vrot.lane.b32.xlu0 %v1141, 126
        %v1147 = vpop.permute.xlu0 %1146
        %v1150 = vadd.f32 %v1136, %v1145
        %v1151 = vadd.f32 %v1137, %v1147
        %s1152 = sld [smem:[#allocation2 + $0x51]]
        %v1153 = vstv %s1152
        %v1154 = vmul.f32 %v1153, %v212
        %v1155 = vmul.f32 %v1153, %v213
        %v1156 = vadd.f32 %v1150, %v1154
        %v1157 = vadd.f32 %v1151, %v1155
        %s1158 = sld [smem:[#allocation2 + $0x52]]
        %v1159 = vstv %s1158
        %v1160 = vmul.f32 %v1159, %v212
        %v1161 = vmul.f32 %v1159, %v213
        %1164 = vrot.lane.b32.xlu0 %v1160, 127
        %v1165 = vpop.permute.xlu0 %1164
        %1166 = vrot.lane.b32.xlu0 %v1161, 127
        %v1167 = vpop.permute.xlu0 %1166
        %v1170 = vadd.f32 %v1156, %v1165
        %v1171 = vadd.f32 %v1157, %v1167
        %s1172 = sld [smem:[#allocation2 + $0x53]]
        %v1173 = vstv %s1172
        %v1174 = vmul.f32 %v1173, %v212
        %v1175 = vmul.f32 %v1173, %v213
        %1178 = vrot.lane.b32.xlu0 %v1174, 126
        %v1179 = vpop.permute.xlu0 %1178
        %1180 = vrot.lane.b32.xlu0 %v1175, 126
        %v1181 = vpop.permute.xlu0 %1180
        %v1184 = vadd.f32 %v1170, %v1179
        %v1185 = vadd.f32 %v1171, %v1181
        %s1186 = sld [smem:[#allocation2 + $0x54]]
        %v1187 = vstv %s1186
        %v1188 = vmul.f32 %v1187, %v220
        %v1189 = vmul.f32 %v1187, %v221
        %v1190 = vadd.f32 %v1184, %v1188
        %v1191 = vadd.f32 %v1185, %v1189
        %s1192 = sld [smem:[#allocation2 + $0x55]]
        %v1193 = vstv %s1192
        %v1194 = vmul.f32 %v1193, %v220
        %v1195 = vmul.f32 %v1193, %v221
        %1198 = vrot.lane.b32.xlu0 %v1194, 127
        %v1199 = vpop.permute.xlu0 %1198
        %1200 = vrot.lane.b32.xlu0 %v1195, 127
        %v1201 = vpop.permute.xlu0 %1200
        %v1204 = vadd.f32 %v1190, %v1199
        %v1205 = vadd.f32 %v1191, %v1201
        %s1206 = sld [smem:[#allocation2 + $0x56]]
        %v1207 = vstv %s1206
        %v1208 = vmul.f32 %v1207, %v220
        %v1209 = vmul.f32 %v1207, %v221
        %1212 = vrot.lane.b32.xlu0 %v1208, 126
        %v1213 = vpop.permute.xlu0 %1212
        %1214 = vrot.lane.b32.xlu0 %v1209, 126
        %v1215 = vpop.permute.xlu0 %1214
        %v1218 = vadd.f32 %v1204, %v1213
        %v1219 = vadd.f32 %v1205, %v1215
        %s1220 = sld [smem:[#allocation2 + $0x57]]
        %v1221 = vstv %s1220
        %v1222 = vmul.f32 %v1221, %v228
        %v1223 = vmul.f32 %v1221, %v229
        %v1224 = vadd.f32 %v1218, %v1222
        %v1225 = vadd.f32 %v1219, %v1223
        %s1226 = sld [smem:[#allocation2 + $0x58]]
        %v1227 = vstv %s1226
        %v1228 = vmul.f32 %v1227, %v228
        %v1229 = vmul.f32 %v1227, %v229
        %1232 = vrot.lane.b32.xlu0 %v1228, 127
        %v1233 = vpop.permute.xlu0 %1232
        %1234 = vrot.lane.b32.xlu0 %v1229, 127
        %v1235 = vpop.permute.xlu0 %1234
        %v1238 = vadd.f32 %v1224, %v1233
        %v1239 = vadd.f32 %v1225, %v1235
        %s1240 = sld [smem:[#allocation2 + $0x59]]
        %v1241 = vstv %s1240
        %v1242 = vmul.f32 %v1241, %v228
        %v1243 = vmul.f32 %v1241, %v229
        %1246 = vrot.lane.b32.xlu0 %v1242, 126
        %v1247 = vpop.permute.xlu0 %1246
        %1248 = vrot.lane.b32.xlu0 %v1243, 126
        %v1249 = vpop.permute.xlu0 %1248
        %v1252 = vadd.f32 %v1238, %v1247
        %v1253 = vadd.f32 %v1239, %v1249
        %s1254 = sld [smem:[#allocation2 + $0x5a]]
        %v1255 = vstv %s1254
        %v1256 = vmul.f32 %v1255, %v214
        %v1257 = vmul.f32 %v1255, %v215
        %v1258 = vadd.f32 %v1252, %v1256
        %v1259 = vadd.f32 %v1253, %v1257
        %s1260 = sld [smem:[#allocation2 + $0x5b]]
        %v1261 = vstv %s1260
        %v1262 = vmul.f32 %v1261, %v214
        %v1263 = vmul.f32 %v1261, %v215
        %1266 = vrot.lane.b32.xlu0 %v1262, 127
        %v1267 = vpop.permute.xlu0 %1266
        %1268 = vrot.lane.b32.xlu0 %v1263, 127
        %v1269 = vpop.permute.xlu0 %1268
        %v1272 = vadd.f32 %v1258, %v1267
        %v1273 = vadd.f32 %v1259, %v1269
        %s1274 = sld [smem:[#allocation2 + $0x5c]]
        %v1275 = vstv %s1274
        %v1276 = vmul.f32 %v1275, %v214
        %v1277 = vmul.f32 %v1275, %v215
        %1280 = vrot.lane.b32.xlu0 %v1276, 126
        %v1281 = vpop.permute.xlu0 %1280
        %1282 = vrot.lane.b32.xlu0 %v1277, 126
        %v1283 = vpop.permute.xlu0 %1282
        %v1286 = vadd.f32 %v1272, %v1281
        %v1287 = vadd.f32 %v1273, %v1283
        %s1288 = sld [smem:[#allocation2 + $0x5d]]
        %v1289 = vstv %s1288
        %v1290 = vmul.f32 %v1289, %v222
        %v1291 = vmul.f32 %v1289, %v223
        %v1292 = vadd.f32 %v1286, %v1290
        %v1293 = vadd.f32 %v1287, %v1291
        %s1294 = sld [smem:[#allocation2 + $0x5e]]
        %v1295 = vstv %s1294
        %v1296 = vmul.f32 %v1295, %v222
        %v1297 = vmul.f32 %v1295, %v223
        %1300 = vrot.lane.b32.xlu0 %v1296, 127
        %v1301 = vpop.permute.xlu0 %1300
        %1302 = vrot.lane.b32.xlu0 %v1297, 127
        %v1303 = vpop.permute.xlu0 %1302
        %v1306 = vadd.f32 %v1292, %v1301
        %v1307 = vadd.f32 %v1293, %v1303
        %s1308 = sld [smem:[#allocation2 + $0x5f]]
        %v1309 = vstv %s1308
        %v1310 = vmul.f32 %v1309, %v222
        %v1311 = vmul.f32 %v1309, %v223
        %1314 = vrot.lane.b32.xlu0 %v1310, 126
        %v1315 = vpop.permute.xlu0 %1314
        %1316 = vrot.lane.b32.xlu0 %v1311, 126
        %v1317 = vpop.permute.xlu0 %1316
        %v1320 = vadd.f32 %v1306, %v1315
        %v1321 = vadd.f32 %v1307, %v1317
        %s1322 = sld [smem:[#allocation2 + $0x60]]
        %v1323 = vstv %s1322
        %v1324 = vmul.f32 %v1323, %v230
        %v1325 = vmul.f32 %v1323, %v231
        %v1326 = vadd.f32 %v1320, %v1324
        %v1327 = vadd.f32 %v1321, %v1325
        %s1328 = sld [smem:[#allocation2 + $0x61]]
        %v1329 = vstv %s1328
        %v1330 = vmul.f32 %v1329, %v230
        %v1331 = vmul.f32 %v1329, %v231
        %1334 = vrot.lane.b32.xlu0 %v1330, 127
        %v1335 = vpop.permute.xlu0 %1334
        %1336 = vrot.lane.b32.xlu0 %v1331, 127
        %v1337 = vpop.permute.xlu0 %1336
        %v1340 = vadd.f32 %v1326, %v1335
        %v1341 = vadd.f32 %v1327, %v1337
        %s1342 = sld [smem:[#allocation2 + $0x62]]
        %v1343 = vstv %s1342
        %v1344 = vmul.f32 %v1343, %v230
        %v1345 = vmul.f32 %v1343, %v231
        %1348 = vrot.lane.b32.xlu0 %v1344, 126
        %v1349 = vpop.permute.xlu0 %1348
        %1350 = vrot.lane.b32.xlu0 %v1345, 126
        %v1351 = vpop.permute.xlu0 %1350
        %v1354 = vadd.f32 %v1340, %v1349
        %v1355 = vadd.f32 %v1341, %v1351
        %s1356 = sld [smem:[#allocation2 + $0x63]]
        %v1357 = vstv %s1356
        %v1358 = vmul.f32 %v1357, %v216
        %v1359 = vmul.f32 %v1357, %v217
        %v1360 = vadd.f32 %v1354, %v1358
        %v1361 = vadd.f32 %v1355, %v1359
        %s1362 = sld [smem:[#allocation2 + $0x64]]
        %v1363 = vstv %s1362
        %v1364 = vmul.f32 %v1363, %v216
        %v1365 = vmul.f32 %v1363, %v217
        %1368 = vrot.lane.b32.xlu0 %v1364, 127
        %v1369 = vpop.permute.xlu0 %1368
        %1370 = vrot.lane.b32.xlu0 %v1365, 127
        %v1371 = vpop.permute.xlu0 %1370
        %v1374 = vadd.f32 %v1360, %v1369
        %v1375 = vadd.f32 %v1361, %v1371
        %s1376 = sld [smem:[#allocation2 + $0x65]]
        %v1377 = vstv %s1376
        %v1378 = vmul.f32 %v1377, %v216
        %v1379 = vmul.f32 %v1377, %v217
        %1382 = vrot.lane.b32.xlu0 %v1378, 126
        %v1383 = vpop.permute.xlu0 %1382
        %1384 = vrot.lane.b32.xlu0 %v1379, 126
        %v1385 = vpop.permute.xlu0 %1384
        %v1388 = vadd.f32 %v1374, %v1383
        %v1389 = vadd.f32 %v1375, %v1385
        %s1390 = sld [smem:[#allocation2 + $0x66]]
        %v1391 = vstv %s1390
        %v1392 = vmul.f32 %v1391, %v224
        %v1393 = vmul.f32 %v1391, %v225
        %v1394 = vadd.f32 %v1388, %v1392
        %v1395 = vadd.f32 %v1389, %v1393
        %s1396 = sld [smem:[#allocation2 + $0x67]]
        %v1397 = vstv %s1396
        %v1398 = vmul.f32 %v1397, %v224
        %v1399 = vmul.f32 %v1397, %v225
        %1402 = vrot.lane.b32.xlu0 %v1398, 127
        %v1403 = vpop.permute.xlu0 %1402
        %1404 = vrot.lane.b32.xlu0 %v1399, 127
        %v1405 = vpop.permute.xlu0 %1404
        %v1408 = vadd.f32 %v1394, %v1403
        %v1409 = vadd.f32 %v1395, %v1405
        %s1410 = sld [smem:[#allocation2 + $0x68]]
        %v1411 = vstv %s1410
        %v1412 = vmul.f32 %v1411, %v224
        %v1413 = vmul.f32 %v1411, %v225
        %1416 = vrot.lane.b32.xlu0 %v1412, 126
        %v1417 = vpop.permute.xlu0 %1416
        %1418 = vrot.lane.b32.xlu0 %v1413, 126
        %v1419 = vpop.permute.xlu0 %1418
        %v1422 = vadd.f32 %v1408, %v1417
        %v1423 = vadd.f32 %v1409, %v1419
        %s1424 = sld [smem:[#allocation2 + $0x69]]
        %v1425 = vstv %s1424
        %v1426 = vmul.f32 %v1425, %v232
        %v1427 = vmul.f32 %v1425, %v233
        %v1428 = vadd.f32 %v1422, %v1426
        %v1429 = vadd.f32 %v1423, %v1427
        %s1430 = sld [smem:[#allocation2 + $0x6a]]
        %v1431 = vstv %s1430
        %v1432 = vmul.f32 %v1431, %v232
        %v1433 = vmul.f32 %v1431, %v233
        %1436 = vrot.lane.b32.xlu0 %v1432, 127
        %v1437 = vpop.permute.xlu0 %1436
        %1438 = vrot.lane.b32.xlu0 %v1433, 127
        %v1439 = vpop.permute.xlu0 %1438
        %v1442 = vadd.f32 %v1428, %v1437
        %v1443 = vadd.f32 %v1429, %v1439
        %s1444 = sld [smem:[#allocation2 + $0x6b]]
        %v1445 = vstv %s1444
        %v1446 = vmul.f32 %v1445, %v232
        %v1447 = vmul.f32 %v1445, %v233
        %1450 = vrot.lane.b32.xlu0 %v1446, 126
        %v1451 = vpop.permute.xlu0 %1450
        %1452 = vrot.lane.b32.xlu0 %v1447, 126
        %v1453 = vpop.permute.xlu0 %1452
        %v1456 = vadd.f32 %v1442, %v1451
        %v1457 = vadd.f32 %v1443, %v1453
        %s1458 = sld [smem:[#allocation2 + $0x6c]]
        %v1459 = vstv %s1458
        %v1460 = vmul.f32 %v1459, %v210
        %v1461 = vmul.f32 %v1459, %v211
        %v1462 = vadd.f32 %v1460, 0.0
        %v1463 = vadd.f32 %v1461, 0.0
        %s1464 = sld [smem:[#allocation2 + $0x6d]]
        %v1465 = vstv %s1464
        %v1466 = vmul.f32 %v1465, %v210
        %v1467 = vmul.f32 %v1465, %v211
        %1470 = vrot.lane.b32.xlu0 %v1466, 127
        %v1471 = vpop.permute.xlu0 %1470
        %1472 = vrot.lane.b32.xlu0 %v1467, 127
        %v1473 = vpop.permute.xlu0 %1472
        %v1476 = vadd.f32 %v1462, %v1471
        %v1477 = vadd.f32 %v1463, %v1473
        %s1478 = sld [smem:[#allocation2 + $0x6e]]
        %v1479 = vstv %s1478
        %v1480 = vmul.f32 %v1479, %v210
        %v1481 = vmul.f32 %v1479, %v211
        %1484 = vrot.lane.b32.xlu0 %v1480, 126
        %v1485 = vpop.permute.xlu0 %1484
        %1486 = vrot.lane.b32.xlu0 %v1481, 126
        %v1487 = vpop.permute.xlu0 %1486
        %v1490 = vadd.f32 %v1476, %v1485
        %v1491 = vadd.f32 %v1477, %v1487
        %s1492 = sld [smem:[#allocation2 + $0x6f]]
        %v1493 = vstv %s1492
        %v1494 = vmul.f32 %v1493, %v218
        %v1495 = vmul.f32 %v1493, %v219
        %v1496 = vadd.f32 %v1490, %v1494
        %v1497 = vadd.f32 %v1491, %v1495
        %s1498 = sld [smem:[#allocation2 + $0x70]]
        %v1499 = vstv %s1498
        %v1500 = vmul.f32 %v1499, %v218
        %v1501 = vmul.f32 %v1499, %v219
        %1504 = vrot.lane.b32.xlu0 %v1500, 127
        %v1505 = vpop.permute.xlu0 %1504
        %1506 = vrot.lane.b32.xlu0 %v1501, 127
        %v1507 = vpop.permute.xlu0 %1506
        %v1510 = vadd.f32 %v1496, %v1505
        %v1511 = vadd.f32 %v1497, %v1507
        %s1512 = sld [smem:[#allocation2 + $0x71]]
        %v1513 = vstv %s1512
        %v1514 = vmul.f32 %v1513, %v218
        %v1515 = vmul.f32 %v1513, %v219
        %1518 = vrot.lane.b32.xlu0 %v1514, 126
        %v1519 = vpop.permute.xlu0 %1518
        %1520 = vrot.lane.b32.xlu0 %v1515, 126
        %v1521 = vpop.permute.xlu0 %1520
        %v1524 = vadd.f32 %v1510, %v1519
        %v1525 = vadd.f32 %v1511, %v1521
        %s1526 = sld [smem:[#allocation2 + $0x72]]
        %v1527 = vstv %s1526
        %v1528 = vmul.f32 %v1527, %v226
        %v1529 = vmul.f32 %v1527, %v227
        %v1530 = vadd.f32 %v1524, %v1528
        %v1531 = vadd.f32 %v1525, %v1529
        %s1532 = sld [smem:[#allocation2 + $0x73]]
        %v1533 = vstv %s1532
        %v1534 = vmul.f32 %v1533, %v226
        %v1535 = vmul.f32 %v1533, %v227
        %1538 = vrot.lane.b32.xlu0 %v1534, 127
        %v1539 = vpop.permute.xlu0 %1538
        %1540 = vrot.lane.b32.xlu0 %v1535, 127
        %v1541 = vpop.permute.xlu0 %1540
        %v1544 = vadd.f32 %v1530, %v1539
        %v1545 = vadd.f32 %v1531, %v1541
        %s1546 = sld [smem:[#allocation2 + $0x74]]
        %v1547 = vstv %s1546
        %v1548 = vmul.f32 %v1547, %v226
        %v1549 = vmul.f32 %v1547, %v227
        %1552 = vrot.lane.b32.xlu0 %v1548, 126
        %v1553 = vpop.permute.xlu0 %1552
        %1554 = vrot.lane.b32.xlu0 %v1549, 126
        %v1555 = vpop.permute.xlu0 %1554
        %v1558 = vadd.f32 %v1544, %v1553
        %v1559 = vadd.f32 %v1545, %v1555
        %s1560 = sld [smem:[#allocation2 + $0x75]]
        %v1561 = vstv %s1560
        %v1562 = vmul.f32 %v1561, %v212
        %v1563 = vmul.f32 %v1561, %v213
        %v1564 = vadd.f32 %v1558, %v1562
        %v1565 = vadd.f32 %v1559, %v1563
        %s1566 = sld [smem:[#allocation2 + $0x76]]
        %v1567 = vstv %s1566
        %v1568 = vmul.f32 %v1567, %v212
        %v1569 = vmul.f32 %v1567, %v213
        %1572 = vrot.lane.b32.xlu0 %v1568, 127
        %v1573 = vpop.permute.xlu0 %1572
        %1574 = vrot.lane.b32.xlu0 %v1569, 127
        %v1575 = vpop.permute.xlu0 %1574
        %v1578 = vadd.f32 %v1564, %v1573
        %v1579 = vadd.f32 %v1565, %v1575
        %s1580 = sld [smem:[#allocation2 + $0x77]]
        %v1581 = vstv %s1580
        %v1582 = vmul.f32 %v1581, %v212
        %v1583 = vmul.f32 %v1581, %v213
        %1586 = vrot.lane.b32.xlu0 %v1582, 126
        %v1587 = vpop.permute.xlu0 %1586
        %1588 = vrot.lane.b32.xlu0 %v1583, 126
        %v1589 = vpop.permute.xlu0 %1588
        %v1592 = vadd.f32 %v1578, %v1587
        %v1593 = vadd.f32 %v1579, %v1589
        %s1594 = sld [smem:[#allocation2 + $0x78]]
        %v1595 = vstv %s1594
        %v1596 = vmul.f32 %v1595, %v220
        %v1597 = vmul.f32 %v1595, %v221
        %v1598 = vadd.f32 %v1592, %v1596
        %v1599 = vadd.f32 %v1593, %v1597
        %s1600 = sld [smem:[#allocation2 + $0x79]]
        %v1601 = vstv %s1600
        %v1602 = vmul.f32 %v1601, %v220
        %v1603 = vmul.f32 %v1601, %v221
        %1606 = vrot.lane.b32.xlu0 %v1602, 127
        %v1607 = vpop.permute.xlu0 %1606
        %1608 = vrot.lane.b32.xlu0 %v1603, 127
        %v1609 = vpop.permute.xlu0 %1608
        %v1612 = vadd.f32 %v1598, %v1607
        %v1613 = vadd.f32 %v1599, %v1609
        %s1614 = sld [smem:[#allocation2 + $0x7a]]
        %v1615 = vstv %s1614
        %v1616 = vmul.f32 %v1615, %v220
        %v1617 = vmul.f32 %v1615, %v221
        %1620 = vrot.lane.b32.xlu0 %v1616, 126
        %v1621 = vpop.permute.xlu0 %1620
        %1622 = vrot.lane.b32.xlu0 %v1617, 126
        %v1623 = vpop.permute.xlu0 %1622
        %v1626 = vadd.f32 %v1612, %v1621
        %v1627 = vadd.f32 %v1613, %v1623
        %s1628 = sld [smem:[#allocation2 + $0x7b]]
        %v1629 = vstv %s1628
        %v1630 = vmul.f32 %v1629, %v228
        %v1631 = vmul.f32 %v1629, %v229
        %v1632 = vadd.f32 %v1626, %v1630
        %v1633 = vadd.f32 %v1627, %v1631
        %s1634 = sld [smem:[#allocation2 + $0x7c]]
        %v1635 = vstv %s1634
        %v1636 = vmul.f32 %v1635, %v228
        %v1637 = vmul.f32 %v1635, %v229
        %1640 = vrot.lane.b32.xlu0 %v1636, 127
        %v1641 = vpop.permute.xlu0 %1640
        %1642 = vrot.lane.b32.xlu0 %v1637, 127
        %v1643 = vpop.permute.xlu0 %1642
        %v1646 = vadd.f32 %v1632, %v1641
        %v1647 = vadd.f32 %v1633, %v1643
        %s1648 = sld [smem:[#allocation2 + $0x7d]]
        %v1649 = vstv %s1648
        %v1650 = vmul.f32 %v1649, %v228
        %v1651 = vmul.f32 %v1649, %v229
        %1654 = vrot.lane.b32.xlu0 %v1650, 126
        %v1655 = vpop.permute.xlu0 %1654
        %1656 = vrot.lane.b32.xlu0 %v1651, 126
        %v1657 = vpop.permute.xlu0 %1656
        %v1660 = vadd.f32 %v1646, %v1655
        %v1661 = vadd.f32 %v1647, %v1657
        %s1662 = sld [smem:[#allocation2 + $0x7e]]
        %v1663 = vstv %s1662
        %v1664 = vmul.f32 %v1663, %v214
        %v1665 = vmul.f32 %v1663, %v215
        %v1666 = vadd.f32 %v1660, %v1664
        %v1667 = vadd.f32 %v1661, %v1665
        %s1668 = sld [smem:[#allocation2 + $0x7f]]
        %v1669 = vstv %s1668
        %v1670 = vmul.f32 %v1669, %v214
        %v1671 = vmul.f32 %v1669, %v215
        %1674 = vrot.lane.b32.xlu0 %v1670, 127
        %v1675 = vpop.permute.xlu0 %1674
        %1676 = vrot.lane.b32.xlu0 %v1671, 127
        %v1677 = vpop.permute.xlu0 %1676
        %v1680 = vadd.f32 %v1666, %v1675
        %v1681 = vadd.f32 %v1667, %v1677
        %s1682 = sld [smem:[#allocation2 + $0x80]]
        %v1683 = vstv %s1682
        %v1684 = vmul.f32 %v1683, %v214
        %v1685 = vmul.f32 %v1683, %v215
        %1688 = vrot.lane.b32.xlu0 %v1684, 126
        %v1689 = vpop.permute.xlu0 %1688
        %1690 = vrot.lane.b32.xlu0 %v1685, 126
        %v1691 = vpop.permute.xlu0 %1690
        %v1694 = vadd.f32 %v1680, %v1689
        %v1695 = vadd.f32 %v1681, %v1691
        %s1696 = sld [smem:[#allocation2 + $0x81]]
        %v1697 = vstv %s1696
        %v1698 = vmul.f32 %v1697, %v222
        %v1699 = vmul.f32 %v1697, %v223
        %v1700 = vadd.f32 %v1694, %v1698
        %v1701 = vadd.f32 %v1695, %v1699
        %s1702 = sld [smem:[#allocation2 + $0x82]]
        %v1703 = vstv %s1702
        %v1704 = vmul.f32 %v1703, %v222
        %v1705 = vmul.f32 %v1703, %v223
        %1708 = vrot.lane.b32.xlu0 %v1704, 127
        %v1709 = vpop.permute.xlu0 %1708
        %1710 = vrot.lane.b32.xlu0 %v1705, 127
        %v1711 = vpop.permute.xlu0 %1710
        %v1714 = vadd.f32 %v1700, %v1709
        %v1715 = vadd.f32 %v1701, %v1711
        %s1716 = sld [smem:[#allocation2 + $0x83]]
        %v1717 = vstv %s1716
        %v1718 = vmul.f32 %v1717, %v222
        %v1719 = vmul.f32 %v1717, %v223
        %1722 = vrot.lane.b32.xlu0 %v1718, 126
        %v1723 = vpop.permute.xlu0 %1722
        %1724 = vrot.lane.b32.xlu0 %v1719, 126
        %v1725 = vpop.permute.xlu0 %1724
        %v1728 = vadd.f32 %v1714, %v1723
        %v1729 = vadd.f32 %v1715, %v1725
        %s1730 = sld [smem:[#allocation2 + $0x84]]
        %v1731 = vstv %s1730
        %v1732 = vmul.f32 %v1731, %v230
        %v1733 = vmul.f32 %v1731, %v231
        %v1734 = vadd.f32 %v1728, %v1732
        %v1735 = vadd.f32 %v1729, %v1733
        %s1736 = sld [smem:[#allocation2 + $0x85]]
        %v1737 = vstv %s1736
        %v1738 = vmul.f32 %v1737, %v230
        %v1739 = vmul.f32 %v1737, %v231
        %1742 = vrot.lane.b32.xlu0 %v1738, 127
        %v1743 = vpop.permute.xlu0 %1742
        %1744 = vrot.lane.b32.xlu0 %v1739, 127
        %v1745 = vpop.permute.xlu0 %1744
        %v1748 = vadd.f32 %v1734, %v1743
        %v1749 = vadd.f32 %v1735, %v1745
        %s1750 = sld [smem:[#allocation2 + $0x86]]
        %v1751 = vstv %s1750
        %v1752 = vmul.f32 %v1751, %v230
        %v1753 = vmul.f32 %v1751, %v231
        %1756 = vrot.lane.b32.xlu0 %v1752, 126
        %v1757 = vpop.permute.xlu0 %1756
        %1758 = vrot.lane.b32.xlu0 %v1753, 126
        %v1759 = vpop.permute.xlu0 %1758
        %v1762 = vadd.f32 %v1748, %v1757
        %v1763 = vadd.f32 %v1749, %v1759
        %s1764 = sld [smem:[#allocation2 + $0x87]]
        %v1765 = vstv %s1764
        %v1766 = vmul.f32 %v1765, %v216
        %v1767 = vmul.f32 %v1765, %v217
        %v1768 = vadd.f32 %v1762, %v1766
        %v1769 = vadd.f32 %v1763, %v1767
        %s1770 = sld [smem:[#allocation2 + $0x88]]
        %v1771 = vstv %s1770
        %v1772 = vmul.f32 %v1771, %v216
        %v1773 = vmul.f32 %v1771, %v217
        %1776 = vrot.lane.b32.xlu0 %v1772, 127
        %v1777 = vpop.permute.xlu0 %1776
        %1778 = vrot.lane.b32.xlu0 %v1773, 127
        %v1779 = vpop.permute.xlu0 %1778
        %v1782 = vadd.f32 %v1768, %v1777
        %v1783 = vadd.f32 %v1769, %v1779
        %s1784 = sld [smem:[#allocation2 + $0x89]]
        %v1785 = vstv %s1784
        %v1786 = vmul.f32 %v1785, %v216
        %v1787 = vmul.f32 %v1785, %v217
        %1790 = vrot.lane.b32.xlu0 %v1786, 126
        %v1791 = vpop.permute.xlu0 %1790
        %1792 = vrot.lane.b32.xlu0 %v1787, 126
        %v1793 = vpop.permute.xlu0 %1792
        %v1796 = vadd.f32 %v1782, %v1791
        %v1797 = vadd.f32 %v1783, %v1793
        %s1798 = sld [smem:[#allocation2 + $0x8a]]
        %v1799 = vstv %s1798
        %v1800 = vmul.f32 %v1799, %v224
        %v1801 = vmul.f32 %v1799, %v225
        %v1802 = vadd.f32 %v1796, %v1800
        %v1803 = vadd.f32 %v1797, %v1801
        %s1804 = sld [smem:[#allocation2 + $0x8b]]
        %v1805 = vstv %s1804
        %v1806 = vmul.f32 %v1805, %v224
        %v1807 = vmul.f32 %v1805, %v225
        %1810 = vrot.lane.b32.xlu0 %v1806, 127
        %v1811 = vpop.permute.xlu0 %1810
        %1812 = vrot.lane.b32.xlu0 %v1807, 127
        %v1813 = vpop.permute.xlu0 %1812
        %v1816 = vadd.f32 %v1802, %v1811
        %v1817 = vadd.f32 %v1803, %v1813
        %s1818 = sld [smem:[#allocation2 + $0x8c]]
        %v1819 = vstv %s1818
        %v1820 = vmul.f32 %v1819, %v224
        %v1821 = vmul.f32 %v1819, %v225
        %1824 = vrot.lane.b32.xlu0 %v1820, 126
        %v1825 = vpop.permute.xlu0 %1824
        %1826 = vrot.lane.b32.xlu0 %v1821, 126
        %v1827 = vpop.permute.xlu0 %1826
        %v1830 = vadd.f32 %v1816, %v1825
        %v1831 = vadd.f32 %v1817, %v1827
        %s1832 = sld [smem:[#allocation2 + $0x8d]]
        %v1833 = vstv %s1832
        %v1834 = vmul.f32 %v1833, %v232
        %v1835 = vmul.f32 %v1833, %v233
        %v1836 = vadd.f32 %v1830, %v1834
        %v1837 = vadd.f32 %v1831, %v1835
        %s1838 = sld [smem:[#allocation2 + $0x8e]]
        %v1839 = vstv %s1838
        %v1840 = vmul.f32 %v1839, %v232
        %v1841 = vmul.f32 %v1839, %v233
        %1844 = vrot.lane.b32.xlu0 %v1840, 127
        %v1845 = vpop.permute.xlu0 %1844
        %1846 = vrot.lane.b32.xlu0 %v1841, 127
        %v1847 = vpop.permute.xlu0 %1846
        %v1850 = vadd.f32 %v1836, %v1845
        %v1851 = vadd.f32 %v1837, %v1847
        %s1852 = sld [smem:[#allocation2 + $0x8f]]
        %v1853 = vstv %s1852
        %v1854 = vmul.f32 %v1853, %v232
        %v1855 = vmul.f32 %v1853, %v233
        %1858 = vrot.lane.b32.xlu0 %v1854, 126
        %v1859 = vpop.permute.xlu0 %1858
        %1860 = vrot.lane.b32.xlu0 %v1855, 126
        %v1861 = vpop.permute.xlu0 %1860
        %v1864 = vadd.f32 %v1850, %v1859
        %v1865 = vadd.f32 %v1851, %v1861
        %s1866 = sld [smem:[#allocation2 + $0x90]]
        %v1867 = vstv %s1866
        %v1868 = vmul.f32 %v1867, %v210
        %v1869 = vmul.f32 %v1867, %v211
        %v1870 = vadd.f32 %v1868, 0.0
        %v1871 = vadd.f32 %v1869, 0.0
        %s1872 = sld [smem:[#allocation2 + $0x91]]
        %v1873 = vstv %s1872
        %v1874 = vmul.f32 %v1873, %v210
        %v1875 = vmul.f32 %v1873, %v211
        %1878 = vrot.lane.b32.xlu0 %v1874, 127
        %v1879 = vpop.permute.xlu0 %1878
        %1880 = vrot.lane.b32.xlu0 %v1875, 127
        %v1881 = vpop.permute.xlu0 %1880
        %v1884 = vadd.f32 %v1870, %v1879
        %v1885 = vadd.f32 %v1871, %v1881
        %s1886 = sld [smem:[#allocation2 + $0x92]]
        %v1887 = vstv %s1886
        %v1888 = vmul.f32 %v1887, %v210
        %v1889 = vmul.f32 %v1887, %v211
        %1892 = vrot.lane.b32.xlu0 %v1888, 126
        %v1893 = vpop.permute.xlu0 %1892
        %1894 = vrot.lane.b32.xlu0 %v1889, 126
        %v1895 = vpop.permute.xlu0 %1894
        %v1898 = vadd.f32 %v1884, %v1893
        %v1899 = vadd.f32 %v1885, %v1895
        %s1900 = sld [smem:[#allocation2 + $0x93]]
        %v1901 = vstv %s1900
        %v1902 = vmul.f32 %v1901, %v218
        %v1903 = vmul.f32 %v1901, %v219
        %v1904 = vadd.f32 %v1898, %v1902
        %v1905 = vadd.f32 %v1899, %v1903
        %s1906 = sld [smem:[#allocation2 + $0x94]]
        %v1907 = vstv %s1906
        %v1908 = vmul.f32 %v1907, %v218
        %v1909 = vmul.f32 %v1907, %v219
        %1912 = vrot.lane.b32.xlu0 %v1908, 127
        %v1913 = vpop.permute.xlu0 %1912
        %1914 = vrot.lane.b32.xlu0 %v1909, 127
        %v1915 = vpop.permute.xlu0 %1914
        %v1918 = vadd.f32 %v1904, %v1913
        %v1919 = vadd.f32 %v1905, %v1915
        %s1920 = sld [smem:[#allocation2 + $0x95]]
        %v1921 = vstv %s1920
        %v1922 = vmul.f32 %v1921, %v218
        %v1923 = vmul.f32 %v1921, %v219
        %1926 = vrot.lane.b32.xlu0 %v1922, 126
        %v1927 = vpop.permute.xlu0 %1926
        %1928 = vrot.lane.b32.xlu0 %v1923, 126
        %v1929 = vpop.permute.xlu0 %1928
        %v1932 = vadd.f32 %v1918, %v1927
        %v1933 = vadd.f32 %v1919, %v1929
        %s1934 = sld [smem:[#allocation2 + $0x96]]
        %v1935 = vstv %s1934
        %v1936 = vmul.f32 %v1935, %v226
        %v1937 = vmul.f32 %v1935, %v227
        %v1938 = vadd.f32 %v1932, %v1936
        %v1939 = vadd.f32 %v1933, %v1937
        %s1940 = sld [smem:[#allocation2 + $0x97]]
        %v1941 = vstv %s1940
        %v1942 = vmul.f32 %v1941, %v226
        %v1943 = vmul.f32 %v1941, %v227
        %1946 = vrot.lane.b32.xlu0 %v1942, 127
        %v1947 = vpop.permute.xlu0 %1946
        %1948 = vrot.lane.b32.xlu0 %v1943, 127
        %v1949 = vpop.permute.xlu0 %1948
        %v1952 = vadd.f32 %v1938, %v1947
        %v1953 = vadd.f32 %v1939, %v1949
        %s1954 = sld [smem:[#allocation2 + $0x98]]
        %v1955 = vstv %s1954
        %v1956 = vmul.f32 %v1955, %v226
        %v1957 = vmul.f32 %v1955, %v227
        %1960 = vrot.lane.b32.xlu0 %v1956, 126
        %v1961 = vpop.permute.xlu0 %1960
        %1962 = vrot.lane.b32.xlu0 %v1957, 126
        %v1963 = vpop.permute.xlu0 %1962
        %v1966 = vadd.f32 %v1952, %v1961
        %v1967 = vadd.f32 %v1953, %v1963
        %s1968 = sld [smem:[#allocation2 + $0x99]]
        %v1969 = vstv %s1968
        %v1970 = vmul.f32 %v1969, %v212
        %v1971 = vmul.f32 %v1969, %v213
        %v1972 = vadd.f32 %v1966, %v1970
        %v1973 = vadd.f32 %v1967, %v1971
        %s1974 = sld [smem:[#allocation2 + $0x9a]]
        %v1975 = vstv %s1974
        %v1976 = vmul.f32 %v1975, %v212
        %v1977 = vmul.f32 %v1975, %v213
        %1980 = vrot.lane.b32.xlu0 %v1976, 127
        %v1981 = vpop.permute.xlu0 %1980
        %1982 = vrot.lane.b32.xlu0 %v1977, 127
        %v1983 = vpop.permute.xlu0 %1982
        %v1986 = vadd.f32 %v1972, %v1981
        %v1987 = vadd.f32 %v1973, %v1983
        %s1988 = sld [smem:[#allocation2 + $0x9b]]
        %v1989 = vstv %s1988
        %v1990 = vmul.f32 %v1989, %v212
        %v1991 = vmul.f32 %v1989, %v213
        %1994 = vrot.lane.b32.xlu0 %v1990, 126
        %v1995 = vpop.permute.xlu0 %1994
        %1996 = vrot.lane.b32.xlu0 %v1991, 126
        %v1997 = vpop.permute.xlu0 %1996
        %v2000 = vadd.f32 %v1986, %v1995
        %v2001 = vadd.f32 %v1987, %v1997
        %s2002 = sld [smem:[#allocation2 + $0x9c]]
        %v2003 = vstv %s2002
        %v2004 = vmul.f32 %v2003, %v220
        %v2005 = vmul.f32 %v2003, %v221
        %v2006 = vadd.f32 %v2000, %v2004
        %v2007 = vadd.f32 %v2001, %v2005
        %s2008 = sld [smem:[#allocation2 + $0x9d]]
        %v2009 = vstv %s2008
        %v2010 = vmul.f32 %v2009, %v220
        %v2011 = vmul.f32 %v2009, %v221
        %2014 = vrot.lane.b32.xlu0 %v2010, 127
        %v2015 = vpop.permute.xlu0 %2014
        %2016 = vrot.lane.b32.xlu0 %v2011, 127
        %v2017 = vpop.permute.xlu0 %2016
        %v2020 = vadd.f32 %v2006, %v2015
        %v2021 = vadd.f32 %v2007, %v2017
        %s2022 = sld [smem:[#allocation2 + $0x9e]]
        %v2023 = vstv %s2022
        %v2024 = vmul.f32 %v2023, %v220
        %v2025 = vmul.f32 %v2023, %v221
        %2028 = vrot.lane.b32.xlu0 %v2024, 126
        %v2029 = vpop.permute.xlu0 %2028
        %2030 = vrot.lane.b32.xlu0 %v2025, 126
        %v2031 = vpop.permute.xlu0 %2030
        %v2034 = vadd.f32 %v2020, %v2029
        %v2035 = vadd.f32 %v2021, %v2031
        %s2036 = sld [smem:[#allocation2 + $0x9f]]
        %v2037 = vstv %s2036
        %v2038 = vmul.f32 %v2037, %v228
        %v2039 = vmul.f32 %v2037, %v229
        %v2040 = vadd.f32 %v2034, %v2038
        %v2041 = vadd.f32 %v2035, %v2039
        %s2042 = sld [smem:[#allocation2 + $0xa0]]
        %v2043 = vstv %s2042
        %v2044 = vmul.f32 %v2043, %v228
        %v2045 = vmul.f32 %v2043, %v229
        %2048 = vrot.lane.b32.xlu0 %v2044, 127
        %v2049 = vpop.permute.xlu0 %2048
        %2050 = vrot.lane.b32.xlu0 %v2045, 127
        %v2051 = vpop.permute.xlu0 %2050
        %v2054 = vadd.f32 %v2040, %v2049
        %v2055 = vadd.f32 %v2041, %v2051
        %s2056 = sld [smem:[#allocation2 + $0xa1]]
        %v2057 = vstv %s2056
        %v2058 = vmul.f32 %v2057, %v228
        %v2059 = vmul.f32 %v2057, %v229
        %2062 = vrot.lane.b32.xlu0 %v2058, 126
        %v2063 = vpop.permute.xlu0 %2062
        %2064 = vrot.lane.b32.xlu0 %v2059, 126
        %v2065 = vpop.permute.xlu0 %2064
        %v2068 = vadd.f32 %v2054, %v2063
        %v2069 = vadd.f32 %v2055, %v2065
        %s2070 = sld [smem:[#allocation2 + $0xa2]]
        %v2071 = vstv %s2070
        %v2072 = vmul.f32 %v2071, %v214
        %v2073 = vmul.f32 %v2071, %v215
        %v2074 = vadd.f32 %v2068, %v2072
        %v2075 = vadd.f32 %v2069, %v2073
        %s2076 = sld [smem:[#allocation2 + $0xa3]]
        %v2077 = vstv %s2076
        %v2078 = vmul.f32 %v2077, %v214
        %v2079 = vmul.f32 %v2077, %v215
        %2082 = vrot.lane.b32.xlu0 %v2078, 127
        %v2083 = vpop.permute.xlu0 %2082
        %2084 = vrot.lane.b32.xlu0 %v2079, 127
        %v2085 = vpop.permute.xlu0 %2084
        %v2088 = vadd.f32 %v2074, %v2083
        %v2089 = vadd.f32 %v2075, %v2085
        %s2090 = sld [smem:[#allocation2 + $0xa4]]
        %v2091 = vstv %s2090
        %v2092 = vmul.f32 %v2091, %v214
        %v2093 = vmul.f32 %v2091, %v215
        %2096 = vrot.lane.b32.xlu0 %v2092, 126
        %v2097 = vpop.permute.xlu0 %2096
        %2098 = vrot.lane.b32.xlu0 %v2093, 126
        %v2099 = vpop.permute.xlu0 %2098
        %v2102 = vadd.f32 %v2088, %v2097
        %v2103 = vadd.f32 %v2089, %v2099
        %s2104 = sld [smem:[#allocation2 + $0xa5]]
        %v2105 = vstv %s2104
        %v2106 = vmul.f32 %v2105, %v222
        %v2107 = vmul.f32 %v2105, %v223
        %v2108 = vadd.f32 %v2102, %v2106
        %v2109 = vadd.f32 %v2103, %v2107
        %s2110 = sld [smem:[#allocation2 + $0xa6]]
        %v2111 = vstv %s2110
        %v2112 = vmul.f32 %v2111, %v222
        %v2113 = vmul.f32 %v2111, %v223
        %2116 = vrot.lane.b32.xlu0 %v2112, 127
        %v2117 = vpop.permute.xlu0 %2116
        %2118 = vrot.lane.b32.xlu0 %v2113, 127
        %v2119 = vpop.permute.xlu0 %2118
        %v2122 = vadd.f32 %v2108, %v2117
        %v2123 = vadd.f32 %v2109, %v2119
        %s2124 = sld [smem:[#allocation2 + $0xa7]]
        %v2125 = vstv %s2124
        %v2126 = vmul.f32 %v2125, %v222
        %v2127 = vmul.f32 %v2125, %v223
        %2130 = vrot.lane.b32.xlu0 %v2126, 126
        %v2131 = vpop.permute.xlu0 %2130
        %2132 = vrot.lane.b32.xlu0 %v2127, 126
        %v2133 = vpop.permute.xlu0 %2132
        %v2136 = vadd.f32 %v2122, %v2131
        %v2137 = vadd.f32 %v2123, %v2133
        %s2138 = sld [smem:[#allocation2 + $0xa8]]
        %v2139 = vstv %s2138
        %v2140 = vmul.f32 %v2139, %v230
        %v2141 = vmul.f32 %v2139, %v231
        %v2142 = vadd.f32 %v2136, %v2140
        %v2143 = vadd.f32 %v2137, %v2141
        %s2144 = sld [smem:[#allocation2 + $0xa9]]
        %v2145 = vstv %s2144
        %v2146 = vmul.f32 %v2145, %v230
        %v2147 = vmul.f32 %v2145, %v231
        %2150 = vrot.lane.b32.xlu0 %v2146, 127
        %v2151 = vpop.permute.xlu0 %2150
        %2152 = vrot.lane.b32.xlu0 %v2147, 127
        %v2153 = vpop.permute.xlu0 %2152
        %v2156 = vadd.f32 %v2142, %v2151
        %v2157 = vadd.f32 %v2143, %v2153
        %s2158 = sld [smem:[#allocation2 + $0xaa]]
        %v2159 = vstv %s2158
        %v2160 = vmul.f32 %v2159, %v230
        %v2161 = vmul.f32 %v2159, %v231
        %2164 = vrot.lane.b32.xlu0 %v2160, 126
        %v2165 = vpop.permute.xlu0 %2164
        %2166 = vrot.lane.b32.xlu0 %v2161, 126
        %v2167 = vpop.permute.xlu0 %2166
        %v2170 = vadd.f32 %v2156, %v2165
        %v2171 = vadd.f32 %v2157, %v2167
        %s2172 = sld [smem:[#allocation2 + $0xab]]
        %v2173 = vstv %s2172
        %v2174 = vmul.f32 %v2173, %v216
        %v2175 = vmul.f32 %v2173, %v217
        %v2176 = vadd.f32 %v2170, %v2174
        %v2177 = vadd.f32 %v2171, %v2175
        %s2178 = sld [smem:[#allocation2 + $0xac]]
        %v2179 = vstv %s2178
        %v2180 = vmul.f32 %v2179, %v216
        %v2181 = vmul.f32 %v2179, %v217
        %2184 = vrot.lane.b32.xlu0 %v2180, 127
        %v2185 = vpop.permute.xlu0 %2184
        %2186 = vrot.lane.b32.xlu0 %v2181, 127
        %v2187 = vpop.permute.xlu0 %2186
        %v2190 = vadd.f32 %v2176, %v2185
        %v2191 = vadd.f32 %v2177, %v2187
        %s2192 = sld [smem:[#allocation2 + $0xad]]
        %v2193 = vstv %s2192
        %v2194 = vmul.f32 %v2193, %v216
        %v2195 = vmul.f32 %v2193, %v217
        %2198 = vrot.lane.b32.xlu0 %v2194, 126
        %v2199 = vpop.permute.xlu0 %2198
        %2200 = vrot.lane.b32.xlu0 %v2195, 126
        %v2201 = vpop.permute.xlu0 %2200
        %v2204 = vadd.f32 %v2190, %v2199
        %v2205 = vadd.f32 %v2191, %v2201
        %s2206 = sld [smem:[#allocation2 + $0xae]]
        %v2207 = vstv %s2206
        %v2208 = vmul.f32 %v2207, %v224
        %v2209 = vmul.f32 %v2207, %v225
        %v2210 = vadd.f32 %v2204, %v2208
        %v2211 = vadd.f32 %v2205, %v2209
        %s2212 = sld [smem:[#allocation2 + $0xaf]]
        %v2213 = vstv %s2212
        %v2214 = vmul.f32 %v2213, %v224
        %v2215 = vmul.f32 %v2213, %v225
        %2218 = vrot.lane.b32.xlu0 %v2214, 127
        %v2219 = vpop.permute.xlu0 %2218
        %2220 = vrot.lane.b32.xlu0 %v2215, 127
        %v2221 = vpop.permute.xlu0 %2220
        %v2224 = vadd.f32 %v2210, %v2219
        %v2225 = vadd.f32 %v2211, %v2221
        %s2226 = sld [smem:[#allocation2 + $0xb0]]
        %v2227 = vstv %s2226
        %v2228 = vmul.f32 %v2227, %v224
        %v2229 = vmul.f32 %v2227, %v225
        %2232 = vrot.lane.b32.xlu0 %v2228, 126
        %v2233 = vpop.permute.xlu0 %2232
        %2234 = vrot.lane.b32.xlu0 %v2229, 126
        %v2235 = vpop.permute.xlu0 %2234
        %v2238 = vadd.f32 %v2224, %v2233
        %v2239 = vadd.f32 %v2225, %v2235
        %s2240 = sld [smem:[#allocation2 + $0xb1]]
        %v2241 = vstv %s2240
        %v2242 = vmul.f32 %v2241, %v232
        %v2243 = vmul.f32 %v2241, %v233
        %v2244 = vadd.f32 %v2238, %v2242
        %v2245 = vadd.f32 %v2239, %v2243
        %s2246 = sld [smem:[#allocation2 + $0xb2]]
        %v2247 = vstv %s2246
        %v2248 = vmul.f32 %v2247, %v232
        %v2249 = vmul.f32 %v2247, %v233
        %2252 = vrot.lane.b32.xlu0 %v2248, 127
        %v2253 = vpop.permute.xlu0 %2252
        %2254 = vrot.lane.b32.xlu0 %v2249, 127
        %v2255 = vpop.permute.xlu0 %2254
        %v2258 = vadd.f32 %v2244, %v2253
        %v2259 = vadd.f32 %v2245, %v2255
        %s2260 = sld [smem:[#allocation2 + $0xb3]]
        %v2261 = vstv %s2260
        %v2262 = vmul.f32 %v2261, %v232
        %v2263 = vmul.f32 %v2261, %v233
        %2266 = vrot.lane.b32.xlu0 %v2262, 126
        %v2267 = vpop.permute.xlu0 %2266
        %2268 = vrot.lane.b32.xlu0 %v2263, 126
        %v2269 = vpop.permute.xlu0 %2268
        %v2272 = vadd.f32 %v2258, %v2267
        %v2273 = vadd.f32 %v2259, %v2269
        %s2274 = sld [smem:[#allocation2 + $0xb4]]
        %v2275 = vstv %s2274
        %v2276 = vmul.f32 %v2275, %v210
        %v2277 = vmul.f32 %v2275, %v211
        %v2278 = vadd.f32 %v2276, 0.0
        %v2279 = vadd.f32 %v2277, 0.0
        %s2280 = sld [smem:[#allocation2 + $0xb5]]
        %v2281 = vstv %s2280
        %v2282 = vmul.f32 %v2281, %v210
        %v2283 = vmul.f32 %v2281, %v211
        %2286 = vrot.lane.b32.xlu0 %v2282, 127
        %v2287 = vpop.permute.xlu0 %2286
        %2288 = vrot.lane.b32.xlu0 %v2283, 127
        %v2289 = vpop.permute.xlu0 %2288
        %v2292 = vadd.f32 %v2278, %v2287
        %v2293 = vadd.f32 %v2279, %v2289
        %s2294 = sld [smem:[#allocation2 + $0xb6]]
        %v2295 = vstv %s2294
        %v2296 = vmul.f32 %v2295, %v210
        %v2297 = vmul.f32 %v2295, %v211
        %2300 = vrot.lane.b32.xlu0 %v2296, 126
        %v2301 = vpop.permute.xlu0 %2300
        %2302 = vrot.lane.b32.xlu0 %v2297, 126
        %v2303 = vpop.permute.xlu0 %2302
        %v2306 = vadd.f32 %v2292, %v2301
        %v2307 = vadd.f32 %v2293, %v2303
        %s2308 = sld [smem:[#allocation2 + $0xb7]]
        %v2309 = vstv %s2308
        %v2310 = vmul.f32 %v2309, %v218
        %v2311 = vmul.f32 %v2309, %v219
        %v2312 = vadd.f32 %v2306, %v2310
        %v2313 = vadd.f32 %v2307, %v2311
        %s2314 = sld [smem:[#allocation2 + $0xb8]]
        %v2315 = vstv %s2314
        %v2316 = vmul.f32 %v2315, %v218
        %v2317 = vmul.f32 %v2315, %v219
        %2320 = vrot.lane.b32.xlu0 %v2316, 127
        %v2321 = vpop.permute.xlu0 %2320
        %2322 = vrot.lane.b32.xlu0 %v2317, 127
        %v2323 = vpop.permute.xlu0 %2322
        %v2326 = vadd.f32 %v2312, %v2321
        %v2327 = vadd.f32 %v2313, %v2323
        %s2328 = sld [smem:[#allocation2 + $0xb9]]
        %v2329 = vstv %s2328
        %v2330 = vmul.f32 %v2329, %v218
        %v2331 = vmul.f32 %v2329, %v219
        %2334 = vrot.lane.b32.xlu0 %v2330, 126
        %v2335 = vpop.permute.xlu0 %2334
        %2336 = vrot.lane.b32.xlu0 %v2331, 126
        %v2337 = vpop.permute.xlu0 %2336
        %v2340 = vadd.f32 %v2326, %v2335
        %v2341 = vadd.f32 %v2327, %v2337
        %s2342 = sld [smem:[#allocation2 + $0xba]]
        %v2343 = vstv %s2342
        %v2344 = vmul.f32 %v2343, %v226
        %v2345 = vmul.f32 %v2343, %v227
        %v2346 = vadd.f32 %v2340, %v2344
        %v2347 = vadd.f32 %v2341, %v2345
        %s2348 = sld [smem:[#allocation2 + $0xbb]]
        %v2349 = vstv %s2348
        %v2350 = vmul.f32 %v2349, %v226
        %v2351 = vmul.f32 %v2349, %v227
        %2354 = vrot.lane.b32.xlu0 %v2350, 127
        %v2355 = vpop.permute.xlu0 %2354
        %2356 = vrot.lane.b32.xlu0 %v2351, 127
        %v2357 = vpop.permute.xlu0 %2356
        %v2360 = vadd.f32 %v2346, %v2355
        %v2361 = vadd.f32 %v2347, %v2357
        %s2362 = sld [smem:[#allocation2 + $0xbc]]
        %v2363 = vstv %s2362
        %v2364 = vmul.f32 %v2363, %v226
        %v2365 = vmul.f32 %v2363, %v227
        %2368 = vrot.lane.b32.xlu0 %v2364, 126
        %v2369 = vpop.permute.xlu0 %2368
        %2370 = vrot.lane.b32.xlu0 %v2365, 126
        %v2371 = vpop.permute.xlu0 %2370
        %v2374 = vadd.f32 %v2360, %v2369
        %v2375 = vadd.f32 %v2361, %v2371
        %s2376 = sld [smem:[#allocation2 + $0xbd]]
        %v2377 = vstv %s2376
        %v2378 = vmul.f32 %v2377, %v212
        %v2379 = vmul.f32 %v2377, %v213
        %v2380 = vadd.f32 %v2374, %v2378
        %v2381 = vadd.f32 %v2375, %v2379
        %s2382 = sld [smem:[#allocation2 + $0xbe]]
        %v2383 = vstv %s2382
        %v2384 = vmul.f32 %v2383, %v212
        %v2385 = vmul.f32 %v2383, %v213
        %2388 = vrot.lane.b32.xlu0 %v2384, 127
        %v2389 = vpop.permute.xlu0 %2388
        %2390 = vrot.lane.b32.xlu0 %v2385, 127
        %v2391 = vpop.permute.xlu0 %2390
        %v2394 = vadd.f32 %v2380, %v2389
        %v2395 = vadd.f32 %v2381, %v2391
        %s2396 = sld [smem:[#allocation2 + $0xbf]]
        %v2397 = vstv %s2396
        %v2398 = vmul.f32 %v2397, %v212
        %v2399 = vmul.f32 %v2397, %v213
        %2402 = vrot.lane.b32.xlu0 %v2398, 126
        %v2403 = vpop.permute.xlu0 %2402
        %2404 = vrot.lane.b32.xlu0 %v2399, 126
        %v2405 = vpop.permute.xlu0 %2404
        %v2408 = vadd.f32 %v2394, %v2403
        %v2409 = vadd.f32 %v2395, %v2405
        %s2410 = sld [smem:[#allocation2 + $0xc0]]
        %v2411 = vstv %s2410
        %v2412 = vmul.f32 %v2411, %v220
        %v2413 = vmul.f32 %v2411, %v221
        %v2414 = vadd.f32 %v2408, %v2412
        %v2415 = vadd.f32 %v2409, %v2413
        %s2416 = sld [smem:[#allocation2 + $0xc1]]
        %v2417 = vstv %s2416
        %v2418 = vmul.f32 %v2417, %v220
        %v2419 = vmul.f32 %v2417, %v221
        %2422 = vrot.lane.b32.xlu0 %v2418, 127
        %v2423 = vpop.permute.xlu0 %2422
        %2424 = vrot.lane.b32.xlu0 %v2419, 127
        %v2425 = vpop.permute.xlu0 %2424
        %v2428 = vadd.f32 %v2414, %v2423
        %v2429 = vadd.f32 %v2415, %v2425
        %s2430 = sld [smem:[#allocation2 + $0xc2]]
        %v2431 = vstv %s2430
        %v2432 = vmul.f32 %v2431, %v220
        %v2433 = vmul.f32 %v2431, %v221
        %2436 = vrot.lane.b32.xlu0 %v2432, 126
        %v2437 = vpop.permute.xlu0 %2436
        %2438 = vrot.lane.b32.xlu0 %v2433, 126
        %v2439 = vpop.permute.xlu0 %2438
        %v2442 = vadd.f32 %v2428, %v2437
        %v2443 = vadd.f32 %v2429, %v2439
        %s2444 = sld [smem:[#allocation2 + $0xc3]]
        %v2445 = vstv %s2444
        %v2446 = vmul.f32 %v2445, %v228
        %v2447 = vmul.f32 %v2445, %v229
        %v2448 = vadd.f32 %v2442, %v2446
        %v2449 = vadd.f32 %v2443, %v2447
        %s2450 = sld [smem:[#allocation2 + $0xc4]]
        %v2451 = vstv %s2450
        %v2452 = vmul.f32 %v2451, %v228
        %v2453 = vmul.f32 %v2451, %v229
        %2456 = vrot.lane.b32.xlu0 %v2452, 127
        %v2457 = vpop.permute.xlu0 %2456
        %2458 = vrot.lane.b32.xlu0 %v2453, 127
        %v2459 = vpop.permute.xlu0 %2458
        %v2462 = vadd.f32 %v2448, %v2457
        %v2463 = vadd.f32 %v2449, %v2459
        %s2464 = sld [smem:[#allocation2 + $0xc5]]
        %v2465 = vstv %s2464
        %v2466 = vmul.f32 %v2465, %v228
        %v2467 = vmul.f32 %v2465, %v229
        %2470 = vrot.lane.b32.xlu0 %v2466, 126
        %v2471 = vpop.permute.xlu0 %2470
        %2472 = vrot.lane.b32.xlu0 %v2467, 126
        %v2473 = vpop.permute.xlu0 %2472
        %v2476 = vadd.f32 %v2462, %v2471
        %v2477 = vadd.f32 %v2463, %v2473
        %s2478 = sld [smem:[#allocation2 + $0xc6]]
        %v2479 = vstv %s2478
        %v2480 = vmul.f32 %v2479, %v214
        %v2481 = vmul.f32 %v2479, %v215
        %v2482 = vadd.f32 %v2476, %v2480
        %v2483 = vadd.f32 %v2477, %v2481
        %s2484 = sld [smem:[#allocation2 + $0xc7]]
        %v2485 = vstv %s2484
        %v2486 = vmul.f32 %v2485, %v214
        %v2487 = vmul.f32 %v2485, %v215
        %2490 = vrot.lane.b32.xlu0 %v2486, 127
        %v2491 = vpop.permute.xlu0 %2490
        %2492 = vrot.lane.b32.xlu0 %v2487, 127
        %v2493 = vpop.permute.xlu0 %2492
        %v2496 = vadd.f32 %v2482, %v2491
        %v2497 = vadd.f32 %v2483, %v2493
        %s2498 = sld [smem:[#allocation2 + $0xc8]]
        %v2499 = vstv %s2498
        %v2500 = vmul.f32 %v2499, %v214
        %v2501 = vmul.f32 %v2499, %v215
        %2504 = vrot.lane.b32.xlu0 %v2500, 126
        %v2505 = vpop.permute.xlu0 %2504
        %2506 = vrot.lane.b32.xlu0 %v2501, 126
        %v2507 = vpop.permute.xlu0 %2506
        %v2510 = vadd.f32 %v2496, %v2505
        %v2511 = vadd.f32 %v2497, %v2507
        %s2512 = sld [smem:[#allocation2 + $0xc9]]
        %v2513 = vstv %s2512
        %v2514 = vmul.f32 %v2513, %v222
        %v2515 = vmul.f32 %v2513, %v223
        %v2516 = vadd.f32 %v2510, %v2514
        %v2517 = vadd.f32 %v2511, %v2515
        %s2518 = sld [smem:[#allocation2 + $0xca]]
        %v2519 = vstv %s2518
        %v2520 = vmul.f32 %v2519, %v222
        %v2521 = vmul.f32 %v2519, %v223
        %2524 = vrot.lane.b32.xlu0 %v2520, 127
        %v2525 = vpop.permute.xlu0 %2524
        %2526 = vrot.lane.b32.xlu0 %v2521, 127
        %v2527 = vpop.permute.xlu0 %2526
        %v2530 = vadd.f32 %v2516, %v2525
        %v2531 = vadd.f32 %v2517, %v2527
        %s2532 = sld [smem:[#allocation2 + $0xcb]]
        %v2533 = vstv %s2532
        %v2534 = vmul.f32 %v2533, %v222
        %v2535 = vmul.f32 %v2533, %v223
        %2538 = vrot.lane.b32.xlu0 %v2534, 126
        %v2539 = vpop.permute.xlu0 %2538
        %2540 = vrot.lane.b32.xlu0 %v2535, 126
        %v2541 = vpop.permute.xlu0 %2540
        %v2544 = vadd.f32 %v2530, %v2539
        %v2545 = vadd.f32 %v2531, %v2541
        %s2546 = sld [smem:[#allocation2 + $0xcc]]
        %v2547 = vstv %s2546
        %v2548 = vmul.f32 %v2547, %v230
        %v2549 = vmul.f32 %v2547, %v231
        %v2550 = vadd.f32 %v2544, %v2548
        %v2551 = vadd.f32 %v2545, %v2549
        %s2552 = sld [smem:[#allocation2 + $0xcd]]
        %v2553 = vstv %s2552
        %v2554 = vmul.f32 %v2553, %v230
        %v2555 = vmul.f32 %v2553, %v231
        %2558 = vrot.lane.b32.xlu0 %v2554, 127
        %v2559 = vpop.permute.xlu0 %2558
        %2560 = vrot.lane.b32.xlu0 %v2555, 127
        %v2561 = vpop.permute.xlu0 %2560
        %v2564 = vadd.f32 %v2550, %v2559
        %v2565 = vadd.f32 %v2551, %v2561
        %s2566 = sld [smem:[#allocation2 + $0xce]]
        %v2567 = vstv %s2566
        %v2568 = vmul.f32 %v2567, %v230
        %v2569 = vmul.f32 %v2567, %v231
        %2572 = vrot.lane.b32.xlu0 %v2568, 126
        %v2573 = vpop.permute.xlu0 %2572
        %2574 = vrot.lane.b32.xlu0 %v2569, 126
        %v2575 = vpop.permute.xlu0 %2574
        %v2578 = vadd.f32 %v2564, %v2573
        %v2579 = vadd.f32 %v2565, %v2575
        %s2580 = sld [smem:[#allocation2 + $0xcf]]
        %v2581 = vstv %s2580
        %v2582 = vmul.f32 %v2581, %v216
        %v2583 = vmul.f32 %v2581, %v217
        %v2584 = vadd.f32 %v2578, %v2582
        %v2585 = vadd.f32 %v2579, %v2583
        %s2586 = sld [smem:[#allocation2 + $0xd0]]
        %v2587 = vstv %s2586
        %v2588 = vmul.f32 %v2587, %v216
        %v2589 = vmul.f32 %v2587, %v217
        %2592 = vrot.lane.b32.xlu0 %v2588, 127
        %v2593 = vpop.permute.xlu0 %2592
        %2594 = vrot.lane.b32.xlu0 %v2589, 127
        %v2595 = vpop.permute.xlu0 %2594
        %v2598 = vadd.f32 %v2584, %v2593
        %v2599 = vadd.f32 %v2585, %v2595
        %s2600 = sld [smem:[#allocation2 + $0xd1]]
        %v2601 = vstv %s2600
        %v2602 = vmul.f32 %v2601, %v216
        %v2603 = vmul.f32 %v2601, %v217
        %2606 = vrot.lane.b32.xlu0 %v2602, 126
        %v2607 = vpop.permute.xlu0 %2606
        %2608 = vrot.lane.b32.xlu0 %v2603, 126
        %v2609 = vpop.permute.xlu0 %2608
        %v2612 = vadd.f32 %v2598, %v2607
        %v2613 = vadd.f32 %v2599, %v2609
        %s2614 = sld [smem:[#allocation2 + $0xd2]]
        %v2615 = vstv %s2614
        %v2616 = vmul.f32 %v2615, %v224
        %v2617 = vmul.f32 %v2615, %v225
        %v2618 = vadd.f32 %v2612, %v2616
        %v2619 = vadd.f32 %v2613, %v2617
        %s2620 = sld [smem:[#allocation2 + $0xd3]]
        %v2621 = vstv %s2620
        %v2622 = vmul.f32 %v2621, %v224
        %v2623 = vmul.f32 %v2621, %v225
        %2626 = vrot.lane.b32.xlu0 %v2622, 127
        %v2627 = vpop.permute.xlu0 %2626
        %2628 = vrot.lane.b32.xlu0 %v2623, 127
        %v2629 = vpop.permute.xlu0 %2628
        %v2632 = vadd.f32 %v2618, %v2627
        %v2633 = vadd.f32 %v2619, %v2629
        %s2634 = sld [smem:[#allocation2 + $0xd4]]
        %v2635 = vstv %s2634
        %v2636 = vmul.f32 %v2635, %v224
        %v2637 = vmul.f32 %v2635, %v225
        %2640 = vrot.lane.b32.xlu0 %v2636, 126
        %v2641 = vpop.permute.xlu0 %2640
        %2642 = vrot.lane.b32.xlu0 %v2637, 126
        %v2643 = vpop.permute.xlu0 %2642
        %v2646 = vadd.f32 %v2632, %v2641
        %v2647 = vadd.f32 %v2633, %v2643
        %s2648 = sld [smem:[#allocation2 + $0xd5]]
        %v2649 = vstv %s2648
        %v2650 = vmul.f32 %v2649, %v232
        %v2651 = vmul.f32 %v2649, %v233
        %v2652 = vadd.f32 %v2646, %v2650
        %v2653 = vadd.f32 %v2647, %v2651
        %s2654 = sld [smem:[#allocation2 + $0xd6]]
        %v2655 = vstv %s2654
        %v2656 = vmul.f32 %v2655, %v232
        %v2657 = vmul.f32 %v2655, %v233
        %2660 = vrot.lane.b32.xlu0 %v2656, 127
        %v2661 = vpop.permute.xlu0 %2660
        %2662 = vrot.lane.b32.xlu0 %v2657, 127
        %v2663 = vpop.permute.xlu0 %2662
        %v2666 = vadd.f32 %v2652, %v2661
        %v2667 = vadd.f32 %v2653, %v2663
        %s2668 = sld [smem:[#allocation2 + $0xd7]]
        %v2669 = vstv %s2668
        %v2670 = vmul.f32 %v2669, %v232
        %v2671 = vmul.f32 %v2669, %v233
        %2674 = vrot.lane.b32.xlu0 %v2670, 126
        %v2675 = vpop.permute.xlu0 %2674
        %2676 = vrot.lane.b32.xlu0 %v2671, 126
        %v2677 = vpop.permute.xlu0 %2676
        %v2680 = vadd.f32 %v2666, %v2675
        %v2681 = vadd.f32 %v2667, %v2677
        %s2682 = sld [smem:[#allocation2 + $0xd8]]
        %v2683 = vstv %s2682
        %v2684 = vmul.f32 %v2683, %v210
        %v2685 = vmul.f32 %v2683, %v211
        %v2686 = vadd.f32 %v2684, 0.0
        %v2687 = vadd.f32 %v2685, 0.0
        %s2688 = sld [smem:[#allocation2 + $0xd9]]
        %v2689 = vstv %s2688
        %v2690 = vmul.f32 %v2689, %v210
        %v2691 = vmul.f32 %v2689, %v211
        %2694 = vrot.lane.b32.xlu0 %v2690, 127
        %v2695 = vpop.permute.xlu0 %2694
        %2696 = vrot.lane.b32.xlu0 %v2691, 127
        %v2697 = vpop.permute.xlu0 %2696
        %v2700 = vadd.f32 %v2686, %v2695
        %v2701 = vadd.f32 %v2687, %v2697
        %s2702 = sld [smem:[#allocation2 + $0xda]]
        %v2703 = vstv %s2702
        %v2704 = vmul.f32 %v2703, %v210
        %v2705 = vmul.f32 %v2703, %v211
        %2708 = vrot.lane.b32.xlu0 %v2704, 126
        %v2709 = vpop.permute.xlu0 %2708
        %2710 = vrot.lane.b32.xlu0 %v2705, 126
        %v2711 = vpop.permute.xlu0 %2710
        %v2714 = vadd.f32 %v2700, %v2709
        %v2715 = vadd.f32 %v2701, %v2711
        %s2716 = sld [smem:[#allocation2 + $0xdb]]
        %v2717 = vstv %s2716
        %v2718 = vmul.f32 %v2717, %v218
        %v2719 = vmul.f32 %v2717, %v219
        %v2720 = vadd.f32 %v2714, %v2718
        %v2721 = vadd.f32 %v2715, %v2719
        %s2722 = sld [smem:[#allocation2 + $0xdc]]
        %v2723 = vstv %s2722
        %v2724 = vmul.f32 %v2723, %v218
        %v2725 = vmul.f32 %v2723, %v219
        %2728 = vrot.lane.b32.xlu0 %v2724, 127
        %v2729 = vpop.permute.xlu0 %2728
        %2730 = vrot.lane.b32.xlu0 %v2725, 127
        %v2731 = vpop.permute.xlu0 %2730
        %v2734 = vadd.f32 %v2720, %v2729
        %v2735 = vadd.f32 %v2721, %v2731
        %s2736 = sld [smem:[#allocation2 + $0xdd]]
        %v2737 = vstv %s2736
        %v2738 = vmul.f32 %v2737, %v218
        %v2739 = vmul.f32 %v2737, %v219
        %2742 = vrot.lane.b32.xlu0 %v2738, 126
        %v2743 = vpop.permute.xlu0 %2742
        %2744 = vrot.lane.b32.xlu0 %v2739, 126
        %v2745 = vpop.permute.xlu0 %2744
        %v2748 = vadd.f32 %v2734, %v2743
        %v2749 = vadd.f32 %v2735, %v2745
        %s2750 = sld [smem:[#allocation2 + $0xde]]
        %v2751 = vstv %s2750
        %v2752 = vmul.f32 %v2751, %v226
        %v2753 = vmul.f32 %v2751, %v227
        %v2754 = vadd.f32 %v2748, %v2752
        %v2755 = vadd.f32 %v2749, %v2753
        %s2756 = sld [smem:[#allocation2 + $0xdf]]
        %v2757 = vstv %s2756
        %v2758 = vmul.f32 %v2757, %v226
        %v2759 = vmul.f32 %v2757, %v227
        %2762 = vrot.lane.b32.xlu0 %v2758, 127
        %v2763 = vpop.permute.xlu0 %2762
        %2764 = vrot.lane.b32.xlu0 %v2759, 127
        %v2765 = vpop.permute.xlu0 %2764
        %v2768 = vadd.f32 %v2754, %v2763
        %v2769 = vadd.f32 %v2755, %v2765
        %s2770 = sld [smem:[#allocation2 + $0xe0]]
        %v2771 = vstv %s2770
        %v2772 = vmul.f32 %v2771, %v226
        %v2773 = vmul.f32 %v2771, %v227
        %2776 = vrot.lane.b32.xlu0 %v2772, 126
        %v2777 = vpop.permute.xlu0 %2776
        %2778 = vrot.lane.b32.xlu0 %v2773, 126
        %v2779 = vpop.permute.xlu0 %2778
        %v2782 = vadd.f32 %v2768, %v2777
        %v2783 = vadd.f32 %v2769, %v2779
        %s2784 = sld [smem:[#allocation2 + $0xe1]]
        %v2785 = vstv %s2784
        %v2786 = vmul.f32 %v2785, %v212
        %v2787 = vmul.f32 %v2785, %v213
        %v2788 = vadd.f32 %v2782, %v2786
        %v2789 = vadd.f32 %v2783, %v2787
        %s2790 = sld [smem:[#allocation2 + $0xe2]]
        %v2791 = vstv %s2790
        %v2792 = vmul.f32 %v2791, %v212
        %v2793 = vmul.f32 %v2791, %v213
        %2796 = vrot.lane.b32.xlu0 %v2792, 127
        %v2797 = vpop.permute.xlu0 %2796
        %2798 = vrot.lane.b32.xlu0 %v2793, 127
        %v2799 = vpop.permute.xlu0 %2798
        %v2802 = vadd.f32 %v2788, %v2797
        %v2803 = vadd.f32 %v2789, %v2799
        %s2804 = sld [smem:[#allocation2 + $0xe3]]
        %v2805 = vstv %s2804
        %v2806 = vmul.f32 %v2805, %v212
        %v2807 = vmul.f32 %v2805, %v213
        %2810 = vrot.lane.b32.xlu0 %v2806, 126
        %v2811 = vpop.permute.xlu0 %2810
        %2812 = vrot.lane.b32.xlu0 %v2807, 126
        %v2813 = vpop.permute.xlu0 %2812
        %v2816 = vadd.f32 %v2802, %v2811
        %v2817 = vadd.f32 %v2803, %v2813
        %s2818 = sld [smem:[#allocation2 + $0xe4]]
        %v2819 = vstv %s2818
        %v2820 = vmul.f32 %v2819, %v220
        %v2821 = vmul.f32 %v2819, %v221
        %v2822 = vadd.f32 %v2816, %v2820
        %v2823 = vadd.f32 %v2817, %v2821
        %s2824 = sld [smem:[#allocation2 + $0xe5]]
        %v2825 = vstv %s2824
        %v2826 = vmul.f32 %v2825, %v220
        %v2827 = vmul.f32 %v2825, %v221
        %2830 = vrot.lane.b32.xlu0 %v2826, 127
        %v2831 = vpop.permute.xlu0 %2830
        %2832 = vrot.lane.b32.xlu0 %v2827, 127
        %v2833 = vpop.permute.xlu0 %2832
        %v2836 = vadd.f32 %v2822, %v2831
        %v2837 = vadd.f32 %v2823, %v2833
        %s2838 = sld [smem:[#allocation2 + $0xe6]]
        %v2839 = vstv %s2838
        %v2840 = vmul.f32 %v2839, %v220
        %v2841 = vmul.f32 %v2839, %v221
        %2844 = vrot.lane.b32.xlu0 %v2840, 126
        %v2845 = vpop.permute.xlu0 %2844
        %2846 = vrot.lane.b32.xlu0 %v2841, 126
        %v2847 = vpop.permute.xlu0 %2846
        %v2850 = vadd.f32 %v2836, %v2845
        %v2851 = vadd.f32 %v2837, %v2847
        %s2852 = sld [smem:[#allocation2 + $0xe7]]
        %v2853 = vstv %s2852
        %v2854 = vmul.f32 %v2853, %v228
        %v2855 = vmul.f32 %v2853, %v229
        %v2856 = vadd.f32 %v2850, %v2854
        %v2857 = vadd.f32 %v2851, %v2855
        %s2858 = sld [smem:[#allocation2 + $0xe8]]
        %v2859 = vstv %s2858
        %v2860 = vmul.f32 %v2859, %v228
        %v2861 = vmul.f32 %v2859, %v229
        %2864 = vrot.lane.b32.xlu0 %v2860, 127
        %v2865 = vpop.permute.xlu0 %2864
        %2866 = vrot.lane.b32.xlu0 %v2861, 127
        %v2867 = vpop.permute.xlu0 %2866
        %v2870 = vadd.f32 %v2856, %v2865
        %v2871 = vadd.f32 %v2857, %v2867
        %s2872 = sld [smem:[#allocation2 + $0xe9]]
        %v2873 = vstv %s2872
        %v2874 = vmul.f32 %v2873, %v228
        %v2875 = vmul.f32 %v2873, %v229
        %2878 = vrot.lane.b32.xlu0 %v2874, 126
        %v2879 = vpop.permute.xlu0 %2878
        %2880 = vrot.lane.b32.xlu0 %v2875, 126
        %v2881 = vpop.permute.xlu0 %2880
        %v2884 = vadd.f32 %v2870, %v2879
        %v2885 = vadd.f32 %v2871, %v2881
        %s2886 = sld [smem:[#allocation2 + $0xea]]
        %v2887 = vstv %s2886
        %v2888 = vmul.f32 %v2887, %v214
        %v2889 = vmul.f32 %v2887, %v215
        %v2890 = vadd.f32 %v2884, %v2888
        %v2891 = vadd.f32 %v2885, %v2889
        %s2892 = sld [smem:[#allocation2 + $0xeb]]
        %v2893 = vstv %s2892
        %v2894 = vmul.f32 %v2893, %v214
        %v2895 = vmul.f32 %v2893, %v215
        %2898 = vrot.lane.b32.xlu0 %v2894, 127
        %v2899 = vpop.permute.xlu0 %2898
        %2900 = vrot.lane.b32.xlu0 %v2895, 127
        %v2901 = vpop.permute.xlu0 %2900
        %v2904 = vadd.f32 %v2890, %v2899
        %v2905 = vadd.f32 %v2891, %v2901
        %s2906 = sld [smem:[#allocation2 + $0xec]]
        %v2907 = vstv %s2906
        %v2908 = vmul.f32 %v2907, %v214
        %v2909 = vmul.f32 %v2907, %v215
        %2912 = vrot.lane.b32.xlu0 %v2908, 126
        %v2913 = vpop.permute.xlu0 %2912
        %2914 = vrot.lane.b32.xlu0 %v2909, 126
        %v2915 = vpop.permute.xlu0 %2914
        %v2918 = vadd.f32 %v2904, %v2913
        %v2919 = vadd.f32 %v2905, %v2915
        %s2920 = sld [smem:[#allocation2 + $0xed]]
        %v2921 = vstv %s2920
        %v2922 = vmul.f32 %v2921, %v222
        %v2923 = vmul.f32 %v2921, %v223
        %v2924 = vadd.f32 %v2918, %v2922
        %v2925 = vadd.f32 %v2919, %v2923
        %s2926 = sld [smem:[#allocation2 + $0xee]]
        %v2927 = vstv %s2926
        %v2928 = vmul.f32 %v2927, %v222
        %v2929 = vmul.f32 %v2927, %v223
        %2932 = vrot.lane.b32.xlu0 %v2928, 127
        %v2933 = vpop.permute.xlu0 %2932
        %2934 = vrot.lane.b32.xlu0 %v2929, 127
        %v2935 = vpop.permute.xlu0 %2934
        %v2938 = vadd.f32 %v2924, %v2933
        %v2939 = vadd.f32 %v2925, %v2935
        %s2940 = sld [smem:[#allocation2 + $0xef]]
        %v2941 = vstv %s2940
        %v2942 = vmul.f32 %v2941, %v222
        %v2943 = vmul.f32 %v2941, %v223
        %2946 = vrot.lane.b32.xlu0 %v2942, 126
        %v2947 = vpop.permute.xlu0 %2946
        %2948 = vrot.lane.b32.xlu0 %v2943, 126
        %v2949 = vpop.permute.xlu0 %2948
        %v2952 = vadd.f32 %v2938, %v2947
        %v2953 = vadd.f32 %v2939, %v2949
        %s2954 = sld [smem:[#allocation2 + $0xf0]]
        %v2955 = vstv %s2954
        %v2956 = vmul.f32 %v2955, %v230
        %v2957 = vmul.f32 %v2955, %v231
        %v2958 = vadd.f32 %v2952, %v2956
        %v2959 = vadd.f32 %v2953, %v2957
        %s2960 = sld [smem:[#allocation2 + $0xf1]]
        %v2961 = vstv %s2960
        %v2962 = vmul.f32 %v2961, %v230
        %v2963 = vmul.f32 %v2961, %v231
        %2966 = vrot.lane.b32.xlu0 %v2962, 127
        %v2967 = vpop.permute.xlu0 %2966
        %2968 = vrot.lane.b32.xlu0 %v2963, 127
        %v2969 = vpop.permute.xlu0 %2968
        %v2972 = vadd.f32 %v2958, %v2967
        %v2973 = vadd.f32 %v2959, %v2969
        %s2974 = sld [smem:[#allocation2 + $0xf2]]
        %v2975 = vstv %s2974
        %v2976 = vmul.f32 %v2975, %v230
        %v2977 = vmul.f32 %v2975, %v231
        %2980 = vrot.lane.b32.xlu0 %v2976, 126
        %v2981 = vpop.permute.xlu0 %2980
        %2982 = vrot.lane.b32.xlu0 %v2977, 126
        %v2983 = vpop.permute.xlu0 %2982
        %v2986 = vadd.f32 %v2972, %v2981
        %v2987 = vadd.f32 %v2973, %v2983
        %s2988 = sld [smem:[#allocation2 + $0xf3]]
        %v2989 = vstv %s2988
        %v2990 = vmul.f32 %v2989, %v216
        %v2991 = vmul.f32 %v2989, %v217
        %v2992 = vadd.f32 %v2986, %v2990
        %v2993 = vadd.f32 %v2987, %v2991
        %s2994 = sld [smem:[#allocation2 + $0xf4]]
        %v2995 = vstv %s2994
        %v2996 = vmul.f32 %v2995, %v216
        %v2997 = vmul.f32 %v2995, %v217
        %3000 = vrot.lane.b32.xlu0 %v2996, 127
        %v3001 = vpop.permute.xlu0 %3000
        %3002 = vrot.lane.b32.xlu0 %v2997, 127
        %v3003 = vpop.permute.xlu0 %3002
        %v3006 = vadd.f32 %v2992, %v3001
        %v3007 = vadd.f32 %v2993, %v3003
        %s3008 = sld [smem:[#allocation2 + $0xf5]]
        %v3009 = vstv %s3008
        %v3010 = vmul.f32 %v3009, %v216
        %v3011 = vmul.f32 %v3009, %v217
        %3014 = vrot.lane.b32.xlu0 %v3010, 126
        %v3015 = vpop.permute.xlu0 %3014
        %3016 = vrot.lane.b32.xlu0 %v3011, 126
        %v3017 = vpop.permute.xlu0 %3016
        %v3020 = vadd.f32 %v3006, %v3015
        %v3021 = vadd.f32 %v3007, %v3017
        %s3022 = sld [smem:[#allocation2 + $0xf6]]
        %v3023 = vstv %s3022
        %v3024 = vmul.f32 %v3023, %v224
        %v3025 = vmul.f32 %v3023, %v225
        %v3026 = vadd.f32 %v3020, %v3024
        %v3027 = vadd.f32 %v3021, %v3025
        %s3028 = sld [smem:[#allocation2 + $0xf7]]
        %v3029 = vstv %s3028
        %v3030 = vmul.f32 %v3029, %v224
        %v3031 = vmul.f32 %v3029, %v225
        %3034 = vrot.lane.b32.xlu0 %v3030, 127
        %v3035 = vpop.permute.xlu0 %3034
        %3036 = vrot.lane.b32.xlu0 %v3031, 127
        %v3037 = vpop.permute.xlu0 %3036
        %v3040 = vadd.f32 %v3026, %v3035
        %v3041 = vadd.f32 %v3027, %v3037
        %s3042 = sld [smem:[#allocation2 + $0xf8]]
        %v3043 = vstv %s3042
        %v3044 = vmul.f32 %v3043, %v224
        %v3045 = vmul.f32 %v3043, %v225
        %3048 = vrot.lane.b32.xlu0 %v3044, 126
        %v3049 = vpop.permute.xlu0 %3048
        %3050 = vrot.lane.b32.xlu0 %v3045, 126
        %v3051 = vpop.permute.xlu0 %3050
        %v3054 = vadd.f32 %v3040, %v3049
        %v3055 = vadd.f32 %v3041, %v3051
        %s3056 = sld [smem:[#allocation2 + $0xf9]]
        %v3057 = vstv %s3056
        %v3058 = vmul.f32 %v3057, %v232
        %v3059 = vmul.f32 %v3057, %v233
        %v3060 = vadd.f32 %v3054, %v3058
        %v3061 = vadd.f32 %v3055, %v3059
        %s3062 = sld [smem:[#allocation2 + $0xfa]]
        %v3063 = vstv %s3062
        %v3064 = vmul.f32 %v3063, %v232
        %v3065 = vmul.f32 %v3063, %v233
        %3068 = vrot.lane.b32.xlu0 %v3064, 127
        %v3069 = vpop.permute.xlu0 %3068
        %3070 = vrot.lane.b32.xlu0 %v3065, 127
        %v3071 = vpop.permute.xlu0 %3070
        %v3074 = vadd.f32 %v3060, %v3069
        %v3075 = vadd.f32 %v3061, %v3071
        %s3076 = sld [smem:[#allocation2 + $0xfb]]
        %v3077 = vstv %s3076
        %v3078 = vmul.f32 %v3077, %v232
        %v3079 = vmul.f32 %v3077, %v233
        %3082 = vrot.lane.b32.xlu0 %v3078, 126
        %v3083 = vpop.permute.xlu0 %3082
        %3084 = vrot.lane.b32.xlu0 %v3079, 126
        %v3085 = vpop.permute.xlu0 %3084
        %v3088 = vadd.f32 %v3074, %v3083
        %v3089 = vadd.f32 %v3075, %v3085
        %s3090 = sld [smem:[#allocation2 + $0xfc]]
        %v3091 = vstv %s3090
        %v3092 = vmul.f32 %v3091, %v210
        %v3093 = vmul.f32 %v3091, %v211
        %v3094 = vadd.f32 %v3092, 0.0
        %v3095 = vadd.f32 %v3093, 0.0
        %s3096 = sld [smem:[#allocation2 + $0xfd]]
        %v3097 = vstv %s3096
        %v3098 = vmul.f32 %v3097, %v210
        %v3099 = vmul.f32 %v3097, %v211
        %3102 = vrot.lane.b32.xlu0 %v3098, 127
        %v3103 = vpop.permute.xlu0 %3102
        %3104 = vrot.lane.b32.xlu0 %v3099, 127
        %v3105 = vpop.permute.xlu0 %3104
        %v3108 = vadd.f32 %v3094, %v3103
        %v3109 = vadd.f32 %v3095, %v3105
        %s3110 = sld [smem:[#allocation2 + $0xfe]]
        %v3111 = vstv %s3110
        %v3112 = vmul.f32 %v3111, %v210
        %v3113 = vmul.f32 %v3111, %v211
        %3116 = vrot.lane.b32.xlu0 %v3112, 126
        %v3117 = vpop.permute.xlu0 %3116
        %3118 = vrot.lane.b32.xlu0 %v3113, 126
        %v3119 = vpop.permute.xlu0 %3118
        %v3122 = vadd.f32 %v3108, %v3117
        %v3123 = vadd.f32 %v3109, %v3119
        %s3124 = sld [smem:[#allocation2 + $0xff]]
        %v3125 = vstv %s3124
        %v3126 = vmul.f32 %v3125, %v218
        %v3127 = vmul.f32 %v3125, %v219
        %v3128 = vadd.f32 %v3122, %v3126
        %v3129 = vadd.f32 %v3123, %v3127
        %s3130 = sld [smem:[#allocation2 + $0x100]]
        %v3131 = vstv %s3130
        %v3132 = vmul.f32 %v3131, %v218
        %v3133 = vmul.f32 %v3131, %v219
        %3136 = vrot.lane.b32.xlu0 %v3132, 127
        %v3137 = vpop.permute.xlu0 %3136
        %3138 = vrot.lane.b32.xlu0 %v3133, 127
        %v3139 = vpop.permute.xlu0 %3138
        %v3142 = vadd.f32 %v3128, %v3137
        %v3143 = vadd.f32 %v3129, %v3139
        %s3144 = sld [smem:[#allocation2 + $0x101]]
        %v3145 = vstv %s3144
        %v3146 = vmul.f32 %v3145, %v218
        %v3147 = vmul.f32 %v3145, %v219
        %3150 = vrot.lane.b32.xlu0 %v3146, 126
        %v3151 = vpop.permute.xlu0 %3150
        %3152 = vrot.lane.b32.xlu0 %v3147, 126
        %v3153 = vpop.permute.xlu0 %3152
        %v3156 = vadd.f32 %v3142, %v3151
        %v3157 = vadd.f32 %v3143, %v3153
        %s3158 = sld [smem:[#allocation2 + $0x102]]
        %v3159 = vstv %s3158
        %v3160 = vmul.f32 %v3159, %v226
        %v3161 = vmul.f32 %v3159, %v227
        %v3162 = vadd.f32 %v3156, %v3160
        %v3163 = vadd.f32 %v3157, %v3161
        %s3164 = sld [smem:[#allocation2 + $0x103]]
        %v3165 = vstv %s3164
        %v3166 = vmul.f32 %v3165, %v226
        %v3167 = vmul.f32 %v3165, %v227
        %3170 = vrot.lane.b32.xlu0 %v3166, 127
        %v3171 = vpop.permute.xlu0 %3170
        %3172 = vrot.lane.b32.xlu0 %v3167, 127
        %v3173 = vpop.permute.xlu0 %3172
        %v3176 = vadd.f32 %v3162, %v3171
        %v3177 = vadd.f32 %v3163, %v3173
        %s3178 = sld [smem:[#allocation2 + $0x104]]
        %v3179 = vstv %s3178
        %v3180 = vmul.f32 %v3179, %v226
        %v3181 = vmul.f32 %v3179, %v227
        %3184 = vrot.lane.b32.xlu0 %v3180, 126
        %v3185 = vpop.permute.xlu0 %3184
        %3186 = vrot.lane.b32.xlu0 %v3181, 126
        %v3187 = vpop.permute.xlu0 %3186
        %v3190 = vadd.f32 %v3176, %v3185
        %v3191 = vadd.f32 %v3177, %v3187
        %s3192 = sld [smem:[#allocation2 + $0x105]]
        %v3193 = vstv %s3192
        %v3194 = vmul.f32 %v3193, %v212
        %v3195 = vmul.f32 %v3193, %v213
        %v3196 = vadd.f32 %v3190, %v3194
        %v3197 = vadd.f32 %v3191, %v3195
        %s3198 = sld [smem:[#allocation2 + $0x106]]
        %v3199 = vstv %s3198
        %v3200 = vmul.f32 %v3199, %v212
        %v3201 = vmul.f32 %v3199, %v213
        %3204 = vrot.lane.b32.xlu0 %v3200, 127
        %v3205 = vpop.permute.xlu0 %3204
        %3206 = vrot.lane.b32.xlu0 %v3201, 127
        %v3207 = vpop.permute.xlu0 %3206
        %v3210 = vadd.f32 %v3196, %v3205
        %v3211 = vadd.f32 %v3197, %v3207
        %s3212 = sld [smem:[#allocation2 + $0x107]]
        %v3213 = vstv %s3212
        %v3214 = vmul.f32 %v3213, %v212
        %v3215 = vmul.f32 %v3213, %v213
        %3218 = vrot.lane.b32.xlu0 %v3214, 126
        %v3219 = vpop.permute.xlu0 %3218
        %3220 = vrot.lane.b32.xlu0 %v3215, 126
        %v3221 = vpop.permute.xlu0 %3220
        %v3224 = vadd.f32 %v3210, %v3219
        %v3225 = vadd.f32 %v3211, %v3221
        %s3226 = sld [smem:[#allocation2 + $0x108]]
        %v3227 = vstv %s3226
        %v3228 = vmul.f32 %v3227, %v220
        %v3229 = vmul.f32 %v3227, %v221
        %v3230 = vadd.f32 %v3224, %v3228
        %v3231 = vadd.f32 %v3225, %v3229
        %s3232 = sld [smem:[#allocation2 + $0x109]]
        %v3233 = vstv %s3232
        %v3234 = vmul.f32 %v3233, %v220
        %v3235 = vmul.f32 %v3233, %v221
        %3238 = vrot.lane.b32.xlu0 %v3234, 127
        %v3239 = vpop.permute.xlu0 %3238
        %3240 = vrot.lane.b32.xlu0 %v3235, 127
        %v3241 = vpop.permute.xlu0 %3240
        %v3244 = vadd.f32 %v3230, %v3239
        %v3245 = vadd.f32 %v3231, %v3241
        %s3246 = sld [smem:[#allocation2 + $0x10a]]
        %v3247 = vstv %s3246
        %v3248 = vmul.f32 %v3247, %v220
        %v3249 = vmul.f32 %v3247, %v221
        %3252 = vrot.lane.b32.xlu0 %v3248, 126
        %v3253 = vpop.permute.xlu0 %3252
        %3254 = vrot.lane.b32.xlu0 %v3249, 126
        %v3255 = vpop.permute.xlu0 %3254
        %v3258 = vadd.f32 %v3244, %v3253
        %v3259 = vadd.f32 %v3245, %v3255
        %s3260 = sld [smem:[#allocation2 + $0x10b]]
        %v3261 = vstv %s3260
        %v3262 = vmul.f32 %v3261, %v228
        %v3263 = vmul.f32 %v3261, %v229
        %v3264 = vadd.f32 %v3258, %v3262
        %v3265 = vadd.f32 %v3259, %v3263
        %s3266 = sld [smem:[#allocation2 + $0x10c]]
        %v3267 = vstv %s3266
        %v3268 = vmul.f32 %v3267, %v228
        %v3269 = vmul.f32 %v3267, %v229
        %3272 = vrot.lane.b32.xlu0 %v3268, 127
        %v3273 = vpop.permute.xlu0 %3272
        %3274 = vrot.lane.b32.xlu0 %v3269, 127
        %v3275 = vpop.permute.xlu0 %3274
        %v3278 = vadd.f32 %v3264, %v3273
        %v3279 = vadd.f32 %v3265, %v3275
        %s3280 = sld [smem:[#allocation2 + $0x10d]]
        %v3281 = vstv %s3280
        %v3282 = vmul.f32 %v3281, %v228
        %v3283 = vmul.f32 %v3281, %v229
        %3286 = vrot.lane.b32.xlu0 %v3282, 126
        %v3287 = vpop.permute.xlu0 %3286
        %3288 = vrot.lane.b32.xlu0 %v3283, 126
        %v3289 = vpop.permute.xlu0 %3288
        %v3292 = vadd.f32 %v3278, %v3287
        %v3293 = vadd.f32 %v3279, %v3289
        %s3294 = sld [smem:[#allocation2 + $0x10e]]
        %v3295 = vstv %s3294
        %v3296 = vmul.f32 %v3295, %v214
        %v3297 = vmul.f32 %v3295, %v215
        %v3298 = vadd.f32 %v3292, %v3296
        %v3299 = vadd.f32 %v3293, %v3297
        %s3300 = sld [smem:[#allocation2 + $0x10f]]
        %v3301 = vstv %s3300
        %v3302 = vmul.f32 %v3301, %v214
        %v3303 = vmul.f32 %v3301, %v215
        %3306 = vrot.lane.b32.xlu0 %v3302, 127
        %v3307 = vpop.permute.xlu0 %3306
        %3308 = vrot.lane.b32.xlu0 %v3303, 127
        %v3309 = vpop.permute.xlu0 %3308
        %v3312 = vadd.f32 %v3298, %v3307
        %v3313 = vadd.f32 %v3299, %v3309
        %s3314 = sld [smem:[#allocation2 + $0x110]]
        %v3315 = vstv %s3314
        %v3316 = vmul.f32 %v3315, %v214
        %v3317 = vmul.f32 %v3315, %v215
        %3320 = vrot.lane.b32.xlu0 %v3316, 126
        %v3321 = vpop.permute.xlu0 %3320
        %3322 = vrot.lane.b32.xlu0 %v3317, 126
        %v3323 = vpop.permute.xlu0 %3322
        %v3326 = vadd.f32 %v3312, %v3321
        %v3327 = vadd.f32 %v3313, %v3323
        %s3328 = sld [smem:[#allocation2 + $0x111]]
        %v3329 = vstv %s3328
        %v3330 = vmul.f32 %v3329, %v222
        %v3331 = vmul.f32 %v3329, %v223
        %v3332 = vadd.f32 %v3326, %v3330
        %v3333 = vadd.f32 %v3327, %v3331
        %s3334 = sld [smem:[#allocation2 + $0x112]]
        %v3335 = vstv %s3334
        %v3336 = vmul.f32 %v3335, %v222
        %v3337 = vmul.f32 %v3335, %v223
        %3340 = vrot.lane.b32.xlu0 %v3336, 127
        %v3341 = vpop.permute.xlu0 %3340
        %3342 = vrot.lane.b32.xlu0 %v3337, 127
        %v3343 = vpop.permute.xlu0 %3342
        %v3346 = vadd.f32 %v3332, %v3341
        %v3347 = vadd.f32 %v3333, %v3343
        %s3348 = sld [smem:[#allocation2 + $0x113]]
        %v3349 = vstv %s3348
        %v3350 = vmul.f32 %v3349, %v222
        %v3351 = vmul.f32 %v3349, %v223
        %3354 = vrot.lane.b32.xlu0 %v3350, 126
        %v3355 = vpop.permute.xlu0 %3354
        %3356 = vrot.lane.b32.xlu0 %v3351, 126
        %v3357 = vpop.permute.xlu0 %3356
        %v3360 = vadd.f32 %v3346, %v3355
        %v3361 = vadd.f32 %v3347, %v3357
        %s3362 = sld [smem:[#allocation2 + $0x114]]
        %v3363 = vstv %s3362
        %v3364 = vmul.f32 %v3363, %v230
        %v3365 = vmul.f32 %v3363, %v231
        %v3366 = vadd.f32 %v3360, %v3364
        %v3367 = vadd.f32 %v3361, %v3365
        %s3368 = sld [smem:[#allocation2 + $0x115]]
        %v3369 = vstv %s3368
        %v3370 = vmul.f32 %v3369, %v230
        %v3371 = vmul.f32 %v3369, %v231
        %3374 = vrot.lane.b32.xlu0 %v3370, 127
        %v3375 = vpop.permute.xlu0 %3374
        %3376 = vrot.lane.b32.xlu0 %v3371, 127
        %v3377 = vpop.permute.xlu0 %3376
        %v3380 = vadd.f32 %v3366, %v3375
        %v3381 = vadd.f32 %v3367, %v3377
        %s3382 = sld [smem:[#allocation2 + $0x116]]
        %v3383 = vstv %s3382
        %v3384 = vmul.f32 %v3383, %v230
        %v3385 = vmul.f32 %v3383, %v231
        %3388 = vrot.lane.b32.xlu0 %v3384, 126
        %v3389 = vpop.permute.xlu0 %3388
        %3390 = vrot.lane.b32.xlu0 %v3385, 126
        %v3391 = vpop.permute.xlu0 %3390
        %v3394 = vadd.f32 %v3380, %v3389
        %v3395 = vadd.f32 %v3381, %v3391
        %s3396 = sld [smem:[#allocation2 + $0x117]]
        %v3397 = vstv %s3396
        %v3398 = vmul.f32 %v3397, %v216
        %v3399 = vmul.f32 %v3397, %v217
        %v3400 = vadd.f32 %v3394, %v3398
        %v3401 = vadd.f32 %v3395, %v3399
        %s3402 = sld [smem:[#allocation2 + $0x118]]
        %v3403 = vstv %s3402
        %v3404 = vmul.f32 %v3403, %v216
        %v3405 = vmul.f32 %v3403, %v217
        %3408 = vrot.lane.b32.xlu0 %v3404, 127
        %v3409 = vpop.permute.xlu0 %3408
        %3410 = vrot.lane.b32.xlu0 %v3405, 127
        %v3411 = vpop.permute.xlu0 %3410
        %v3414 = vadd.f32 %v3400, %v3409
        %v3415 = vadd.f32 %v3401, %v3411
        %s3416 = sld [smem:[#allocation2 + $0x119]]
        %v3417 = vstv %s3416
        %v3418 = vmul.f32 %v3417, %v216
        %v3419 = vmul.f32 %v3417, %v217
        %3422 = vrot.lane.b32.xlu0 %v3418, 126
        %v3423 = vpop.permute.xlu0 %3422
        %3424 = vrot.lane.b32.xlu0 %v3419, 126
        %v3425 = vpop.permute.xlu0 %3424
        %v3428 = vadd.f32 %v3414, %v3423
        %v3429 = vadd.f32 %v3415, %v3425
        %s3430 = sld [smem:[#allocation2 + $0x11a]]
        %v3431 = vstv %s3430
        %v3432 = vmul.f32 %v3431, %v224
        %v3433 = vmul.f32 %v3431, %v225
        %v3434 = vadd.f32 %v3428, %v3432
        %v3435 = vadd.f32 %v3429, %v3433
        %s3436 = sld [smem:[#allocation2 + $0x11b]]
        %v3437 = vstv %s3436
        %v3438 = vmul.f32 %v3437, %v224
        %v3439 = vmul.f32 %v3437, %v225
        %3442 = vrot.lane.b32.xlu0 %v3438, 127
        %v3443 = vpop.permute.xlu0 %3442
        %3444 = vrot.lane.b32.xlu0 %v3439, 127
        %v3445 = vpop.permute.xlu0 %3444
        %v3448 = vadd.f32 %v3434, %v3443
        %v3449 = vadd.f32 %v3435, %v3445
        %s3450 = sld [smem:[#allocation2 + $0x11c]]
        %v3451 = vstv %s3450
        %v3452 = vmul.f32 %v3451, %v224
        %v3453 = vmul.f32 %v3451, %v225
        %3456 = vrot.lane.b32.xlu0 %v3452, 126
        %v3457 = vpop.permute.xlu0 %3456
        %3458 = vrot.lane.b32.xlu0 %v3453, 126
        %v3459 = vpop.permute.xlu0 %3458
        %v3462 = vadd.f32 %v3448, %v3457
        %v3463 = vadd.f32 %v3449, %v3459
        %s3464 = sld [smem:[#allocation2 + $0x11d]]
        %v3465 = vstv %s3464
        %v3466 = vmul.f32 %v3465, %v232
        %v3467 = vmul.f32 %v3465, %v233
        %v3468 = vadd.f32 %v3462, %v3466
        %v3469 = vadd.f32 %v3463, %v3467
        %s3470 = sld [smem:[#allocation2 + $0x11e]]
        %v3471 = vstv %s3470
        %v3472 = vmul.f32 %v3471, %v232
        %v3473 = vmul.f32 %v3471, %v233
        %3476 = vrot.lane.b32.xlu0 %v3472, 127
        %v3477 = vpop.permute.xlu0 %3476
        %3478 = vrot.lane.b32.xlu0 %v3473, 127
        %v3479 = vpop.permute.xlu0 %3478
        %v3482 = vadd.f32 %v3468, %v3477
        %v3483 = vadd.f32 %v3469, %v3479
        %s3484 = sld [smem:[#allocation2 + $0x11f]]
        %v3485 = vstv %s3484
        %v3486 = vmul.f32 %v3485, %v232
        %v3487 = vmul.f32 %v3485, %v233
        %3490 = vrot.lane.b32.xlu0 %v3486, 126
        %v3491 = vpop.permute.xlu0 %3490
        %3492 = vrot.lane.b32.xlu0 %v3487, 126
        %v3493 = vpop.permute.xlu0 %3492
        %v3496 = vadd.f32 %v3482, %v3491
        %v3497 = vadd.f32 %v3483, %v3493
        %v3498 = vld [vmem:[%s3] sm:$0xff]
        %v3499 = vld [vmem:[%s3 + $0x8] sm:$0xff]
        %vm3500 = vcmask 130048
        %v3502 = vsel %vm3500, %v640, 0
        %v3505 = vsel %vm3500, %v641, 0
        %v3508 = vsel %vm3500, %v1048, 0
        %v3511 = vsel %vm3500, %v1049, 0
        %v3514 = vsel %vm3500, %v1456, 0
        %v3517 = vsel %vm3500, %v1457, 0
        %v3520 = vsel %vm3500, %v1864, 0
        %v3523 = vsel %vm3500, %v1865, 0
        %v3526 = vsel %vm3500, %v2272, 0
        %v3529 = vsel %vm3500, %v2273, 0
        %v3532 = vsel %vm3500, %v2680, 0
        %v3535 = vsel %vm3500, %v2681, 0
        %v3538 = vsel %vm3500, %v3088, 0
        %v3541 = vsel %vm3500, %v3089, 0
        %v3544 = vsel %vm3500, %v3496, 0
        %v3547 = vsel %vm3500, %v3497, 0
        %3549 = vmatpush.msra.mxu0 0.0
        %3550 = vmatpush.msra.mxu0 0.0
        %3551 = vmatpush.msra.mxu0 0.0
        %3552 = vmatpush.msra.mxu0 0.0
        %3553 = vmatpush.msra.mxu0 0.0
        %3554 = vmatpush.msra.mxu0 0.0
        %3555 = vmatpush.msra.mxu0 0.0
        %3556 = vmatpush.msra.mxu0 0.0
        %3557 = vmatpush.msra.mxu0 0.0
        %3558 = vmatpush.msra.mxu0 0.0
        %3559 = vmatpush.msra.mxu0 0.0
        %3560 = vmatpush.msra.mxu0 0.0
        %3561 = vmatpush.msra.mxu0 0.0
        %3562 = vmatpush.msra.mxu0 0.0
        %3563 = vmatpush.msra.mxu0 %v3499
        %3564 = vmatpush.msra.mxu0 %v3498
        %3565 = vmatmul.f32.gmra.mxu0 %v3502
        %v3566 = vpop.f32.mrf.mxu0
        %v3567 = vadd.f32 0.0, %v3566
        %3568 = vmatmul.f32.gmra.mxu0 %v3505
        %v3569 = vpop.f32.mrf.mxu0
        %v3570 = vadd.f32 0.0, %v3569
        %3571 = vmatmul.f32.gmra.mxu0 %v3508
        %v3572 = vpop.f32.mrf.mxu0
        %v3573 = vadd.f32 0.0, %v3572
        %3574 = vmatmul.f32.gmra.mxu0 %v3511
        %v3575 = vpop.f32.mrf.mxu0
        %v3576 = vadd.f32 0.0, %v3575
        %3577 = vmatmul.f32.gmra.mxu0 %v3514
        %v3578 = vpop.f32.mrf.mxu0
        %v3579 = vadd.f32 0.0, %v3578
        %3580 = vmatmul.f32.gmra.mxu0 %v3517
        %v3581 = vpop.f32.mrf.mxu0
        %v3582 = vadd.f32 0.0, %v3581
        %3583 = vmatmul.f32.gmra.mxu0 %v3520
        %v3584 = vpop.f32.mrf.mxu0
        %v3585 = vadd.f32 0.0, %v3584
        %3586 = vmatmul.f32.gmra.mxu0 %v3523
        %v3587 = vpop.f32.mrf.mxu0
        %v3588 = vadd.f32 0.0, %v3587
        %3589 = vmatmul.f32.gmra.mxu0 %v3526
        %v3590 = vpop.f32.mrf.mxu0
        %v3591 = vadd.f32 0.0, %v3590
        %3592 = vmatmul.f32.gmra.mxu0 %v3529
        %v3593 = vpop.f32.mrf.mxu0
        %v3594 = vadd.f32 0.0, %v3593
        %3595 = vmatmul.f32.gmra.mxu0 %v3532
        %v3596 = vpop.f32.mrf.mxu0
        %v3597 = vadd.f32 0.0, %v3596
        %3598 = vmatmul.f32.gmra.mxu0 %v3535
        %v3599 = vpop.f32.mrf.mxu0
        %v3600 = vadd.f32 0.0, %v3599
        %3601 = vmatmul.f32.gmra.mxu0 %v3538
        %v3602 = vpop.f32.mrf.mxu0
        %v3603 = vadd.f32 0.0, %v3602
        %3604 = vmatmul.f32.gmra.mxu0 %v3541
        %v3605 = vpop.f32.mrf.mxu0
        %v3606 = vadd.f32 0.0, %v3605
        %3607 = vmatmul.f32.gmra.mxu0 %v3544
        %v3608 = vpop.f32.mrf.mxu0
        %v3609 = vadd.f32 0.0, %v3608
        %3610 = vmatmul.f32.gmra.mxu0 %v3547
        %v3611 = vpop.f32.mrf.mxu0
        %v3612 = vadd.f32 0.0, %v3611
        %3613 = vdwg.mxu0
        %v3614 = vld [vmem:[%s2] sm:$0xff]
        %v3615 = vld [vmem:[%s2 + $0x8] sm:$0xff]
        %v3616 = vld [vmem:[%s2 + $0x10] sm:$0xff]
        %v3617 = vld [vmem:[%s2 + $0x18] sm:$0xff]
        %v3619 = vsel %vm3500, %v3614, 0
        %v3622 = vsel %vm3500, %v3615, 0
        %v3625 = vsel %vm3500, %v3616, 0
        %v3628 = vsel %vm3500, %v3617, 0
        %3630 = vmatpush.msra.mxu0 0.0
        %3631 = vmatpush.msra.mxu0 0.0
        %3632 = vmatpush.msra.mxu0 0.0
        %3633 = vmatpush.msra.mxu0 0.0
        %3634 = vmatpush.msra.mxu0 0.0
        %3635 = vmatpush.msra.mxu0 0.0
        %3636 = vmatpush.msra.mxu0 0.0
        %3637 = vmatpush.msra.mxu0 0.0
        %3638 = vmatpush.msra.mxu0 0.0
        %3639 = vmatpush.msra.mxu0 0.0
        %3640 = vmatpush.msra.mxu0 0.0
        %3641 = vmatpush.msra.mxu0 0.0
        %3642 = vmatpush.msra.mxu0 0.0
        %3643 = vmatpush.msra.mxu0 0.0
        %3644 = vmatpush.msra.mxu0 %v3570
        %3645 = vmatpush.msra.mxu0 %v3567
        %3646 = vmatmul.f32.gmra.mxu0 %v3619
        %v3647 = vpop.f32.mrf.mxu0
        %v3648 = vadd.f32 0.0, %v3647
        %3649 = vmatmul.f32.gmra.mxu0 %v3622
        %v3650 = vpop.f32.mrf.mxu0
        %v3651 = vadd.f32 0.0, %v3650
        %3652 = vmatmul.f32.gmra.mxu0 %v3625
        %v3653 = vpop.f32.mrf.mxu0
        %v3654 = vadd.f32 0.0, %v3653
        %3655 = vmatmul.f32.gmra.mxu0 %v3628
        %v3656 = vpop.f32.mrf.mxu0
        %v3657 = vadd.f32 0.0, %v3656
        %3658 = vdwg.mxu0
        %vm3659 = vcmask 261120
        %3660 = vst.msk [vmem:[%s204] sm:$0xff] %vm3659, %v3648
        %3661 = vst.msk [vmem:[%s204 + $0x8] sm:$0xff] %vm3659, %v3651
        %3662 = vst.msk [vmem:[%s204 + $0x10] sm:$0xff] %vm3659, %v3654
        %3663 = vst.msk [vmem:[%s204 + $0x18] sm:$0xff] %vm3659, %v3657
        %3664 = vmatpush.msra.mxu0 0.0
        %3665 = vmatpush.msra.mxu0 0.0
        %3666 = vmatpush.msra.mxu0 0.0
        %3667 = vmatpush.msra.mxu0 0.0
        %3668 = vmatpush.msra.mxu0 0.0
        %3669 = vmatpush.msra.mxu0 0.0
        %3670 = vmatpush.msra.mxu0 0.0
        %3671 = vmatpush.msra.mxu0 0.0
        %3672 = vmatpush.msra.mxu0 0.0
        %3673 = vmatpush.msra.mxu0 0.0
        %3674 = vmatpush.msra.mxu0 0.0
        %3675 = vmatpush.msra.mxu0 0.0
        %3676 = vmatpush.msra.mxu0 0.0
        %3677 = vmatpush.msra.mxu0 0.0
        %3678 = vmatpush.msra.mxu0 %v3576
        %3679 = vmatpush.msra.mxu0 %v3573
        %3680 = vmatmul.f32.gmra.mxu0 %v3619
        %v3681 = vpop.f32.mrf.mxu0
        %v3682 = vadd.f32 0.0, %v3681
        %3683 = vmatmul.f32.gmra.mxu0 %v3622
        %v3684 = vpop.f32.mrf.mxu0
        %v3685 = vadd.f32 0.0, %v3684
        %3686 = vmatmul.f32.gmra.mxu0 %v3625
        %v3687 = vpop.f32.mrf.mxu0
        %v3688 = vadd.f32 0.0, %v3687
        %3689 = vmatmul.f32.gmra.mxu0 %v3628
        %v3690 = vpop.f32.mrf.mxu0
        %v3691 = vadd.f32 0.0, %v3690
        %3692 = vdwg.mxu0
        %s3693 = scalar_lea.vmem %s204, 32 [#allocation5]
        %3694 = vst.msk [vmem:[%s3693] sm:$0xff] %vm3659, %v3682
        %3695 = vst.msk [vmem:[%s3693 + $0x8] sm:$0xff] %vm3659, %v3685
        %3696 = vst.msk [vmem:[%s3693 + $0x10] sm:$0xff] %vm3659, %v3688
        %3697 = vst.msk [vmem:[%s3693 + $0x18] sm:$0xff] %vm3659, %v3691
        %3698 = vmatpush.msra.mxu0 0.0
        %3699 = vmatpush.msra.mxu0 0.0
        %3700 = vmatpush.msra.mxu0 0.0
        %3701 = vmatpush.msra.mxu0 0.0
        %3702 = vmatpush.msra.mxu0 0.0
        %3703 = vmatpush.msra.mxu0 0.0
        %3704 = vmatpush.msra.mxu0 0.0
        %3705 = vmatpush.msra.mxu0 0.0
        %3706 = vmatpush.msra.mxu0 0.0
        %3707 = vmatpush.msra.mxu0 0.0
        %3708 = vmatpush.msra.mxu0 0.0
        %3709 = vmatpush.msra.mxu0 0.0
        %3710 = vmatpush.msra.mxu0 0.0
        %3711 = vmatpush.msra.mxu0 0.0
        %3712 = vmatpush.msra.mxu0 %v3582
        %3713 = vmatpush.msra.mxu0 %v3579
        %3714 = vmatmul.f32.gmra.mxu0 %v3619
        %v3715 = vpop.f32.mrf.mxu0
        %v3716 = vadd.f32 0.0, %v3715
        %3717 = vmatmul.f32.gmra.mxu0 %v3622
        %v3718 = vpop.f32.mrf.mxu0
        %v3719 = vadd.f32 0.0, %v3718
        %3720 = vmatmul.f32.gmra.mxu0 %v3625
        %v3721 = vpop.f32.mrf.mxu0
        %v3722 = vadd.f32 0.0, %v3721
        %3723 = vmatmul.f32.gmra.mxu0 %v3628
        %v3724 = vpop.f32.mrf.mxu0
        %v3725 = vadd.f32 0.0, %v3724
        %3726 = vdwg.mxu0
        %s3727 = scalar_lea.vmem %s204, 64 [#allocation5]
        %3728 = vst.msk [vmem:[%s3727] sm:$0xff] %vm3659, %v3716
        %3729 = vst.msk [vmem:[%s3727 + $0x8] sm:$0xff] %vm3659, %v3719
        %3730 = vst.msk [vmem:[%s3727 + $0x10] sm:$0xff] %vm3659, %v3722
        %3731 = vst.msk [vmem:[%s3727 + $0x18] sm:$0xff] %vm3659, %v3725
        %3732 = vmatpush.msra.mxu0 0.0
        %3733 = vmatpush.msra.mxu0 0.0
        %3734 = vmatpush.msra.mxu0 0.0
        %3735 = vmatpush.msra.mxu0 0.0
        %3736 = vmatpush.msra.mxu0 0.0
        %3737 = vmatpush.msra.mxu0 0.0
        %3738 = vmatpush.msra.mxu0 0.0
        %3739 = vmatpush.msra.mxu0 0.0
        %3740 = vmatpush.msra.mxu0 0.0
        %3741 = vmatpush.msra.mxu0 0.0
        %3742 = vmatpush.msra.mxu0 0.0
        %3743 = vmatpush.msra.mxu0 0.0
        %3744 = vmatpush.msra.mxu0 0.0
        %3745 = vmatpush.msra.mxu0 0.0
        %3746 = vmatpush.msra.mxu0 %v3588
        %3747 = vmatpush.msra.mxu0 %v3585
        %3748 = vmatmul.f32.gmra.mxu0 %v3619
        %v3749 = vpop.f32.mrf.mxu0
        %v3750 = vadd.f32 0.0, %v3749
        %3751 = vmatmul.f32.gmra.mxu0 %v3622
        %v3752 = vpop.f32.mrf.mxu0
        %v3753 = vadd.f32 0.0, %v3752
        %3754 = vmatmul.f32.gmra.mxu0 %v3625
        %v3755 = vpop.f32.mrf.mxu0
        %v3756 = vadd.f32 0.0, %v3755
        %3757 = vmatmul.f32.gmra.mxu0 %v3628
        %v3758 = vpop.f32.mrf.mxu0
        %v3759 = vadd.f32 0.0, %v3758
        %3760 = vdwg.mxu0
        %s3761 = scalar_lea.vmem %s204, 96 [#allocation5]
        %3762 = vst.msk [vmem:[%s3761] sm:$0xff] %vm3659, %v3750
        %3763 = vst.msk [vmem:[%s3761 + $0x8] sm:$0xff] %vm3659, %v3753
        %3764 = vst.msk [vmem:[%s3761 + $0x10] sm:$0xff] %vm3659, %v3756
        %3765 = vst.msk [vmem:[%s3761 + $0x18] sm:$0xff] %vm3659, %v3759
        %3766 = vmatpush.msra.mxu0 0.0
        %3767 = vmatpush.msra.mxu0 0.0
        %3768 = vmatpush.msra.mxu0 0.0
        %3769 = vmatpush.msra.mxu0 0.0
        %3770 = vmatpush.msra.mxu0 0.0
        %3771 = vmatpush.msra.mxu0 0.0
        %3772 = vmatpush.msra.mxu0 0.0
        %3773 = vmatpush.msra.mxu0 0.0
        %3774 = vmatpush.msra.mxu0 0.0
        %3775 = vmatpush.msra.mxu0 0.0
        %3776 = vmatpush.msra.mxu0 0.0
        %3777 = vmatpush.msra.mxu0 0.0
        %3778 = vmatpush.msra.mxu0 0.0
        %3779 = vmatpush.msra.mxu0 0.0
        %3780 = vmatpush.msra.mxu0 %v3594
        %3781 = vmatpush.msra.mxu0 %v3591
        %3782 = vmatmul.f32.gmra.mxu0 %v3619
        %v3783 = vpop.f32.mrf.mxu0
        %v3784 = vadd.f32 0.0, %v3783
        %3785 = vmatmul.f32.gmra.mxu0 %v3622
        %v3786 = vpop.f32.mrf.mxu0
        %v3787 = vadd.f32 0.0, %v3786
        %3788 = vmatmul.f32.gmra.mxu0 %v3625
        %v3789 = vpop.f32.mrf.mxu0
        %v3790 = vadd.f32 0.0, %v3789
        %3791 = vmatmul.f32.gmra.mxu0 %v3628
        %v3792 = vpop.f32.mrf.mxu0
        %v3793 = vadd.f32 0.0, %v3792
        %3794 = vdwg.mxu0
        %s3795 = scalar_lea.vmem %s204, 128 [#allocation5]
        %3796 = vst.msk [vmem:[%s3795] sm:$0xff] %vm3659, %v3784
        %3797 = vst.msk [vmem:[%s3795 + $0x8] sm:$0xff] %vm3659, %v3787
        %3798 = vst.msk [vmem:[%s3795 + $0x10] sm:$0xff] %vm3659, %v3790
        %3799 = vst.msk [vmem:[%s3795 + $0x18] sm:$0xff] %vm3659, %v3793
        %3800 = vmatpush.msra.mxu0 0.0
        %3801 = vmatpush.msra.mxu0 0.0
        %3802 = vmatpush.msra.mxu0 0.0
        %3803 = vmatpush.msra.mxu0 0.0
        %3804 = vmatpush.msra.mxu0 0.0
        %3805 = vmatpush.msra.mxu0 0.0
        %3806 = vmatpush.msra.mxu0 0.0
        %3807 = vmatpush.msra.mxu0 0.0
        %3808 = vmatpush.msra.mxu0 0.0
        %3809 = vmatpush.msra.mxu0 0.0
        %3810 = vmatpush.msra.mxu0 0.0
        %3811 = vmatpush.msra.mxu0 0.0
        %3812 = vmatpush.msra.mxu0 0.0
        %3813 = vmatpush.msra.mxu0 0.0
        %3814 = vmatpush.msra.mxu0 %v3600
        %3815 = vmatpush.msra.mxu0 %v3597
        %3816 = vmatmul.f32.gmra.mxu0 %v3619
        %v3817 = vpop.f32.mrf.mxu0
        %v3818 = vadd.f32 0.0, %v3817
        %3819 = vmatmul.f32.gmra.mxu0 %v3622
        %v3820 = vpop.f32.mrf.mxu0
        %v3821 = vadd.f32 0.0, %v3820
        %3822 = vmatmul.f32.gmra.mxu0 %v3625
        %v3823 = vpop.f32.mrf.mxu0
        %v3824 = vadd.f32 0.0, %v3823
        %3825 = vmatmul.f32.gmra.mxu0 %v3628
        %v3826 = vpop.f32.mrf.mxu0
        %v3827 = vadd.f32 0.0, %v3826
        %3828 = vdwg.mxu0
        %s3829 = scalar_lea.vmem %s204, 160 [#allocation5]
        %3830 = vst.msk [vmem:[%s3829] sm:$0xff] %vm3659, %v3818
        %3831 = vst.msk [vmem:[%s3829 + $0x8] sm:$0xff] %vm3659, %v3821
        %3832 = vst.msk [vmem:[%s3829 + $0x10] sm:$0xff] %vm3659, %v3824
        %3833 = vst.msk [vmem:[%s3829 + $0x18] sm:$0xff] %vm3659, %v3827
        %3834 = vmatpush.msra.mxu0 0.0
        %3835 = vmatpush.msra.mxu0 0.0
        %3836 = vmatpush.msra.mxu0 0.0
        %3837 = vmatpush.msra.mxu0 0.0
        %3838 = vmatpush.msra.mxu0 0.0
        %3839 = vmatpush.msra.mxu0 0.0
        %3840 = vmatpush.msra.mxu0 0.0
        %3841 = vmatpush.msra.mxu0 0.0
        %3842 = vmatpush.msra.mxu0 0.0
        %3843 = vmatpush.msra.mxu0 0.0
        %3844 = vmatpush.msra.mxu0 0.0
        %3845 = vmatpush.msra.mxu0 0.0
        %3846 = vmatpush.msra.mxu0 0.0
        %3847 = vmatpush.msra.mxu0 0.0
        %3848 = vmatpush.msra.mxu0 %v3606
        %3849 = vmatpush.msra.mxu0 %v3603
        %3850 = vmatmul.f32.gmra.mxu0 %v3619
        %v3851 = vpop.f32.mrf.mxu0
        %v3852 = vadd.f32 0.0, %v3851
        %3853 = vmatmul.f32.gmra.mxu0 %v3622
        %v3854 = vpop.f32.mrf.mxu0
        %v3855 = vadd.f32 0.0, %v3854
        %3856 = vmatmul.f32.gmra.mxu0 %v3625
        %v3857 = vpop.f32.mrf.mxu0
        %v3858 = vadd.f32 0.0, %v3857
        %3859 = vmatmul.f32.gmra.mxu0 %v3628
        %v3860 = vpop.f32.mrf.mxu0
        %v3861 = vadd.f32 0.0, %v3860
        %3862 = vdwg.mxu0
        %s3863 = scalar_lea.vmem %s204, 192 [#allocation5]
        %3864 = vst.msk [vmem:[%s3863] sm:$0xff] %vm3659, %v3852
        %3865 = vst.msk [vmem:[%s3863 + $0x8] sm:$0xff] %vm3659, %v3855
        %3866 = vst.msk [vmem:[%s3863 + $0x10] sm:$0xff] %vm3659, %v3858
        %3867 = vst.msk [vmem:[%s3863 + $0x18] sm:$0xff] %vm3659, %v3861
        %3868 = vmatpush.msra.mxu0 0.0
        %3869 = vmatpush.msra.mxu0 0.0
        %3870 = vmatpush.msra.mxu0 0.0
        %3871 = vmatpush.msra.mxu0 0.0
        %3872 = vmatpush.msra.mxu0 0.0
        %3873 = vmatpush.msra.mxu0 0.0
        %3874 = vmatpush.msra.mxu0 0.0
        %3875 = vmatpush.msra.mxu0 0.0
        %3876 = vmatpush.msra.mxu0 0.0
        %3877 = vmatpush.msra.mxu0 0.0
        %3878 = vmatpush.msra.mxu0 0.0
        %3879 = vmatpush.msra.mxu0 0.0
        %3880 = vmatpush.msra.mxu0 0.0
        %3881 = vmatpush.msra.mxu0 0.0
        %3882 = vmatpush.msra.mxu0 %v3612
        %3883 = vmatpush.msra.mxu0 %v3609
        %3884 = vmatmul.f32.gmra.mxu0 %v3619
        %v3885 = vpop.f32.mrf.mxu0
        %v3886 = vadd.f32 0.0, %v3885
        %3887 = vmatmul.f32.gmra.mxu0 %v3622
        %v3888 = vpop.f32.mrf.mxu0
        %v3889 = vadd.f32 0.0, %v3888
        %3890 = vmatmul.f32.gmra.mxu0 %v3625
        %v3891 = vpop.f32.mrf.mxu0
        %v3892 = vadd.f32 0.0, %v3891
        %3893 = vmatmul.f32.gmra.mxu0 %v3628
        %v3894 = vpop.f32.mrf.mxu0
        %v3895 = vadd.f32 0.0, %v3894
        %3896 = vdwg.mxu0
        %s3897 = scalar_lea.vmem %s204, 224 [#allocation5]
        %3898 = vst.msk [vmem:[%s3897] sm:$0xff] %vm3659, %v3886
        %3899 = vst.msk [vmem:[%s3897 + $0x8] sm:$0xff] %vm3659, %v3889
        %3900 = vst.msk [vmem:[%s3897 + $0x10] sm:$0xff] %vm3659, %v3892
        %3901 = vst.msk [vmem:[%s3897 + $0x18] sm:$0xff] %vm3659, %v3895
        %s3902 = sand.u32 %s116, 1
        %s3903 = scalar_lea.sflag [#allocation3], %s3902
        %s3904 = sand.u32 %s116, 1
        %s3905 = smul.addr %s3904, 256
        %s3906 = scalar_lea.vmem [#allocation5], %s3905
        // Predicated region
        $region41: #{tpu_custom_call.1} parent=35 // pred_check
          %p3907 = pneg %p126
        $region42: #{tpu_custom_call.1} parent=35 // pred_check_branch
          %3909 = sbr.rel (%p3907) target = $region44
        $region43: #{tpu_custom_call.1} parent=35 // pred_region
          %3911 = vsyncadd %s3903, 0
          %s3912 = smul.addr %s19, 32
          %s3913 = smul.addr %s3912, 8
          %s3914 = scalar_lea.hbm %s4, %s3913
          %s3915 = sshll.u32 %s3906, 4
          %s3916 = int_to_ptr.vmem [resolvable:$true] %s3915
          %s3917 = sshll.u32 %s3914, 4
          %s3918 = int_to_ptr.hbm [resolvable:$true] %s3917
          %3923 = dma.vmem_to_hbm [thread:$0]  %s3916, 4096, %s3918, %s3903, 128, 128, 8
        $region44: #{tpu_custom_call.1} parent=35 // pred_fallthru
          _
      $region36: #{tpu_custom_call.1} parent=5 // pred_fallthru
        _
      %p3924 = scmp.le.s32.totalorder 2, %s14
      // Predicated region
      $region45: #{tpu_custom_call.1} parent=5 // pred_check
        %p3925 = pneg %p3924
      $region46: #{tpu_custom_call.1} parent=5 // pred_check_branch
        %3927 = sbr.rel (%p3925) target = $region48
      $region47: #{tpu_custom_call.1} parent=5 // pred_region
        %s3928 = ssub.s32 %s14, 2
        // Predicated region
        $region49: #{tpu_custom_call.1} parent=47 // pred_check
          %p3929 = pneg %p132
        $region50: #{tpu_custom_call.1} parent=47 // pred_check_branch
          %3931 = sbr.rel (%p3929) target = $region52
        $region51: #{tpu_custom_call.1} parent=47 // pred_region
          %s3932 = sand.u32 %s117, 1
          %s3933 = scalar_lea.sflag [#allocation3], %s3932
          %s3934 = sand.u32 %s117, 1
          %s3935 = smul.addr %s3934, 256
          %s3936 = scalar_lea.vmem [#allocation5], %s3935
          %3938 = dma.done %s3933, 4096
        $region52: #{tpu_custom_call.1} parent=47 // pred_fallthru
          _
      $region48: #{tpu_custom_call.1} parent=5 // pred_fallthru
        _
    $region6: #{tpu_custom_call.1} parent=1 // loop_footer
      %s18 = sadd.s32 1, %s14
    $region7: #{tpu_custom_call.1} parent=1 // loop_footer_branch
      %13 = sbr.rel target = $region3
    $region8: #{tpu_custom_call.1} parent=1 // loop_exit
      _
    %3939 = vsyncpa [#allocation3], 1
    %s3940 = scalar_lea.sflag [#allocation3], 1
    %3941 = vsyncpa %s3940, 1
    %3942 = vsyncpa [#allocation4], 1
    %s3943 = scalar_lea.sflag [#allocation4], 1
    %3944 = vsyncpa %s3943, 1

</llo_original>
